<compile_context>
chip_gen: v5e
topology: v5e:2x2
jax: 0.10.0
libtpu: 0.0.40
codegen_flags: <defaults>
</compile_context>

<pallas_src>
import functools

import jax
import jax.numpy as jnp
from jax.experimental import pallas as pl
from jax.experimental.pallas import tpu as pltpu


PATCH = 32       # ViT-B/32 patch size
WIDTH = 256      # synthetic backbone width (real ViT-B/32 uses 768)
EMBED = 512      # CLIP joint embedding dim (hard-coded by the module)
LANE = 128
SUBLANE = 8


def _round_up(n, m):
    return (n + m - 1) // m * m


# --------------------------------------------------------------------------
# Fused forward kernel:
#   emb    = pooled_patches @ W_patch              (synthetic patch embed)
#   feats  = emb @ W_proj                          (synthetic projection)
#   fn     = feats / ||feats||_2                   (dim=-1, keepdim)
#   logits = fn @ combined_t + logit_bias          (classifier ∘ text^T, folded)
# Weights arrive pre-transposed / pre-folded / lane-padded in bf16; dots run
# on the bf16 MXU path with f32 accumulation; the norm runs in f32 on the VPU.
# --------------------------------------------------------------------------
def _fused_clip_kernel(x_ref, wp_ref, wj_ref, ct_ref, b_ref, o_ref):
    # patch embedding: [Bp, 3*P*P] @ [3*P*P, WIDTH]
    emb = jnp.dot(x_ref[...].astype(jnp.bfloat16), wp_ref[...],
                  preferred_element_type=jnp.float32)
    # projection to the CLIP joint space: [Bp, WIDTH] @ [WIDTH, EMBED]
    feats = jnp.dot(emb.astype(jnp.bfloat16), wj_ref[...],
                    preferred_element_type=jnp.float32)
    # L2 normalization (dim=-1, keepdim) with an epsilon floor (keeps the
    # zero padding rows finite; they are sliced away by the wrapper).
    ssq = jnp.sum(feats * feats, axis=-1, keepdims=True)
    fn = feats * jax.lax.rsqrt(jnp.maximum(ssq, 1e-12))
    # folded classifier + text logits: [Bp, EMBED] @ [EMBED, Cpad] + [1, Cpad]
    o_ref[...] = jnp.dot(fn.astype(jnp.bfloat16), ct_ref[...],
                         preferred_element_type=jnp.float32) + b_ref[...]


def _fused_forward(pooled, w_patch, w_proj, combined_t, logit_bias):
    Bp = pooled.shape[0]
    Cp = combined_t.shape[1]
    # No grid: single kernel invocation, every operand resident whole-array in
    # VMEM with no double-buffering (nothing to pipeline on a 1-step "grid").
    vmem = pl.BlockSpec(memory_space=pltpu.MemorySpace.VMEM)
    return pl.pallas_call(
        _fused_clip_kernel,
        out_shape=jax.ShapeDtypeStruct((Bp, Cp), jnp.float32),
        in_specs=[vmem, vmem, vmem, vmem, vmem],
        out_specs=vmem,
    )(pooled, w_patch, w_proj, combined_t, logit_bias)


# --------------------------------------------------------------------------
# Model wrapper
# --------------------------------------------------------------------------
@functools.partial(jax.jit, static_argnames=("num_classes",))
def clip_finetune_forward(x, params, num_classes):
    """x: NCHW [B, 3, H, W] float32, H and W multiples of PATCH."""
    B, C, H, W = x.shape
    hp, wp = H // PATCH, W // PATCH
    # Hoist the patch mean-pool before the patch-embed matmul:
    #   mean_over_patches(P) @ W == mean_over_patches(P @ W)
    # (valid only because the synthetic backbone is linear).  The reshape +
    # mean + pad fuse into a single XLA fusion under jit; keeping it out of
    # the kernel avoids a MiB-scale in-kernel pooling matrix.
    pooled = x.reshape(B, C, hp, PATCH, wp, PATCH).mean(axis=(2, 4))
    pooled = pooled.reshape(B, C * PATCH * PATCH)
    # Pad batch to a sublane multiple (padded rows stay finite, sliced below).
    Bp = _round_up(B, SUBLANE)
    pooled = jnp.pad(pooled, ((0, Bp - B), (0, 0)))
    logits_pad = _fused_forward(pooled, params["w_patch"], params["w_proj"],
                                params["combined_t"], params["logit_bias"])
    return logits_pad[:B, :num_classes]


def init_params(key, num_classes, finetune=False):
    # TODO(synk): the pretrained CLIP ViT-B/32 transformer blocks / class-token
    # path of encode_image (and encode_text for the class prompts) are omitted
    # — no checkpoint is available — and replaced by this deterministic
    # synthetic linear backbone with the same interface.
    k1, k2, k3, k4, k5 = jax.random.split(key, 5)
    # Frozen backbone weights stored in bf16 (kernel is weight-DMA bound).
    w_patch = (jax.random.normal(k1, (3 * PATCH * PATCH, WIDTH),
                                 jnp.float32) * 0.02).astype(jnp.bfloat16)
    w_proj = (jax.random.normal(k2, (WIDTH, EMBED),
                                jnp.float32) * 0.02).astype(jnp.bfloat16)

    # Synthetic stand-in for encode_text(class_tokens), pre-normalized as in
    # the module's __init__.
    text = jax.random.normal(k3, (num_classes, EMBED), jnp.float32)
    text = text / jnp.linalg.norm(text, axis=-1, keepdims=True)

    if finetune:
        w_cls = jax.random.normal(k4, (EMBED, EMBED), jnp.float32) * 0.02
        b_cls = jax.random.normal(k5, (EMBED,), jnp.float32) * 0.02
    else:
        # finetune=False => classifier is identity weight / zero bias
        w_cls = jnp.eye(EMBED, dtype=jnp.float32)
        b_cls = jnp.zeros((EMBED,), jnp.float32)

    # Fold the classifier into the text projection (exact reassociation since
    # the L2 norm happens before the classifier):
    #   logits = (fn @ Wc^T + b) @ T^T = fn @ (Wc^T @ T^T) + (b @ T^T)
    # Store lane-padded to 128 so the kernel's store is unmasked lane-dense;
    # re-fold here whenever the classifier weights are updated.
    c_pad = _round_up(max(num_classes, LANE), LANE)
    combined = jnp.transpose(w_cls) @ jnp.transpose(text)       # (EMBED, C)
    bias = b_cls @ jnp.transpose(text)                          # (C,)
    combined_t = jnp.zeros((EMBED, c_pad), jnp.float32)
    combined_t = combined_t.at[:, :num_classes].set(combined)
    logit_bias = jnp.zeros((1, c_pad), jnp.float32)
    logit_bias = logit_bias.at[0, :num_classes].set(bias)

    return {"w_patch": w_patch,
            "w_proj": w_proj,
            "combined_t": combined_t.astype(jnp.bfloat16),
            "logit_bias": logit_bias}


if __name__ == "__main__":
    key = jax.random.PRNGKey(0)
    kx, kp = jax.random.split(key)

    B, NUM_CLASSES = 2, 8
    x = jax.random.normal(kx, (B, 3, 64, 64), jnp.float32)   # NCHW
    params = init_params(kp, NUM_CLASSES)

    logits = clip_finetune_forward(x, params, NUM_CLASSES)
    logits = jax.block_until_ready(logits)
    assert logits.shape == (B, NUM_CLASSES), logits.shape
    assert bool(jnp.all(jnp.isfinite(logits)))
    print("KERNEL_OK")
</pallas_src>

<mosaic_0001>
module attributes {stable_mosaic.version = 11 : i64} {
  func.func @_fused_clip_kernel(%arg0: memref<8x3072xf32, #tpu.memory_space<vmem>>, %arg1: memref<3072x256xbf16, #tpu.memory_space<vmem>>, %arg2: memref<256x512xbf16, #tpu.memory_space<vmem>>, %arg3: memref<512x128xbf16, #tpu.memory_space<vmem>>, %arg4: memref<1x128xf32, #tpu.memory_space<vmem>>, %arg5: memref<8x128xf32, #tpu.memory_space<vmem>>) attributes {dimension_semantics = [], scalar_prefetch = 0 : i64, scratch_operands = 0 : i64, tpu.core_type = #tpu.core_type<tc>} {
    %c0 = arith.constant 0 : index
    %c0_0 = arith.constant 0 : index
    %0 = vector.load %arg0[%c0, %c0_0] : memref<8x3072xf32, #tpu.memory_space<vmem>>, vector<8x3072xf32>
    %1 = arith.truncf %0 : vector<8x3072xf32> to vector<8x3072xbf16>
    %c0_1 = arith.constant 0 : index
    %c0_2 = arith.constant 0 : index
    %2 = vector.load %arg1[%c0_1, %c0_2] : memref<3072x256xbf16, #tpu.memory_space<vmem>>, vector<3072x256xbf16>
    %cst = arith.constant dense<0.000000e+00> : vector<8x256xf32>
    %3 = tpu.matmul %1, %2, %cst {dimension_numbers = #tpu.dot_dimension_numbers<[1], [0], [0], [1], [0, 0, 1, 1], [], []>} : vector<8x3072xbf16>, vector<3072x256xbf16>, vector<8x256xf32> -> vector<8x256xf32>
    %4 = arith.truncf %3 : vector<8x256xf32> to vector<8x256xbf16>
    %c0_3 = arith.constant 0 : index
    %c0_4 = arith.constant 0 : index
    %5 = vector.load %arg2[%c0_3, %c0_4] : memref<256x512xbf16, #tpu.memory_space<vmem>>, vector<256x512xbf16>
    %cst_5 = arith.constant dense<0.000000e+00> : vector<8x512xf32>
    %6 = tpu.matmul %4, %5, %cst_5 {dimension_numbers = #tpu.dot_dimension_numbers<[1], [0], [0], [1], [0, 0, 1, 1], [], []>} : vector<8x256xbf16>, vector<256x512xbf16>, vector<8x512xf32> -> vector<8x512xf32>
    %7 = arith.mulf %6, %6 : vector<8x512xf32>
    %cst_6 = arith.constant dense<0.000000e+00> : vector<8xf32>
    %8 = vector.multi_reduction <add>, %7, %cst_6 [1] : vector<8x512xf32> to vector<8xf32>
    %9 = vector.shape_cast %8 : vector<8xf32> to vector<8x1xf32>
    %cst_7 = arith.constant 9.99999996E-13 : f32
    %10 = vector.broadcast %cst_7 : f32 to vector<8x1xf32>
    %11 = arith.maximumf %9, %10 : vector<8x1xf32>
    %12 = math.rsqrt %11 : vector<8x1xf32>
    %13 = vector.broadcast %12 : vector<8x1xf32> to vector<8x512xf32>
    %14 = arith.mulf %6, %13 : vector<8x512xf32>
    %15 = arith.truncf %14 : vector<8x512xf32> to vector<8x512xbf16>
    %c0_8 = arith.constant 0 : index
    %c0_9 = arith.constant 0 : index
    %16 = vector.load %arg3[%c0_8, %c0_9] : memref<512x128xbf16, #tpu.memory_space<vmem>>, vector<512x128xbf16>
    %cst_10 = arith.constant dense<0.000000e+00> : vector<8x128xf32>
    %17 = tpu.matmul %15, %16, %cst_10 {dimension_numbers = #tpu.dot_dimension_numbers<[1], [0], [0], [1], [0, 0, 1, 1], [], []>} : vector<8x512xbf16>, vector<512x128xbf16>, vector<8x128xf32> -> vector<8x128xf32>
    %c0_11 = arith.constant 0 : index
    %c0_12 = arith.constant 0 : index
    %18 = vector.load %arg4[%c0_11, %c0_12] : memref<1x128xf32, #tpu.memory_space<vmem>>, vector<1x128xf32>
    %19 = vector.broadcast %18 : vector<1x128xf32> to vector<8x128xf32>
    %20 = arith.addf %17, %19 : vector<8x128xf32>
    %c0_13 = arith.constant 0 : index
    %c0_14 = arith.constant 0 : index
    %21 = vector.load %arg5[%c0_13, %c0_14] : memref<8x128xf32, #tpu.memory_space<vmem>>, vector<8x128xf32>
    tpu.vector_store %arg5[%c0_13, %c0_14], %20 {strides = array<i32>} : memref<8x128xf32, #tpu.memory_space<vmem>>, vector<8x128xf32>,
    return
  }
}

</mosaic_0001>

<llo_original>
// kernel: clip_finetune_forward.1
$region0: #{clip_finetune_forward.1}
  #allocation0 [shape = 'u32[]', space=smem, size = 0x4, offset = 0x4, fixed_abs, tag = 'smem constant byte address 0x4 - core index']
  #allocation1 [shape = 'u32[72,128]{1,0:T(1,128)}', space=vmem, size = 0x9000, scoped, tag = 'internal scratch']
  %s0 = inlined_call_operand.vmem [shape: f32[8,3072], index: 0, kind: input, shape index: {}]
  %s1 = inlined_call_operand.hbm [shape: bf16[3072,256], index: 1, kind: input, shape index: {}]
  %s2 = inlined_call_operand.hbm [shape: bf16[256,512], index: 2, kind: input, shape index: {}]
  %s3 = inlined_call_operand.hbm [shape: bf16[512,128], index: 3, kind: input, shape index: {}]
  %s4 = inlined_call_operand.hbm [shape: f32[1,128], index: 4, kind: input, shape index: {}]
  %s5 = inlined_call_operand.vmem [shape: f32[8,128], index: 5, kind: output, shape index: {}]
  %s6 = sld [smem:[#allocation0]]
  $region46: #{clip_finetune_forward.1} parent=0
    _
  %s8 = ssub.s32 1, %s6
  %s9 = scalar_select 0, %s8, %s6
  $region1: #{clip_finetune_forward.1} parent=0
    #allocation2 [shape = 'u8[1572864]{0}', space=vmem, size = 0x180000, scoped, tag = 'input window, operand 1, single buffered']
    #allocation3 [shape = 's32[1]{0}', space=sflag, size = 0x4, scoped, tag = 'scoped memory for clip_finetune_forward.1']
    #allocation4 [shape = 'u8[262144]{0}', space=vmem, size = 0x40000, scoped, tag = 'input window, operand 2, single buffered']
    #allocation5 [shape = 's32[1]{0}', space=sflag, size = 0x4, scoped, tag = 'scoped memory for clip_finetune_forward.1']
    #allocation6 [shape = 'u8[131072]{0}', space=vmem, size = 0x20000, scoped, tag = 'input window, operand 3, single buffered']
    #allocation7 [shape = 'u8[512]{0}', space=vmem, size = 0x400, scoped, tag = 'input window, operand 4, single buffered']
    #allocation8 [shape = 's32[1]{0}', space=sflag, size = 0x4, scoped, tag = 'scoped memory for clip_finetune_forward.1']
    %10 = vsyncpa [#allocation3], 0
    %11 = vsyncpa [#allocation5], 0
    %12 = vsyncpa [#allocation8], 0
    // Predicated region
    $region2: #{clip_finetune_forward.1} parent=1 // pred_check
      _
    $region3: #{clip_finetune_forward.1} parent=1 // pred_check_branch
      %14 = sbr.rel (0) target = $region5
    $region4: #{clip_finetune_forward.1} parent=1 // pred_region
      _
    $region5: #{clip_finetune_forward.1} parent=1 // pred_fallthru
      _
    // Predicated region
    $region6: #{clip_finetune_forward.1} parent=1 // pred_check
      _
    $region7: #{clip_finetune_forward.1} parent=1 // pred_check_branch
      %16 = sbr.rel (0) target = $region9
    $region8: #{clip_finetune_forward.1} parent=1 // pred_region
      %18 = vsyncadd [#allocation3], 0
      %s19 = sshll.u32 %s1, 4
      %s20 = int_to_ptr.hbm [resolvable:$true] %s19
      %s21 = sshll.u32 [#allocation2], 4
      %s22 = int_to_ptr.vmem [resolvable:$true] %s21
      %27 = dma.hbm_to_vmem [thread:$0]  %s20, 49152, %s22, [#allocation3], 128, 128, 8
    $region9: #{clip_finetune_forward.1} parent=1 // pred_fallthru
      _
    // Predicated region
    $region10: #{clip_finetune_forward.1} parent=1 // pred_check
      _
    $region11: #{clip_finetune_forward.1} parent=1 // pred_check_branch
      %29 = sbr.rel (0) target = $region13
    $region12: #{clip_finetune_forward.1} parent=1 // pred_region
      %31 = vsyncadd [#allocation5], 0
      %s32 = sshll.u32 %s2, 4
      %s33 = int_to_ptr.hbm [resolvable:$true] %s32
      %s34 = sshll.u32 [#allocation4], 4
      %s35 = int_to_ptr.vmem [resolvable:$true] %s34
      %40 = dma.hbm_to_vmem [thread:$0]  %s33, 8192, %s35, [#allocation5], 256, 256, 16
    $region13: #{clip_finetune_forward.1} parent=1 // pred_fallthru
      _
    // Predicated region
    $region14: #{clip_finetune_forward.1} parent=1 // pred_check
      _
    $region15: #{clip_finetune_forward.1} parent=1 // pred_check_branch
      %42 = sbr.rel (0) target = $region17
    $region16: #{clip_finetune_forward.1} parent=1 // pred_region
      %44 = vsyncadd [#allocation5], 0
      %s45 = sshll.u32 %s3, 4
      %s46 = int_to_ptr.hbm [resolvable:$true] %s45
      %s47 = sshll.u32 [#allocation6], 4
      %s48 = int_to_ptr.vmem [resolvable:$true] %s47
      %53 = dma.hbm_to_vmem [thread:$0]  %s46, 4096, %s48, [#allocation5], 64, 64, 4
    $region17: #{clip_finetune_forward.1} parent=1 // pred_fallthru
      _
    // Predicated region
    $region18: #{clip_finetune_forward.1} parent=1 // pred_check
      _
    $region19: #{clip_finetune_forward.1} parent=1 // pred_check_branch
      %55 = sbr.rel (0) target = $region21
    $region20: #{clip_finetune_forward.1} parent=1 // pred_region
      %57 = vsyncadd [#allocation8], 0
      %s59 = sshll.u32 %s4, 4
      %s60 = int_to_ptr.hbm [resolvable:$true] %s59
      %s61 = sshll.u32 [#allocation7], 4
      %s62 = int_to_ptr.vmem [resolvable:$true] %s61
      %64 = dma.hbm_to_vmem [thread:$0]  %s60, 16, %s62, [#allocation8]
    $region21: #{clip_finetune_forward.1} parent=1 // pred_fallthru
      _
    // Predicated region
    $region22: #{clip_finetune_forward.1} parent=1 // pred_check
      _
    $region23: #{clip_finetune_forward.1} parent=1 // pred_check_branch
      %66 = sbr.rel (0) target = $region25
    $region24: #{clip_finetune_forward.1} parent=1 // pred_region
      %68 = dma.done [#allocation3], 49152
    $region25: #{clip_finetune_forward.1} parent=1 // pred_fallthru
      _
    // Predicated region
    $region26: #{clip_finetune_forward.1} parent=1 // pred_check
      _
    $region27: #{clip_finetune_forward.1} parent=1 // pred_check_branch
      %70 = sbr.rel (0) target = $region29
    $region28: #{clip_finetune_forward.1} parent=1 // pred_region
      %72 = dma.done [#allocation5], 8192
    $region29: #{clip_finetune_forward.1} parent=1 // pred_fallthru
      _
    // Predicated region
    $region30: #{clip_finetune_forward.1} parent=1 // pred_check
      _
    $region31: #{clip_finetune_forward.1} parent=1 // pred_check_branch
      %74 = sbr.rel (0) target = $region33
    $region32: #{clip_finetune_forward.1} parent=1 // pred_region
      %76 = dma.done [#allocation5], 4096
    $region33: #{clip_finetune_forward.1} parent=1 // pred_fallthru
      _
    // Predicated region
    $region34: #{clip_finetune_forward.1} parent=1 // pred_check
      _
    $region35: #{clip_finetune_forward.1} parent=1 // pred_check_branch
      %78 = sbr.rel (0) target = $region37
    $region36: #{clip_finetune_forward.1} parent=1 // pred_region
      %80 = dma.done [#allocation8], 16
    $region37: #{clip_finetune_forward.1} parent=1 // pred_fallthru
      _
    %v81 = vld [vmem:[%s0] sm:$0xff]
    %v82 = vld [vmem:[%s0 + $0x8] sm:$0xff]
    %v83 = vld [vmem:[%s0 + $0x10] sm:$0xff]
    %v84 = vld [vmem:[%s0 + $0x18] sm:$0xff]
    %v85 = vld [vmem:[%s0 + $0x20] sm:$0xff]
    %v86 = vld [vmem:[%s0 + $0x28] sm:$0xff]
    %v87 = vld [vmem:[%s0 + $0x30] sm:$0xff]
    %v88 = vld [vmem:[%s0 + $0x38] sm:$0xff]
    %v89 = vld [vmem:[%s0 + $0x40] sm:$0xff]
    %v90 = vld [vmem:[%s0 + $0x48] sm:$0xff]
    %v91 = vld [vmem:[%s0 + $0x50] sm:$0xff]
    %v92 = vld [vmem:[%s0 + $0x58] sm:$0xff]
    %v93 = vld [vmem:[%s0 + $0x60] sm:$0xff]
    %v94 = vld [vmem:[%s0 + $0x68] sm:$0xff]
    %v95 = vld [vmem:[%s0 + $0x70] sm:$0xff]
    %v96 = vld [vmem:[%s0 + $0x78] sm:$0xff]
    %v97 = vld [vmem:[%s0 + $0x80] sm:$0xff]
    %v98 = vld [vmem:[%s0 + $0x88] sm:$0xff]
    %v99 = vld [vmem:[%s0 + $0x90] sm:$0xff]
    %v100 = vld [vmem:[%s0 + $0x98] sm:$0xff]
    %v101 = vld [vmem:[%s0 + $0xa0] sm:$0xff]
    %v102 = vld [vmem:[%s0 + $0xa8] sm:$0xff]
    %v103 = vld [vmem:[%s0 + $0xb0] sm:$0xff]
    %v104 = vld [vmem:[%s0 + $0xb8] sm:$0xff]
    %v105 = vpack.c.bf16 %v81, %v81
    %v106 = vpack.c.bf16 %v82, %v82
    %v107 = vpack.c.bf16 %v83, %v83
    %v108 = vpack.c.bf16 %v84, %v84
    %v109 = vpack.c.bf16 %v85, %v85
    %v110 = vpack.c.bf16 %v86, %v86
    %v111 = vpack.c.bf16 %v87, %v87
    %v112 = vpack.c.bf16 %v88, %v88
    %v113 = vpack.c.bf16 %v89, %v89
    %v114 = vpack.c.bf16 %v90, %v90
    %v115 = vpack.c.bf16 %v91, %v91
    %v116 = vpack.c.bf16 %v92, %v92
    %v117 = vpack.c.bf16 %v93, %v93
    %v118 = vpack.c.bf16 %v94, %v94
    %v119 = vpack.c.bf16 %v95, %v95
    %v120 = vpack.c.bf16 %v96, %v96
    %v121 = vpack.c.bf16 %v97, %v97
    %v122 = vpack.c.bf16 %v98, %v98
    %v123 = vpack.c.bf16 %v99, %v99
    %v124 = vpack.c.bf16 %v100, %v100
    %v125 = vpack.c.bf16 %v101, %v101
    %v126 = vpack.c.bf16 %v102, %v102
    %v127 = vpack.c.bf16 %v103, %v103
    %v128 = vpack.c.bf16 %v104, %v104
    %v129 = vld [vmem:[#allocation2] sm:$0xff]
    %v130 = vld [vmem:[#allocation2 + $0x8] sm:$0xff]
    %v131 = vld [vmem:[#allocation2 + $0x10] sm:$0xff]
    %v132 = vld [vmem:[#allocation2 + $0x18] sm:$0xff]
    %v133 = vld [vmem:[#allocation2 + $0x20] sm:$0xff]
    %v134 = vld [vmem:[#allocation2 + $0x28] sm:$0xff]
    %v135 = vld [vmem:[#allocation2 + $0x30] sm:$0xff]
    %v136 = vld [vmem:[#allocation2 + $0x38] sm:$0xff]
    %v137 = vld [vmem:[#allocation2 + $0x40] sm:$0xff]
    %v138 = vld [vmem:[#allocation2 + $0x48] sm:$0xff]
    %v139 = vld [vmem:[#allocation2 + $0x50] sm:$0xff]
    %v140 = vld [vmem:[#allocation2 + $0x58] sm:$0xff]
    %v141 = vld [vmem:[#allocation2 + $0x60] sm:$0xff]
    %v142 = vld [vmem:[#allocation2 + $0x68] sm:$0xff]
    %v143 = vld [vmem:[#allocation2 + $0x70] sm:$0xff]
    %v144 = vld [vmem:[#allocation2 + $0x78] sm:$0xff]
    %v145 = vld [vmem:[#allocation2 + $0x80] sm:$0xff]
    %v146 = vld [vmem:[#allocation2 + $0x88] sm:$0xff]
    %v147 = vld [vmem:[#allocation2 + $0x90] sm:$0xff]
    %v148 = vld [vmem:[#allocation2 + $0x98] sm:$0xff]
    %v149 = vld [vmem:[#allocation2 + $0xa0] sm:$0xff]
    %v150 = vld [vmem:[#allocation2 + $0xa8] sm:$0xff]
    %v151 = vld [vmem:[#allocation2 + $0xb0] sm:$0xff]
    %v152 = vld [vmem:[#allocation2 + $0xb8] sm:$0xff]
    %v153 = vld [vmem:[#allocation2 + $0xc0] sm:$0xff]
    %v154 = vld [vmem:[#allocation2 + $0xc8] sm:$0xff]
    %v155 = vld [vmem:[#allocation2 + $0xd0] sm:$0xff]
    %v156 = vld [vmem:[#allocation2 + $0xd8] sm:$0xff]
    %v157 = vld [vmem:[#allocation2 + $0xe0] sm:$0xff]
    %v158 = vld [vmem:[#allocation2 + $0xe8] sm:$0xff]
    %v159 = vld [vmem:[#allocation2 + $0xf0] sm:$0xff]
    %v160 = vld [vmem:[#allocation2 + $0xf8] sm:$0xff]
    %v161 = vld [vmem:[#allocation2 + $0x100] sm:$0xff]
    %v162 = vld [vmem:[#allocation2 + $0x108] sm:$0xff]
    %v163 = vld [vmem:[#allocation2 + $0x110] sm:$0xff]
    %v164 = vld [vmem:[#allocation2 + $0x118] sm:$0xff]
    %v165 = vld [vmem:[#allocation2 + $0x120] sm:$0xff]
    %v166 = vld [vmem:[#allocation2 + $0x128] sm:$0xff]
    %v167 = vld [vmem:[#allocation2 + $0x130] sm:$0xff]
    %v168 = vld [vmem:[#allocation2 + $0x138] sm:$0xff]
    %v169 = vld [vmem:[#allocation2 + $0x140] sm:$0xff]
    %v170 = vld [vmem:[#allocation2 + $0x148] sm:$0xff]
    %v171 = vld [vmem:[#allocation2 + $0x150] sm:$0xff]
    %v172 = vld [vmem:[#allocation2 + $0x158] sm:$0xff]
    %v173 = vld [vmem:[#allocation2 + $0x160] sm:$0xff]
    %v174 = vld [vmem:[#allocation2 + $0x168] sm:$0xff]
    %v175 = vld [vmem:[#allocation2 + $0x170] sm:$0xff]
    %v176 = vld [vmem:[#allocation2 + $0x178] sm:$0xff]
    %v177 = vld [vmem:[#allocation2 + $0x180] sm:$0xff]
    %v178 = vld [vmem:[#allocation2 + $0x188] sm:$0xff]
    %v179 = vld [vmem:[#allocation2 + $0x190] sm:$0xff]
    %v180 = vld [vmem:[#allocation2 + $0x198] sm:$0xff]
    %v181 = vld [vmem:[#allocation2 + $0x1a0] sm:$0xff]
    %v182 = vld [vmem:[#allocation2 + $0x1a8] sm:$0xff]
    %v183 = vld [vmem:[#allocation2 + $0x1b0] sm:$0xff]
    %v184 = vld [vmem:[#allocation2 + $0x1b8] sm:$0xff]
    %v185 = vld [vmem:[#allocation2 + $0x1c0] sm:$0xff]
    %v186 = vld [vmem:[#allocation2 + $0x1c8] sm:$0xff]
    %v187 = vld [vmem:[#allocation2 + $0x1d0] sm:$0xff]
    %v188 = vld [vmem:[#allocation2 + $0x1d8] sm:$0xff]
    %v189 = vld [vmem:[#allocation2 + $0x1e0] sm:$0xff]
    %v190 = vld [vmem:[#allocation2 + $0x1e8] sm:$0xff]
    %v191 = vld [vmem:[#allocation2 + $0x1f0] sm:$0xff]
    %v192 = vld [vmem:[#allocation2 + $0x1f8] sm:$0xff]
    %v193 = vld [vmem:[#allocation2 + $0x200] sm:$0xff]
    %v194 = vld [vmem:[#allocation2 + $0x208] sm:$0xff]
    %v195 = vld [vmem:[#allocation2 + $0x210] sm:$0xff]
    %v196 = vld [vmem:[#allocation2 + $0x218] sm:$0xff]
    %v197 = vld [vmem:[#allocation2 + $0x220] sm:$0xff]
    %v198 = vld [vmem:[#allocation2 + $0x228] sm:$0xff]
    %v199 = vld [vmem:[#allocation2 + $0x230] sm:$0xff]
    %v200 = vld [vmem:[#allocation2 + $0x238] sm:$0xff]
    %v201 = vld [vmem:[#allocation2 + $0x240] sm:$0xff]
    %v202 = vld [vmem:[#allocation2 + $0x248] sm:$0xff]
    %v203 = vld [vmem:[#allocation2 + $0x250] sm:$0xff]
    %v204 = vld [vmem:[#allocation2 + $0x258] sm:$0xff]
    %v205 = vld [vmem:[#allocation2 + $0x260] sm:$0xff]
    %v206 = vld [vmem:[#allocation2 + $0x268] sm:$0xff]
    %v207 = vld [vmem:[#allocation2 + $0x270] sm:$0xff]
    %v208 = vld [vmem:[#allocation2 + $0x278] sm:$0xff]
    %v209 = vld [vmem:[#allocation2 + $0x280] sm:$0xff]
    %v210 = vld [vmem:[#allocation2 + $0x288] sm:$0xff]
    %v211 = vld [vmem:[#allocation2 + $0x290] sm:$0xff]
    %v212 = vld [vmem:[#allocation2 + $0x298] sm:$0xff]
    %v213 = vld [vmem:[#allocation2 + $0x2a0] sm:$0xff]
    %v214 = vld [vmem:[#allocation2 + $0x2a8] sm:$0xff]
    %v215 = vld [vmem:[#allocation2 + $0x2b0] sm:$0xff]
    %v216 = vld [vmem:[#allocation2 + $0x2b8] sm:$0xff]
    %v217 = vld [vmem:[#allocation2 + $0x2c0] sm:$0xff]
    %v218 = vld [vmem:[#allocation2 + $0x2c8] sm:$0xff]
    %v219 = vld [vmem:[#allocation2 + $0x2d0] sm:$0xff]
    %v220 = vld [vmem:[#allocation2 + $0x2d8] sm:$0xff]
    %v221 = vld [vmem:[#allocation2 + $0x2e0] sm:$0xff]
    %v222 = vld [vmem:[#allocation2 + $0x2e8] sm:$0xff]
    %v223 = vld [vmem:[#allocation2 + $0x2f0] sm:$0xff]
    %v224 = vld [vmem:[#allocation2 + $0x2f8] sm:$0xff]
    %v225 = vld [vmem:[#allocation2 + $0x300] sm:$0xff]
    %v226 = vld [vmem:[#allocation2 + $0x308] sm:$0xff]
    %v227 = vld [vmem:[#allocation2 + $0x310] sm:$0xff]
    %v228 = vld [vmem:[#allocation2 + $0x318] sm:$0xff]
    %v229 = vld [vmem:[#allocation2 + $0x320] sm:$0xff]
    %v230 = vld [vmem:[#allocation2 + $0x328] sm:$0xff]
    %v231 = vld [vmem:[#allocation2 + $0x330] sm:$0xff]
    %v232 = vld [vmem:[#allocation2 + $0x338] sm:$0xff]
    %v233 = vld [vmem:[#allocation2 + $0x340] sm:$0xff]
    %v234 = vld [vmem:[#allocation2 + $0x348] sm:$0xff]
    %v235 = vld [vmem:[#allocation2 + $0x350] sm:$0xff]
    %v236 = vld [vmem:[#allocation2 + $0x358] sm:$0xff]
    %v237 = vld [vmem:[#allocation2 + $0x360] sm:$0xff]
    %v238 = vld [vmem:[#allocation2 + $0x368] sm:$0xff]
    %v239 = vld [vmem:[#allocation2 + $0x370] sm:$0xff]
    %v240 = vld [vmem:[#allocation2 + $0x378] sm:$0xff]
    %v241 = vld [vmem:[#allocation2 + $0x380] sm:$0xff]
    %v242 = vld [vmem:[#allocation2 + $0x388] sm:$0xff]
    %v243 = vld [vmem:[#allocation2 + $0x390] sm:$0xff]
    %v244 = vld [vmem:[#allocation2 + $0x398] sm:$0xff]
    %v245 = vld [vmem:[#allocation2 + $0x3a0] sm:$0xff]
    %v246 = vld [vmem:[#allocation2 + $0x3a8] sm:$0xff]
    %v247 = vld [vmem:[#allocation2 + $0x3b0] sm:$0xff]
    %v248 = vld [vmem:[#allocation2 + $0x3b8] sm:$0xff]
    %v249 = vld [vmem:[#allocation2 + $0x3c0] sm:$0xff]
    %v250 = vld [vmem:[#allocation2 + $0x3c8] sm:$0xff]
    %v251 = vld [vmem:[#allocation2 + $0x3d0] sm:$0xff]
    %v252 = vld [vmem:[#allocation2 + $0x3d8] sm:$0xff]
    %v253 = vld [vmem:[#allocation2 + $0x3e0] sm:$0xff]
    %v254 = vld [vmem:[#allocation2 + $0x3e8] sm:$0xff]
    %v255 = vld [vmem:[#allocation2 + $0x3f0] sm:$0xff]
    %v256 = vld [vmem:[#allocation2 + $0x3f8] sm:$0xff]
    %v257 = vld [vmem:[#allocation2 + $0x400] sm:$0xff]
    %v258 = vld [vmem:[#allocation2 + $0x408] sm:$0xff]
    %v259 = vld [vmem:[#allocation2 + $0x410] sm:$0xff]
    %v260 = vld [vmem:[#allocation2 + $0x418] sm:$0xff]
    %v261 = vld [vmem:[#allocation2 + $0x420] sm:$0xff]
    %v262 = vld [vmem:[#allocation2 + $0x428] sm:$0xff]
    %v263 = vld [vmem:[#allocation2 + $0x430] sm:$0xff]
    %v264 = vld [vmem:[#allocation2 + $0x438] sm:$0xff]
    %v265 = vld [vmem:[#allocation2 + $0x440] sm:$0xff]
    %v266 = vld [vmem:[#allocation2 + $0x448] sm:$0xff]
    %v267 = vld [vmem:[#allocation2 + $0x450] sm:$0xff]
    %v268 = vld [vmem:[#allocation2 + $0x458] sm:$0xff]
    %v269 = vld [vmem:[#allocation2 + $0x460] sm:$0xff]
    %v270 = vld [vmem:[#allocation2 + $0x468] sm:$0xff]
    %v271 = vld [vmem:[#allocation2 + $0x470] sm:$0xff]
    %v272 = vld [vmem:[#allocation2 + $0x478] sm:$0xff]
    %v273 = vld [vmem:[#allocation2 + $0x480] sm:$0xff]
    %v274 = vld [vmem:[#allocation2 + $0x488] sm:$0xff]
    %v275 = vld [vmem:[#allocation2 + $0x490] sm:$0xff]
    %v276 = vld [vmem:[#allocation2 + $0x498] sm:$0xff]
    %v277 = vld [vmem:[#allocation2 + $0x4a0] sm:$0xff]
    %v278 = vld [vmem:[#allocation2 + $0x4a8] sm:$0xff]
    %v279 = vld [vmem:[#allocation2 + $0x4b0] sm:$0xff]
    %v280 = vld [vmem:[#allocation2 + $0x4b8] sm:$0xff]
    %v281 = vld [vmem:[#allocation2 + $0x4c0] sm:$0xff]
    %v282 = vld [vmem:[#allocation2 + $0x4c8] sm:$0xff]
    %v283 = vld [vmem:[#allocation2 + $0x4d0] sm:$0xff]
    %v284 = vld [vmem:[#allocation2 + $0x4d8] sm:$0xff]
    %v285 = vld [vmem:[#allocation2 + $0x4e0] sm:$0xff]
    %v286 = vld [vmem:[#allocation2 + $0x4e8] sm:$0xff]
    %v287 = vld [vmem:[#allocation2 + $0x4f0] sm:$0xff]
    %v288 = vld [vmem:[#allocation2 + $0x4f8] sm:$0xff]
    %v289 = vld [vmem:[#allocation2 + $0x500] sm:$0xff]
    %v290 = vld [vmem:[#allocation2 + $0x508] sm:$0xff]
    %v291 = vld [vmem:[#allocation2 + $0x510] sm:$0xff]
    %v292 = vld [vmem:[#allocation2 + $0x518] sm:$0xff]
    %v293 = vld [vmem:[#allocation2 + $0x520] sm:$0xff]
    %v294 = vld [vmem:[#allocation2 + $0x528] sm:$0xff]
    %v295 = vld [vmem:[#allocation2 + $0x530] sm:$0xff]
    %v296 = vld [vmem:[#allocation2 + $0x538] sm:$0xff]
    %v297 = vld [vmem:[#allocation2 + $0x540] sm:$0xff]
    %v298 = vld [vmem:[#allocation2 + $0x548] sm:$0xff]
    %v299 = vld [vmem:[#allocation2 + $0x550] sm:$0xff]
    %v300 = vld [vmem:[#allocation2 + $0x558] sm:$0xff]
    %v301 = vld [vmem:[#allocation2 + $0x560] sm:$0xff]
    %v302 = vld [vmem:[#allocation2 + $0x568] sm:$0xff]
    %v303 = vld [vmem:[#allocation2 + $0x570] sm:$0xff]
    %v304 = vld [vmem:[#allocation2 + $0x578] sm:$0xff]
    %v305 = vld [vmem:[#allocation2 + $0x580] sm:$0xff]
    %v306 = vld [vmem:[#allocation2 + $0x588] sm:$0xff]
    %v307 = vld [vmem:[#allocation2 + $0x590] sm:$0xff]
    %v308 = vld [vmem:[#allocation2 + $0x598] sm:$0xff]
    %v309 = vld [vmem:[#allocation2 + $0x5a0] sm:$0xff]
    %v310 = vld [vmem:[#allocation2 + $0x5a8] sm:$0xff]
    %v311 = vld [vmem:[#allocation2 + $0x5b0] sm:$0xff]
    %v312 = vld [vmem:[#allocation2 + $0x5b8] sm:$0xff]
    %v313 = vld [vmem:[#allocation2 + $0x5c0] sm:$0xff]
    %v314 = vld [vmem:[#allocation2 + $0x5c8] sm:$0xff]
    %v315 = vld [vmem:[#allocation2 + $0x5d0] sm:$0xff]
    %v316 = vld [vmem:[#allocation2 + $0x5d8] sm:$0xff]
    %v317 = vld [vmem:[#allocation2 + $0x5e0] sm:$0xff]
    %v318 = vld [vmem:[#allocation2 + $0x5e8] sm:$0xff]
    %v319 = vld [vmem:[#allocation2 + $0x5f0] sm:$0xff]
    %v320 = vld [vmem:[#allocation2 + $0x5f8] sm:$0xff]
    %v321 = vld [vmem:[#allocation2 + $0x600] sm:$0xff]
    %v322 = vld [vmem:[#allocation2 + $0x608] sm:$0xff]
    %v323 = vld [vmem:[#allocation2 + $0x610] sm:$0xff]
    %v324 = vld [vmem:[#allocation2 + $0x618] sm:$0xff]
    %v325 = vld [vmem:[#allocation2 + $0x620] sm:$0xff]
    %v326 = vld [vmem:[#allocation2 + $0x628] sm:$0xff]
    %v327 = vld [vmem:[#allocation2 + $0x630] sm:$0xff]
    %v328 = vld [vmem:[#allocation2 + $0x638] sm:$0xff]
    %v329 = vld [vmem:[#allocation2 + $0x640] sm:$0xff]
    %v330 = vld [vmem:[#allocation2 + $0x648] sm:$0xff]
    %v331 = vld [vmem:[#allocation2 + $0x650] sm:$0xff]
    %v332 = vld [vmem:[#allocation2 + $0x658] sm:$0xff]
    %v333 = vld [vmem:[#allocation2 + $0x660] sm:$0xff]
    %v334 = vld [vmem:[#allocation2 + $0x668] sm:$0xff]
    %v335 = vld [vmem:[#allocation2 + $0x670] sm:$0xff]
    %v336 = vld [vmem:[#allocation2 + $0x678] sm:$0xff]
    %v337 = vld [vmem:[#allocation2 + $0x680] sm:$0xff]
    %v338 = vld [vmem:[#allocation2 + $0x688] sm:$0xff]
    %v339 = vld [vmem:[#allocation2 + $0x690] sm:$0xff]
    %v340 = vld [vmem:[#allocation2 + $0x698] sm:$0xff]
    %v341 = vld [vmem:[#allocation2 + $0x6a0] sm:$0xff]
    %v342 = vld [vmem:[#allocation2 + $0x6a8] sm:$0xff]
    %v343 = vld [vmem:[#allocation2 + $0x6b0] sm:$0xff]
    %v344 = vld [vmem:[#allocation2 + $0x6b8] sm:$0xff]
    %v345 = vld [vmem:[#allocation2 + $0x6c0] sm:$0xff]
    %v346 = vld [vmem:[#allocation2 + $0x6c8] sm:$0xff]
    %v347 = vld [vmem:[#allocation2 + $0x6d0] sm:$0xff]
    %v348 = vld [vmem:[#allocation2 + $0x6d8] sm:$0xff]
    %v349 = vld [vmem:[#allocation2 + $0x6e0] sm:$0xff]
    %v350 = vld [vmem:[#allocation2 + $0x6e8] sm:$0xff]
    %v351 = vld [vmem:[#allocation2 + $0x6f0] sm:$0xff]
    %v352 = vld [vmem:[#allocation2 + $0x6f8] sm:$0xff]
    %v353 = vld [vmem:[#allocation2 + $0x700] sm:$0xff]
    %v354 = vld [vmem:[#allocation2 + $0x708] sm:$0xff]
    %v355 = vld [vmem:[#allocation2 + $0x710] sm:$0xff]
    %v356 = vld [vmem:[#allocation2 + $0x718] sm:$0xff]
    %v357 = vld [vmem:[#allocation2 + $0x720] sm:$0xff]
    %v358 = vld [vmem:[#allocation2 + $0x728] sm:$0xff]
    %v359 = vld [vmem:[#allocation2 + $0x730] sm:$0xff]
    %v360 = vld [vmem:[#allocation2 + $0x738] sm:$0xff]
    %v361 = vld [vmem:[#allocation2 + $0x740] sm:$0xff]
    %v362 = vld [vmem:[#allocation2 + $0x748] sm:$0xff]
    %v363 = vld [vmem:[#allocation2 + $0x750] sm:$0xff]
    %v364 = vld [vmem:[#allocation2 + $0x758] sm:$0xff]
    %v365 = vld [vmem:[#allocation2 + $0x760] sm:$0xff]
    %v366 = vld [vmem:[#allocation2 + $0x768] sm:$0xff]
    %v367 = vld [vmem:[#allocation2 + $0x770] sm:$0xff]
    %v368 = vld [vmem:[#allocation2 + $0x778] sm:$0xff]
    %v369 = vld [vmem:[#allocation2 + $0x780] sm:$0xff]
    %v370 = vld [vmem:[#allocation2 + $0x788] sm:$0xff]
    %v371 = vld [vmem:[#allocation2 + $0x790] sm:$0xff]
    %v372 = vld [vmem:[#allocation2 + $0x798] sm:$0xff]
    %v373 = vld [vmem:[#allocation2 + $0x7a0] sm:$0xff]
    %v374 = vld [vmem:[#allocation2 + $0x7a8] sm:$0xff]
    %v375 = vld [vmem:[#allocation2 + $0x7b0] sm:$0xff]
    %v376 = vld [vmem:[#allocation2 + $0x7b8] sm:$0xff]
    %v377 = vld [vmem:[#allocation2 + $0x7c0] sm:$0xff]
    %v378 = vld [vmem:[#allocation2 + $0x7c8] sm:$0xff]
    %v379 = vld [vmem:[#allocation2 + $0x7d0] sm:$0xff]
    %v380 = vld [vmem:[#allocation2 + $0x7d8] sm:$0xff]
    %v381 = vld [vmem:[#allocation2 + $0x7e0] sm:$0xff]
    %v382 = vld [vmem:[#allocation2 + $0x7e8] sm:$0xff]
    %v383 = vld [vmem:[#allocation2 + $0x7f0] sm:$0xff]
    %v384 = vld [vmem:[#allocation2 + $0x7f8] sm:$0xff]
    %v385 = vld [vmem:[#allocation2 + $0x800] sm:$0xff]
    %v386 = vld [vmem:[#allocation2 + $0x808] sm:$0xff]
    %v387 = vld [vmem:[#allocation2 + $0x810] sm:$0xff]
    %v388 = vld [vmem:[#allocation2 + $0x818] sm:$0xff]
    %v389 = vld [vmem:[#allocation2 + $0x820] sm:$0xff]
    %v390 = vld [vmem:[#allocation2 + $0x828] sm:$0xff]
    %v391 = vld [vmem:[#allocation2 + $0x830] sm:$0xff]
    %v392 = vld [vmem:[#allocation2 + $0x838] sm:$0xff]
    %v393 = vld [vmem:[#allocation2 + $0x840] sm:$0xff]
    %v394 = vld [vmem:[#allocation2 + $0x848] sm:$0xff]
    %v395 = vld [vmem:[#allocation2 + $0x850] sm:$0xff]
    %v396 = vld [vmem:[#allocation2 + $0x858] sm:$0xff]
    %v397 = vld [vmem:[#allocation2 + $0x860] sm:$0xff]
    %v398 = vld [vmem:[#allocation2 + $0x868] sm:$0xff]
    %v399 = vld [vmem:[#allocation2 + $0x870] sm:$0xff]
    %v400 = vld [vmem:[#allocation2 + $0x878] sm:$0xff]
    %v401 = vld [vmem:[#allocation2 + $0x880] sm:$0xff]
    %v402 = vld [vmem:[#allocation2 + $0x888] sm:$0xff]
    %v403 = vld [vmem:[#allocation2 + $0x890] sm:$0xff]
    %v404 = vld [vmem:[#allocation2 + $0x898] sm:$0xff]
    %v405 = vld [vmem:[#allocation2 + $0x8a0] sm:$0xff]
    %v406 = vld [vmem:[#allocation2 + $0x8a8] sm:$0xff]
    %v407 = vld [vmem:[#allocation2 + $0x8b0] sm:$0xff]
    %v408 = vld [vmem:[#allocation2 + $0x8b8] sm:$0xff]
    %v409 = vld [vmem:[#allocation2 + $0x8c0] sm:$0xff]
    %v410 = vld [vmem:[#allocation2 + $0x8c8] sm:$0xff]
    %v411 = vld [vmem:[#allocation2 + $0x8d0] sm:$0xff]
    %v412 = vld [vmem:[#allocation2 + $0x8d8] sm:$0xff]
    %v413 = vld [vmem:[#allocation2 + $0x8e0] sm:$0xff]
    %v414 = vld [vmem:[#allocation2 + $0x8e8] sm:$0xff]
    %v415 = vld [vmem:[#allocation2 + $0x8f0] sm:$0xff]
    %v416 = vld [vmem:[#allocation2 + $0x8f8] sm:$0xff]
    %v417 = vld [vmem:[#allocation2 + $0x900] sm:$0xff]
    %v418 = vld [vmem:[#allocation2 + $0x908] sm:$0xff]
    %v419 = vld [vmem:[#allocation2 + $0x910] sm:$0xff]
    %v420 = vld [vmem:[#allocation2 + $0x918] sm:$0xff]
    %v421 = vld [vmem:[#allocation2 + $0x920] sm:$0xff]
    %v422 = vld [vmem:[#allocation2 + $0x928] sm:$0xff]
    %v423 = vld [vmem:[#allocation2 + $0x930] sm:$0xff]
    %v424 = vld [vmem:[#allocation2 + $0x938] sm:$0xff]
    %v425 = vld [vmem:[#allocation2 + $0x940] sm:$0xff]
    %v426 = vld [vmem:[#allocation2 + $0x948] sm:$0xff]
    %v427 = vld [vmem:[#allocation2 + $0x950] sm:$0xff]
    %v428 = vld [vmem:[#allocation2 + $0x958] sm:$0xff]
    %v429 = vld [vmem:[#allocation2 + $0x960] sm:$0xff]
    %v430 = vld [vmem:[#allocation2 + $0x968] sm:$0xff]
    %v431 = vld [vmem:[#allocation2 + $0x970] sm:$0xff]
    %v432 = vld [vmem:[#allocation2 + $0x978] sm:$0xff]
    %v433 = vld [vmem:[#allocation2 + $0x980] sm:$0xff]
    %v434 = vld [vmem:[#allocation2 + $0x988] sm:$0xff]
    %v435 = vld [vmem:[#allocation2 + $0x990] sm:$0xff]
    %v436 = vld [vmem:[#allocation2 + $0x998] sm:$0xff]
    %v437 = vld [vmem:[#allocation2 + $0x9a0] sm:$0xff]
    %v438 = vld [vmem:[#allocation2 + $0x9a8] sm:$0xff]
    %v439 = vld [vmem:[#allocation2 + $0x9b0] sm:$0xff]
    %v440 = vld [vmem:[#allocation2 + $0x9b8] sm:$0xff]
    %v441 = vld [vmem:[#allocation2 + $0x9c0] sm:$0xff]
    %v442 = vld [vmem:[#allocation2 + $0x9c8] sm:$0xff]
    %v443 = vld [vmem:[#allocation2 + $0x9d0] sm:$0xff]
    %v444 = vld [vmem:[#allocation2 + $0x9d8] sm:$0xff]
    %v445 = vld [vmem:[#allocation2 + $0x9e0] sm:$0xff]
    %v446 = vld [vmem:[#allocation2 + $0x9e8] sm:$0xff]
    %v447 = vld [vmem:[#allocation2 + $0x9f0] sm:$0xff]
    %v448 = vld [vmem:[#allocation2 + $0x9f8] sm:$0xff]
    %v449 = vld [vmem:[#allocation2 + $0xa00] sm:$0xff]
    %v450 = vld [vmem:[#allocation2 + $0xa08] sm:$0xff]
    %v451 = vld [vmem:[#allocation2 + $0xa10] sm:$0xff]
    %v452 = vld [vmem:[#allocation2 + $0xa18] sm:$0xff]
    %v453 = vld [vmem:[#allocation2 + $0xa20] sm:$0xff]
    %v454 = vld [vmem:[#allocation2 + $0xa28] sm:$0xff]
    %v455 = vld [vmem:[#allocation2 + $0xa30] sm:$0xff]
    %v456 = vld [vmem:[#allocation2 + $0xa38] sm:$0xff]
    %v457 = vld [vmem:[#allocation2 + $0xa40] sm:$0xff]
    %v458 = vld [vmem:[#allocation2 + $0xa48] sm:$0xff]
    %v459 = vld [vmem:[#allocation2 + $0xa50] sm:$0xff]
    %v460 = vld [vmem:[#allocation2 + $0xa58] sm:$0xff]
    %v461 = vld [vmem:[#allocation2 + $0xa60] sm:$0xff]
    %v462 = vld [vmem:[#allocation2 + $0xa68] sm:$0xff]
    %v463 = vld [vmem:[#allocation2 + $0xa70] sm:$0xff]
    %v464 = vld [vmem:[#allocation2 + $0xa78] sm:$0xff]
    %v465 = vld [vmem:[#allocation2 + $0xa80] sm:$0xff]
    %v466 = vld [vmem:[#allocation2 + $0xa88] sm:$0xff]
    %v467 = vld [vmem:[#allocation2 + $0xa90] sm:$0xff]
    %v468 = vld [vmem:[#allocation2 + $0xa98] sm:$0xff]
    %v469 = vld [vmem:[#allocation2 + $0xaa0] sm:$0xff]
    %v470 = vld [vmem:[#allocation2 + $0xaa8] sm:$0xff]
    %v471 = vld [vmem:[#allocation2 + $0xab0] sm:$0xff]
    %v472 = vld [vmem:[#allocation2 + $0xab8] sm:$0xff]
    %v473 = vld [vmem:[#allocation2 + $0xac0] sm:$0xff]
    %v474 = vld [vmem:[#allocation2 + $0xac8] sm:$0xff]
    %v475 = vld [vmem:[#allocation2 + $0xad0] sm:$0xff]
    %v476 = vld [vmem:[#allocation2 + $0xad8] sm:$0xff]
    %v477 = vld [vmem:[#allocation2 + $0xae0] sm:$0xff]
    %v478 = vld [vmem:[#allocation2 + $0xae8] sm:$0xff]
    %v479 = vld [vmem:[#allocation2 + $0xaf0] sm:$0xff]
    %v480 = vld [vmem:[#allocation2 + $0xaf8] sm:$0xff]
    %v481 = vld [vmem:[#allocation2 + $0xb00] sm:$0xff]
    %v482 = vld [vmem:[#allocation2 + $0xb08] sm:$0xff]
    %v483 = vld [vmem:[#allocation2 + $0xb10] sm:$0xff]
    %v484 = vld [vmem:[#allocation2 + $0xb18] sm:$0xff]
    %v485 = vld [vmem:[#allocation2 + $0xb20] sm:$0xff]
    %v486 = vld [vmem:[#allocation2 + $0xb28] sm:$0xff]
    %v487 = vld [vmem:[#allocation2 + $0xb30] sm:$0xff]
    %v488 = vld [vmem:[#allocation2 + $0xb38] sm:$0xff]
    %v489 = vld [vmem:[#allocation2 + $0xb40] sm:$0xff]
    %v490 = vld [vmem:[#allocation2 + $0xb48] sm:$0xff]
    %v491 = vld [vmem:[#allocation2 + $0xb50] sm:$0xff]
    %v492 = vld [vmem:[#allocation2 + $0xb58] sm:$0xff]
    %v493 = vld [vmem:[#allocation2 + $0xb60] sm:$0xff]
    %v494 = vld [vmem:[#allocation2 + $0xb68] sm:$0xff]
    %v495 = vld [vmem:[#allocation2 + $0xb70] sm:$0xff]
    %v496 = vld [vmem:[#allocation2 + $0xb78] sm:$0xff]
    %v497 = vld [vmem:[#allocation2 + $0xb80] sm:$0xff]
    %v498 = vld [vmem:[#allocation2 + $0xb88] sm:$0xff]
    %v499 = vld [vmem:[#allocation2 + $0xb90] sm:$0xff]
    %v500 = vld [vmem:[#allocation2 + $0xb98] sm:$0xff]
    %v501 = vld [vmem:[#allocation2 + $0xba0] sm:$0xff]
    %v502 = vld [vmem:[#allocation2 + $0xba8] sm:$0xff]
    %v503 = vld [vmem:[#allocation2 + $0xbb0] sm:$0xff]
    %v504 = vld [vmem:[#allocation2 + $0xbb8] sm:$0xff]
    %v505 = vld [vmem:[#allocation2 + $0xbc0] sm:$0xff]
    %v506 = vld [vmem:[#allocation2 + $0xbc8] sm:$0xff]
    %v507 = vld [vmem:[#allocation2 + $0xbd0] sm:$0xff]
    %v508 = vld [vmem:[#allocation2 + $0xbd8] sm:$0xff]
    %v509 = vld [vmem:[#allocation2 + $0xbe0] sm:$0xff]
    %v510 = vld [vmem:[#allocation2 + $0xbe8] sm:$0xff]
    %v511 = vld [vmem:[#allocation2 + $0xbf0] sm:$0xff]
    %v512 = vld [vmem:[#allocation2 + $0xbf8] sm:$0xff]
    %v897 = vunpack.c.l.b16 %v129
    %v898 = vunpack.c.h.b16 %v129
    %v899 = vunpack.c.l.b16 %v130
    %v900 = vunpack.c.h.b16 %v130
    %v901 = vunpack.c.l.b16 %v131
    %v902 = vunpack.c.h.b16 %v131
    %v903 = vunpack.c.l.b16 %v132
    %v904 = vunpack.c.h.b16 %v132
    %v905 = vunpack.c.l.b16 %v133
    %v906 = vunpack.c.h.b16 %v133
    %v907 = vunpack.c.l.b16 %v134
    %v908 = vunpack.c.h.b16 %v134
    %v909 = vunpack.c.l.b16 %v135
    %v910 = vunpack.c.h.b16 %v135
    %v911 = vunpack.c.l.b16 %v136
    %v912 = vunpack.c.h.b16 %v136
    %v913 = vunpack.c.l.b16 %v137
    %v914 = vunpack.c.h.b16 %v137
    %v915 = vunpack.c.l.b16 %v138
    %v916 = vunpack.c.h.b16 %v138
    %v917 = vunpack.c.l.b16 %v139
    %v918 = vunpack.c.h.b16 %v139
    %v919 = vunpack.c.l.b16 %v140
    %v920 = vunpack.c.h.b16 %v140
    %v921 = vunpack.c.l.b16 %v141
    %v922 = vunpack.c.h.b16 %v141
    %v923 = vunpack.c.l.b16 %v142
    %v924 = vunpack.c.h.b16 %v142
    %v925 = vunpack.c.l.b16 %v143
    %v926 = vunpack.c.h.b16 %v143
    %v927 = vunpack.c.l.b16 %v144
    %v928 = vunpack.c.h.b16 %v144
    %v929 = vunpack.c.l.b16 %v145
    %v930 = vunpack.c.h.b16 %v145
    %v931 = vunpack.c.l.b16 %v146
    %v932 = vunpack.c.h.b16 %v146
    %v933 = vunpack.c.l.b16 %v147
    %v934 = vunpack.c.h.b16 %v147
    %v935 = vunpack.c.l.b16 %v148
    %v936 = vunpack.c.h.b16 %v148
    %v937 = vunpack.c.l.b16 %v149
    %v938 = vunpack.c.h.b16 %v149
    %v939 = vunpack.c.l.b16 %v150
    %v940 = vunpack.c.h.b16 %v150
    %v941 = vunpack.c.l.b16 %v151
    %v942 = vunpack.c.h.b16 %v151
    %v943 = vunpack.c.l.b16 %v152
    %v944 = vunpack.c.h.b16 %v152
    %v945 = vunpack.c.l.b16 %v153
    %v946 = vunpack.c.h.b16 %v153
    %v947 = vunpack.c.l.b16 %v154
    %v948 = vunpack.c.h.b16 %v154
    %v949 = vunpack.c.l.b16 %v155
    %v950 = vunpack.c.h.b16 %v155
    %v951 = vunpack.c.l.b16 %v156
    %v952 = vunpack.c.h.b16 %v156
    %v953 = vunpack.c.l.b16 %v157
    %v954 = vunpack.c.h.b16 %v157
    %v955 = vunpack.c.l.b16 %v158
    %v956 = vunpack.c.h.b16 %v158
    %v957 = vunpack.c.l.b16 %v159
    %v958 = vunpack.c.h.b16 %v159
    %v959 = vunpack.c.l.b16 %v160
    %v960 = vunpack.c.h.b16 %v160
    %v961 = vunpack.c.l.b16 %v161
    %v962 = vunpack.c.h.b16 %v161
    %v963 = vunpack.c.l.b16 %v162
    %v964 = vunpack.c.h.b16 %v162
    %v965 = vunpack.c.l.b16 %v163
    %v966 = vunpack.c.h.b16 %v163
    %v967 = vunpack.c.l.b16 %v164
    %v968 = vunpack.c.h.b16 %v164
    %v969 = vunpack.c.l.b16 %v165
    %v970 = vunpack.c.h.b16 %v165
    %v971 = vunpack.c.l.b16 %v166
    %v972 = vunpack.c.h.b16 %v166
    %v973 = vunpack.c.l.b16 %v167
    %v974 = vunpack.c.h.b16 %v167
    %v975 = vunpack.c.l.b16 %v168
    %v976 = vunpack.c.h.b16 %v168
    %v977 = vunpack.c.l.b16 %v169
    %v978 = vunpack.c.h.b16 %v169
    %v979 = vunpack.c.l.b16 %v170
    %v980 = vunpack.c.h.b16 %v170
    %v981 = vunpack.c.l.b16 %v171
    %v982 = vunpack.c.h.b16 %v171
    %v983 = vunpack.c.l.b16 %v172
    %v984 = vunpack.c.h.b16 %v172
    %v985 = vunpack.c.l.b16 %v173
    %v986 = vunpack.c.h.b16 %v173
    %v987 = vunpack.c.l.b16 %v174
    %v988 = vunpack.c.h.b16 %v174
    %v989 = vunpack.c.l.b16 %v175
    %v990 = vunpack.c.h.b16 %v175
    %v991 = vunpack.c.l.b16 %v176
    %v992 = vunpack.c.h.b16 %v176
    %v993 = vunpack.c.l.b16 %v177
    %v994 = vunpack.c.h.b16 %v177
    %v995 = vunpack.c.l.b16 %v178
    %v996 = vunpack.c.h.b16 %v178
    %v997 = vunpack.c.l.b16 %v179
    %v998 = vunpack.c.h.b16 %v179
    %v999 = vunpack.c.l.b16 %v180
    %v1000 = vunpack.c.h.b16 %v180
    %v1001 = vunpack.c.l.b16 %v181
    %v1002 = vunpack.c.h.b16 %v181
    %v1003 = vunpack.c.l.b16 %v182
    %v1004 = vunpack.c.h.b16 %v182
    %v1005 = vunpack.c.l.b16 %v183
    %v1006 = vunpack.c.h.b16 %v183
    %v1007 = vunpack.c.l.b16 %v184
    %v1008 = vunpack.c.h.b16 %v184
    %v1009 = vunpack.c.l.b16 %v185
    %v1010 = vunpack.c.h.b16 %v185
    %v1011 = vunpack.c.l.b16 %v186
    %v1012 = vunpack.c.h.b16 %v186
    %v1013 = vunpack.c.l.b16 %v187
    %v1014 = vunpack.c.h.b16 %v187
    %v1015 = vunpack.c.l.b16 %v188
    %v1016 = vunpack.c.h.b16 %v188
    %v1017 = vunpack.c.l.b16 %v189
    %v1018 = vunpack.c.h.b16 %v189
    %v1019 = vunpack.c.l.b16 %v190
    %v1020 = vunpack.c.h.b16 %v190
    %v1021 = vunpack.c.l.b16 %v191
    %v1022 = vunpack.c.h.b16 %v191
    %v1023 = vunpack.c.l.b16 %v192
    %v1024 = vunpack.c.h.b16 %v192
    %v1025 = vunpack.c.l.b16 %v193
    %v1026 = vunpack.c.h.b16 %v193
    %v1027 = vunpack.c.l.b16 %v194
    %v1028 = vunpack.c.h.b16 %v194
    %v1029 = vunpack.c.l.b16 %v195
    %v1030 = vunpack.c.h.b16 %v195
    %v1031 = vunpack.c.l.b16 %v196
    %v1032 = vunpack.c.h.b16 %v196
    %v1033 = vunpack.c.l.b16 %v197
    %v1034 = vunpack.c.h.b16 %v197
    %v1035 = vunpack.c.l.b16 %v198
    %v1036 = vunpack.c.h.b16 %v198
    %v1037 = vunpack.c.l.b16 %v199
    %v1038 = vunpack.c.h.b16 %v199
    %v1039 = vunpack.c.l.b16 %v200
    %v1040 = vunpack.c.h.b16 %v200
    %v1041 = vunpack.c.l.b16 %v201
    %v1042 = vunpack.c.h.b16 %v201
    %v1043 = vunpack.c.l.b16 %v202
    %v1044 = vunpack.c.h.b16 %v202
    %v1045 = vunpack.c.l.b16 %v203
    %v1046 = vunpack.c.h.b16 %v203
    %v1047 = vunpack.c.l.b16 %v204
    %v1048 = vunpack.c.h.b16 %v204
    %v1049 = vunpack.c.l.b16 %v205
    %v1050 = vunpack.c.h.b16 %v205
    %v1051 = vunpack.c.l.b16 %v206
    %v1052 = vunpack.c.h.b16 %v206
    %v1053 = vunpack.c.l.b16 %v207
    %v1054 = vunpack.c.h.b16 %v207
    %v1055 = vunpack.c.l.b16 %v208
    %v1056 = vunpack.c.h.b16 %v208
    %v1057 = vunpack.c.l.b16 %v209
    %v1058 = vunpack.c.h.b16 %v209
    %v1059 = vunpack.c.l.b16 %v210
    %v1060 = vunpack.c.h.b16 %v210
    %v1061 = vunpack.c.l.b16 %v211
    %v1062 = vunpack.c.h.b16 %v211
    %v1063 = vunpack.c.l.b16 %v212
    %v1064 = vunpack.c.h.b16 %v212
    %v1065 = vunpack.c.l.b16 %v213
    %v1066 = vunpack.c.h.b16 %v213
    %v1067 = vunpack.c.l.b16 %v214
    %v1068 = vunpack.c.h.b16 %v214
    %v1069 = vunpack.c.l.b16 %v215
    %v1070 = vunpack.c.h.b16 %v215
    %v1071 = vunpack.c.l.b16 %v216
    %v1072 = vunpack.c.h.b16 %v216
    %v1073 = vunpack.c.l.b16 %v217
    %v1074 = vunpack.c.h.b16 %v217
    %v1075 = vunpack.c.l.b16 %v218
    %v1076 = vunpack.c.h.b16 %v218
    %v1077 = vunpack.c.l.b16 %v219
    %v1078 = vunpack.c.h.b16 %v219
    %v1079 = vunpack.c.l.b16 %v220
    %v1080 = vunpack.c.h.b16 %v220
    %v1081 = vunpack.c.l.b16 %v221
    %v1082 = vunpack.c.h.b16 %v221
    %v1083 = vunpack.c.l.b16 %v222
    %v1084 = vunpack.c.h.b16 %v222
    %v1085 = vunpack.c.l.b16 %v223
    %v1086 = vunpack.c.h.b16 %v223
    %v1087 = vunpack.c.l.b16 %v224
    %v1088 = vunpack.c.h.b16 %v224
    %v1089 = vunpack.c.l.b16 %v225
    %v1090 = vunpack.c.h.b16 %v225
    %v1091 = vunpack.c.l.b16 %v226
    %v1092 = vunpack.c.h.b16 %v226
    %v1093 = vunpack.c.l.b16 %v227
    %v1094 = vunpack.c.h.b16 %v227
    %v1095 = vunpack.c.l.b16 %v228
    %v1096 = vunpack.c.h.b16 %v228
    %v1097 = vunpack.c.l.b16 %v229
    %v1098 = vunpack.c.h.b16 %v229
    %v1099 = vunpack.c.l.b16 %v230
    %v1100 = vunpack.c.h.b16 %v230
    %v1101 = vunpack.c.l.b16 %v231
    %v1102 = vunpack.c.h.b16 %v231
    %v1103 = vunpack.c.l.b16 %v232
    %v1104 = vunpack.c.h.b16 %v232
    %v1105 = vunpack.c.l.b16 %v233
    %v1106 = vunpack.c.h.b16 %v233
    %v1107 = vunpack.c.l.b16 %v234
    %v1108 = vunpack.c.h.b16 %v234
    %v1109 = vunpack.c.l.b16 %v235
    %v1110 = vunpack.c.h.b16 %v235
    %v1111 = vunpack.c.l.b16 %v236
    %v1112 = vunpack.c.h.b16 %v236
    %v1113 = vunpack.c.l.b16 %v237
    %v1114 = vunpack.c.h.b16 %v237
    %v1115 = vunpack.c.l.b16 %v238
    %v1116 = vunpack.c.h.b16 %v238
    %v1117 = vunpack.c.l.b16 %v239
    %v1118 = vunpack.c.h.b16 %v239
    %v1119 = vunpack.c.l.b16 %v240
    %v1120 = vunpack.c.h.b16 %v240
    %v1121 = vunpack.c.l.b16 %v241
    %v1122 = vunpack.c.h.b16 %v241
    %v1123 = vunpack.c.l.b16 %v242
    %v1124 = vunpack.c.h.b16 %v242
    %v1125 = vunpack.c.l.b16 %v243
    %v1126 = vunpack.c.h.b16 %v243
    %v1127 = vunpack.c.l.b16 %v244
    %v1128 = vunpack.c.h.b16 %v244
    %v1129 = vunpack.c.l.b16 %v245
    %v1130 = vunpack.c.h.b16 %v245
    %v1131 = vunpack.c.l.b16 %v246
    %v1132 = vunpack.c.h.b16 %v246
    %v1133 = vunpack.c.l.b16 %v247
    %v1134 = vunpack.c.h.b16 %v247
    %v1135 = vunpack.c.l.b16 %v248
    %v1136 = vunpack.c.h.b16 %v248
    %v1137 = vunpack.c.l.b16 %v249
    %v1138 = vunpack.c.h.b16 %v249
    %v1139 = vunpack.c.l.b16 %v250
    %v1140 = vunpack.c.h.b16 %v250
    %v1141 = vunpack.c.l.b16 %v251
    %v1142 = vunpack.c.h.b16 %v251
    %v1143 = vunpack.c.l.b16 %v252
    %v1144 = vunpack.c.h.b16 %v252
    %v1145 = vunpack.c.l.b16 %v253
    %v1146 = vunpack.c.h.b16 %v253
    %v1147 = vunpack.c.l.b16 %v254
    %v1148 = vunpack.c.h.b16 %v254
    %v1149 = vunpack.c.l.b16 %v255
    %v1150 = vunpack.c.h.b16 %v255
    %v1151 = vunpack.c.l.b16 %v256
    %v1152 = vunpack.c.h.b16 %v256
    %v1153 = vunpack.c.l.b16 %v257
    %v1154 = vunpack.c.h.b16 %v257
    %v1155 = vunpack.c.l.b16 %v258
    %v1156 = vunpack.c.h.b16 %v258
    %v1157 = vunpack.c.l.b16 %v259
    %v1158 = vunpack.c.h.b16 %v259
    %v1159 = vunpack.c.l.b16 %v260
    %v1160 = vunpack.c.h.b16 %v260
    %v1161 = vunpack.c.l.b16 %v261
    %v1162 = vunpack.c.h.b16 %v261
    %v1163 = vunpack.c.l.b16 %v262
    %v1164 = vunpack.c.h.b16 %v262
    %v1165 = vunpack.c.l.b16 %v263
    %v1166 = vunpack.c.h.b16 %v263
    %v1167 = vunpack.c.l.b16 %v264
    %v1168 = vunpack.c.h.b16 %v264
    %v1169 = vunpack.c.l.b16 %v265
    %v1170 = vunpack.c.h.b16 %v265
    %v1171 = vunpack.c.l.b16 %v266
    %v1172 = vunpack.c.h.b16 %v266
    %v1173 = vunpack.c.l.b16 %v267
    %v1174 = vunpack.c.h.b16 %v267
    %v1175 = vunpack.c.l.b16 %v268
    %v1176 = vunpack.c.h.b16 %v268
    %v1177 = vunpack.c.l.b16 %v269
    %v1178 = vunpack.c.h.b16 %v269
    %v1179 = vunpack.c.l.b16 %v270
    %v1180 = vunpack.c.h.b16 %v270
    %v1181 = vunpack.c.l.b16 %v271
    %v1182 = vunpack.c.h.b16 %v271
    %v1183 = vunpack.c.l.b16 %v272
    %v1184 = vunpack.c.h.b16 %v272
    %v1185 = vunpack.c.l.b16 %v273
    %v1186 = vunpack.c.h.b16 %v273
    %v1187 = vunpack.c.l.b16 %v274
    %v1188 = vunpack.c.h.b16 %v274
    %v1189 = vunpack.c.l.b16 %v275
    %v1190 = vunpack.c.h.b16 %v275
    %v1191 = vunpack.c.l.b16 %v276
    %v1192 = vunpack.c.h.b16 %v276
    %v1193 = vunpack.c.l.b16 %v277
    %v1194 = vunpack.c.h.b16 %v277
    %v1195 = vunpack.c.l.b16 %v278
    %v1196 = vunpack.c.h.b16 %v278
    %v1197 = vunpack.c.l.b16 %v279
    %v1198 = vunpack.c.h.b16 %v279
    %v1199 = vunpack.c.l.b16 %v280
    %v1200 = vunpack.c.h.b16 %v280
    %v1201 = vunpack.c.l.b16 %v281
    %v1202 = vunpack.c.h.b16 %v281
    %v1203 = vunpack.c.l.b16 %v282
    %v1204 = vunpack.c.h.b16 %v282
    %v1205 = vunpack.c.l.b16 %v283
    %v1206 = vunpack.c.h.b16 %v283
    %v1207 = vunpack.c.l.b16 %v284
    %v1208 = vunpack.c.h.b16 %v284
    %v1209 = vunpack.c.l.b16 %v285
    %v1210 = vunpack.c.h.b16 %v285
    %v1211 = vunpack.c.l.b16 %v286
    %v1212 = vunpack.c.h.b16 %v286
    %v1213 = vunpack.c.l.b16 %v287
    %v1214 = vunpack.c.h.b16 %v287
    %v1215 = vunpack.c.l.b16 %v288
    %v1216 = vunpack.c.h.b16 %v288
    %v1217 = vunpack.c.l.b16 %v289
    %v1218 = vunpack.c.h.b16 %v289
    %v1219 = vunpack.c.l.b16 %v290
    %v1220 = vunpack.c.h.b16 %v290
    %v1221 = vunpack.c.l.b16 %v291
    %v1222 = vunpack.c.h.b16 %v291
    %v1223 = vunpack.c.l.b16 %v292
    %v1224 = vunpack.c.h.b16 %v292
    %v1225 = vunpack.c.l.b16 %v293
    %v1226 = vunpack.c.h.b16 %v293
    %v1227 = vunpack.c.l.b16 %v294
    %v1228 = vunpack.c.h.b16 %v294
    %v1229 = vunpack.c.l.b16 %v295
    %v1230 = vunpack.c.h.b16 %v295
    %v1231 = vunpack.c.l.b16 %v296
    %v1232 = vunpack.c.h.b16 %v296
    %v1233 = vunpack.c.l.b16 %v297
    %v1234 = vunpack.c.h.b16 %v297
    %v1235 = vunpack.c.l.b16 %v298
    %v1236 = vunpack.c.h.b16 %v298
    %v1237 = vunpack.c.l.b16 %v299
    %v1238 = vunpack.c.h.b16 %v299
    %v1239 = vunpack.c.l.b16 %v300
    %v1240 = vunpack.c.h.b16 %v300
    %v1241 = vunpack.c.l.b16 %v301
    %v1242 = vunpack.c.h.b16 %v301
    %v1243 = vunpack.c.l.b16 %v302
    %v1244 = vunpack.c.h.b16 %v302
    %v1245 = vunpack.c.l.b16 %v303
    %v1246 = vunpack.c.h.b16 %v303
    %v1247 = vunpack.c.l.b16 %v304
    %v1248 = vunpack.c.h.b16 %v304
    %v1249 = vunpack.c.l.b16 %v305
    %v1250 = vunpack.c.h.b16 %v305
    %v1251 = vunpack.c.l.b16 %v306
    %v1252 = vunpack.c.h.b16 %v306
    %v1253 = vunpack.c.l.b16 %v307
    %v1254 = vunpack.c.h.b16 %v307
    %v1255 = vunpack.c.l.b16 %v308
    %v1256 = vunpack.c.h.b16 %v308
    %v1257 = vunpack.c.l.b16 %v309
    %v1258 = vunpack.c.h.b16 %v309
    %v1259 = vunpack.c.l.b16 %v310
    %v1260 = vunpack.c.h.b16 %v310
    %v1261 = vunpack.c.l.b16 %v311
    %v1262 = vunpack.c.h.b16 %v311
    %v1263 = vunpack.c.l.b16 %v312
    %v1264 = vunpack.c.h.b16 %v312
    %v1265 = vunpack.c.l.b16 %v313
    %v1266 = vunpack.c.h.b16 %v313
    %v1267 = vunpack.c.l.b16 %v314
    %v1268 = vunpack.c.h.b16 %v314
    %v1269 = vunpack.c.l.b16 %v315
    %v1270 = vunpack.c.h.b16 %v315
    %v1271 = vunpack.c.l.b16 %v316
    %v1272 = vunpack.c.h.b16 %v316
    %v1273 = vunpack.c.l.b16 %v317
    %v1274 = vunpack.c.h.b16 %v317
    %v1275 = vunpack.c.l.b16 %v318
    %v1276 = vunpack.c.h.b16 %v318
    %v1277 = vunpack.c.l.b16 %v319
    %v1278 = vunpack.c.h.b16 %v319
    %v1279 = vunpack.c.l.b16 %v320
    %v1280 = vunpack.c.h.b16 %v320
    %v1281 = vunpack.c.l.b16 %v321
    %v1282 = vunpack.c.h.b16 %v321
    %v1283 = vunpack.c.l.b16 %v322
    %v1284 = vunpack.c.h.b16 %v322
    %v1285 = vunpack.c.l.b16 %v323
    %v1286 = vunpack.c.h.b16 %v323
    %v1287 = vunpack.c.l.b16 %v324
    %v1288 = vunpack.c.h.b16 %v324
    %v1289 = vunpack.c.l.b16 %v325
    %v1290 = vunpack.c.h.b16 %v325
    %v1291 = vunpack.c.l.b16 %v326
    %v1292 = vunpack.c.h.b16 %v326
    %v1293 = vunpack.c.l.b16 %v327
    %v1294 = vunpack.c.h.b16 %v327
    %v1295 = vunpack.c.l.b16 %v328
    %v1296 = vunpack.c.h.b16 %v328
    %v1297 = vunpack.c.l.b16 %v329
    %v1298 = vunpack.c.h.b16 %v329
    %v1299 = vunpack.c.l.b16 %v330
    %v1300 = vunpack.c.h.b16 %v330
    %v1301 = vunpack.c.l.b16 %v331
    %v1302 = vunpack.c.h.b16 %v331
    %v1303 = vunpack.c.l.b16 %v332
    %v1304 = vunpack.c.h.b16 %v332
    %v1305 = vunpack.c.l.b16 %v333
    %v1306 = vunpack.c.h.b16 %v333
    %v1307 = vunpack.c.l.b16 %v334
    %v1308 = vunpack.c.h.b16 %v334
    %v1309 = vunpack.c.l.b16 %v335
    %v1310 = vunpack.c.h.b16 %v335
    %v1311 = vunpack.c.l.b16 %v336
    %v1312 = vunpack.c.h.b16 %v336
    %v1313 = vunpack.c.l.b16 %v337
    %v1314 = vunpack.c.h.b16 %v337
    %v1315 = vunpack.c.l.b16 %v338
    %v1316 = vunpack.c.h.b16 %v338
    %v1317 = vunpack.c.l.b16 %v339
    %v1318 = vunpack.c.h.b16 %v339
    %v1319 = vunpack.c.l.b16 %v340
    %v1320 = vunpack.c.h.b16 %v340
    %v1321 = vunpack.c.l.b16 %v341
    %v1322 = vunpack.c.h.b16 %v341
    %v1323 = vunpack.c.l.b16 %v342
    %v1324 = vunpack.c.h.b16 %v342
    %v1325 = vunpack.c.l.b16 %v343
    %v1326 = vunpack.c.h.b16 %v343
    %v1327 = vunpack.c.l.b16 %v344
    %v1328 = vunpack.c.h.b16 %v344
    %v1329 = vunpack.c.l.b16 %v345
    %v1330 = vunpack.c.h.b16 %v345
    %v1331 = vunpack.c.l.b16 %v346
    %v1332 = vunpack.c.h.b16 %v346
    %v1333 = vunpack.c.l.b16 %v347
    %v1334 = vunpack.c.h.b16 %v347
    %v1335 = vunpack.c.l.b16 %v348
    %v1336 = vunpack.c.h.b16 %v348
    %v1337 = vunpack.c.l.b16 %v349
    %v1338 = vunpack.c.h.b16 %v349
    %v1339 = vunpack.c.l.b16 %v350
    %v1340 = vunpack.c.h.b16 %v350
    %v1341 = vunpack.c.l.b16 %v351
    %v1342 = vunpack.c.h.b16 %v351
    %v1343 = vunpack.c.l.b16 %v352
    %v1344 = vunpack.c.h.b16 %v352
    %v1345 = vunpack.c.l.b16 %v353
    %v1346 = vunpack.c.h.b16 %v353
    %v1347 = vunpack.c.l.b16 %v354
    %v1348 = vunpack.c.h.b16 %v354
    %v1349 = vunpack.c.l.b16 %v355
    %v1350 = vunpack.c.h.b16 %v355
    %v1351 = vunpack.c.l.b16 %v356
    %v1352 = vunpack.c.h.b16 %v356
    %v1353 = vunpack.c.l.b16 %v357
    %v1354 = vunpack.c.h.b16 %v357
    %v1355 = vunpack.c.l.b16 %v358
    %v1356 = vunpack.c.h.b16 %v358
    %v1357 = vunpack.c.l.b16 %v359
    %v1358 = vunpack.c.h.b16 %v359
    %v1359 = vunpack.c.l.b16 %v360
    %v1360 = vunpack.c.h.b16 %v360
    %v1361 = vunpack.c.l.b16 %v361
    %v1362 = vunpack.c.h.b16 %v361
    %v1363 = vunpack.c.l.b16 %v362
    %v1364 = vunpack.c.h.b16 %v362
    %v1365 = vunpack.c.l.b16 %v363
    %v1366 = vunpack.c.h.b16 %v363
    %v1367 = vunpack.c.l.b16 %v364
    %v1368 = vunpack.c.h.b16 %v364
    %v1369 = vunpack.c.l.b16 %v365
    %v1370 = vunpack.c.h.b16 %v365
    %v1371 = vunpack.c.l.b16 %v366
    %v1372 = vunpack.c.h.b16 %v366
    %v1373 = vunpack.c.l.b16 %v367
    %v1374 = vunpack.c.h.b16 %v367
    %v1375 = vunpack.c.l.b16 %v368
    %v1376 = vunpack.c.h.b16 %v368
    %v1377 = vunpack.c.l.b16 %v369
    %v1378 = vunpack.c.h.b16 %v369
    %v1379 = vunpack.c.l.b16 %v370
    %v1380 = vunpack.c.h.b16 %v370
    %v1381 = vunpack.c.l.b16 %v371
    %v1382 = vunpack.c.h.b16 %v371
    %v1383 = vunpack.c.l.b16 %v372
    %v1384 = vunpack.c.h.b16 %v372
    %v1385 = vunpack.c.l.b16 %v373
    %v1386 = vunpack.c.h.b16 %v373
    %v1387 = vunpack.c.l.b16 %v374
    %v1388 = vunpack.c.h.b16 %v374
    %v1389 = vunpack.c.l.b16 %v375
    %v1390 = vunpack.c.h.b16 %v375
    %v1391 = vunpack.c.l.b16 %v376
    %v1392 = vunpack.c.h.b16 %v376
    %v1393 = vunpack.c.l.b16 %v377
    %v1394 = vunpack.c.h.b16 %v377
    %v1395 = vunpack.c.l.b16 %v378
    %v1396 = vunpack.c.h.b16 %v378
    %v1397 = vunpack.c.l.b16 %v379
    %v1398 = vunpack.c.h.b16 %v379
    %v1399 = vunpack.c.l.b16 %v380
    %v1400 = vunpack.c.h.b16 %v380
    %v1401 = vunpack.c.l.b16 %v381
    %v1402 = vunpack.c.h.b16 %v381
    %v1403 = vunpack.c.l.b16 %v382
    %v1404 = vunpack.c.h.b16 %v382
    %v1405 = vunpack.c.l.b16 %v383
    %v1406 = vunpack.c.h.b16 %v383
    %v1407 = vunpack.c.l.b16 %v384
    %v1408 = vunpack.c.h.b16 %v384
    %v1409 = vunpack.c.l.b16 %v385
    %v1410 = vunpack.c.h.b16 %v385
    %v1411 = vunpack.c.l.b16 %v386
    %v1412 = vunpack.c.h.b16 %v386
    %v1413 = vunpack.c.l.b16 %v387
    %v1414 = vunpack.c.h.b16 %v387
    %v1415 = vunpack.c.l.b16 %v388
    %v1416 = vunpack.c.h.b16 %v388
    %v1417 = vunpack.c.l.b16 %v389
    %v1418 = vunpack.c.h.b16 %v389
    %v1419 = vunpack.c.l.b16 %v390
    %v1420 = vunpack.c.h.b16 %v390
    %v1421 = vunpack.c.l.b16 %v391
    %v1422 = vunpack.c.h.b16 %v391
    %v1423 = vunpack.c.l.b16 %v392
    %v1424 = vunpack.c.h.b16 %v392
    %v1425 = vunpack.c.l.b16 %v393
    %v1426 = vunpack.c.h.b16 %v393
    %v1427 = vunpack.c.l.b16 %v394
    %v1428 = vunpack.c.h.b16 %v394
    %v1429 = vunpack.c.l.b16 %v395
    %v1430 = vunpack.c.h.b16 %v395
    %v1431 = vunpack.c.l.b16 %v396
    %v1432 = vunpack.c.h.b16 %v396
    %v1433 = vunpack.c.l.b16 %v397
    %v1434 = vunpack.c.h.b16 %v397
    %v1435 = vunpack.c.l.b16 %v398
    %v1436 = vunpack.c.h.b16 %v398
    %v1437 = vunpack.c.l.b16 %v399
    %v1438 = vunpack.c.h.b16 %v399
    %v1439 = vunpack.c.l.b16 %v400
    %v1440 = vunpack.c.h.b16 %v400
    %v1441 = vunpack.c.l.b16 %v401
    %v1442 = vunpack.c.h.b16 %v401
    %v1443 = vunpack.c.l.b16 %v402
    %v1444 = vunpack.c.h.b16 %v402
    %v1445 = vunpack.c.l.b16 %v403
    %v1446 = vunpack.c.h.b16 %v403
    %v1447 = vunpack.c.l.b16 %v404
    %v1448 = vunpack.c.h.b16 %v404
    %v1449 = vunpack.c.l.b16 %v405
    %v1450 = vunpack.c.h.b16 %v405
    %v1451 = vunpack.c.l.b16 %v406
    %v1452 = vunpack.c.h.b16 %v406
    %v1453 = vunpack.c.l.b16 %v407
    %v1454 = vunpack.c.h.b16 %v407
    %v1455 = vunpack.c.l.b16 %v408
    %v1456 = vunpack.c.h.b16 %v408
    %v1457 = vunpack.c.l.b16 %v409
    %v1458 = vunpack.c.h.b16 %v409
    %v1459 = vunpack.c.l.b16 %v410
    %v1460 = vunpack.c.h.b16 %v410
    %v1461 = vunpack.c.l.b16 %v411
    %v1462 = vunpack.c.h.b16 %v411
    %v1463 = vunpack.c.l.b16 %v412
    %v1464 = vunpack.c.h.b16 %v412
    %v1465 = vunpack.c.l.b16 %v413
    %v1466 = vunpack.c.h.b16 %v413
    %v1467 = vunpack.c.l.b16 %v414
    %v1468 = vunpack.c.h.b16 %v414
    %v1469 = vunpack.c.l.b16 %v415
    %v1470 = vunpack.c.h.b16 %v415
    %v1471 = vunpack.c.l.b16 %v416
    %v1472 = vunpack.c.h.b16 %v416
    %v1473 = vunpack.c.l.b16 %v417
    %v1474 = vunpack.c.h.b16 %v417
    %v1475 = vunpack.c.l.b16 %v418
    %v1476 = vunpack.c.h.b16 %v418
    %v1477 = vunpack.c.l.b16 %v419
    %v1478 = vunpack.c.h.b16 %v419
    %v1479 = vunpack.c.l.b16 %v420
    %v1480 = vunpack.c.h.b16 %v420
    %v1481 = vunpack.c.l.b16 %v421
    %v1482 = vunpack.c.h.b16 %v421
    %v1483 = vunpack.c.l.b16 %v422
    %v1484 = vunpack.c.h.b16 %v422
    %v1485 = vunpack.c.l.b16 %v423
    %v1486 = vunpack.c.h.b16 %v423
    %v1487 = vunpack.c.l.b16 %v424
    %v1488 = vunpack.c.h.b16 %v424
    %v1489 = vunpack.c.l.b16 %v425
    %v1490 = vunpack.c.h.b16 %v425
    %v1491 = vunpack.c.l.b16 %v426
    %v1492 = vunpack.c.h.b16 %v426
    %v1493 = vunpack.c.l.b16 %v427
    %v1494 = vunpack.c.h.b16 %v427
    %v1495 = vunpack.c.l.b16 %v428
    %v1496 = vunpack.c.h.b16 %v428
    %v1497 = vunpack.c.l.b16 %v429
    %v1498 = vunpack.c.h.b16 %v429
    %v1499 = vunpack.c.l.b16 %v430
    %v1500 = vunpack.c.h.b16 %v430
    %v1501 = vunpack.c.l.b16 %v431
    %v1502 = vunpack.c.h.b16 %v431
    %v1503 = vunpack.c.l.b16 %v432
    %v1504 = vunpack.c.h.b16 %v432
    %v1505 = vunpack.c.l.b16 %v433
    %v1506 = vunpack.c.h.b16 %v433
    %v1507 = vunpack.c.l.b16 %v434
    %v1508 = vunpack.c.h.b16 %v434
    %v1509 = vunpack.c.l.b16 %v435
    %v1510 = vunpack.c.h.b16 %v435
    %v1511 = vunpack.c.l.b16 %v436
    %v1512 = vunpack.c.h.b16 %v436
    %v1513 = vunpack.c.l.b16 %v437
    %v1514 = vunpack.c.h.b16 %v437
    %v1515 = vunpack.c.l.b16 %v438
    %v1516 = vunpack.c.h.b16 %v438
    %v1517 = vunpack.c.l.b16 %v439
    %v1518 = vunpack.c.h.b16 %v439
    %v1519 = vunpack.c.l.b16 %v440
    %v1520 = vunpack.c.h.b16 %v440
    %v1521 = vunpack.c.l.b16 %v441
    %v1522 = vunpack.c.h.b16 %v441
    %v1523 = vunpack.c.l.b16 %v442
    %v1524 = vunpack.c.h.b16 %v442
    %v1525 = vunpack.c.l.b16 %v443
    %v1526 = vunpack.c.h.b16 %v443
    %v1527 = vunpack.c.l.b16 %v444
    %v1528 = vunpack.c.h.b16 %v444
    %v1529 = vunpack.c.l.b16 %v445
    %v1530 = vunpack.c.h.b16 %v445
    %v1531 = vunpack.c.l.b16 %v446
    %v1532 = vunpack.c.h.b16 %v446
    %v1533 = vunpack.c.l.b16 %v447
    %v1534 = vunpack.c.h.b16 %v447
    %v1535 = vunpack.c.l.b16 %v448
    %v1536 = vunpack.c.h.b16 %v448
    %v1537 = vunpack.c.l.b16 %v449
    %v1538 = vunpack.c.h.b16 %v449
    %v1539 = vunpack.c.l.b16 %v450
    %v1540 = vunpack.c.h.b16 %v450
    %v1541 = vunpack.c.l.b16 %v451
    %v1542 = vunpack.c.h.b16 %v451
    %v1543 = vunpack.c.l.b16 %v452
    %v1544 = vunpack.c.h.b16 %v452
    %v1545 = vunpack.c.l.b16 %v453
    %v1546 = vunpack.c.h.b16 %v453
    %v1547 = vunpack.c.l.b16 %v454
    %v1548 = vunpack.c.h.b16 %v454
    %v1549 = vunpack.c.l.b16 %v455
    %v1550 = vunpack.c.h.b16 %v455
    %v1551 = vunpack.c.l.b16 %v456
    %v1552 = vunpack.c.h.b16 %v456
    %v1553 = vunpack.c.l.b16 %v457
    %v1554 = vunpack.c.h.b16 %v457
    %v1555 = vunpack.c.l.b16 %v458
    %v1556 = vunpack.c.h.b16 %v458
    %v1557 = vunpack.c.l.b16 %v459
    %v1558 = vunpack.c.h.b16 %v459
    %v1559 = vunpack.c.l.b16 %v460
    %v1560 = vunpack.c.h.b16 %v460
    %v1561 = vunpack.c.l.b16 %v461
    %v1562 = vunpack.c.h.b16 %v461
    %v1563 = vunpack.c.l.b16 %v462
    %v1564 = vunpack.c.h.b16 %v462
    %v1565 = vunpack.c.l.b16 %v463
    %v1566 = vunpack.c.h.b16 %v463
    %v1567 = vunpack.c.l.b16 %v464
    %v1568 = vunpack.c.h.b16 %v464
    %v1569 = vunpack.c.l.b16 %v465
    %v1570 = vunpack.c.h.b16 %v465
    %v1571 = vunpack.c.l.b16 %v466
    %v1572 = vunpack.c.h.b16 %v466
    %v1573 = vunpack.c.l.b16 %v467
    %v1574 = vunpack.c.h.b16 %v467
    %v1575 = vunpack.c.l.b16 %v468
    %v1576 = vunpack.c.h.b16 %v468
    %v1577 = vunpack.c.l.b16 %v469
    %v1578 = vunpack.c.h.b16 %v469
    %v1579 = vunpack.c.l.b16 %v470
    %v1580 = vunpack.c.h.b16 %v470
    %v1581 = vunpack.c.l.b16 %v471
    %v1582 = vunpack.c.h.b16 %v471
    %v1583 = vunpack.c.l.b16 %v472
    %v1584 = vunpack.c.h.b16 %v472
    %v1585 = vunpack.c.l.b16 %v473
    %v1586 = vunpack.c.h.b16 %v473
    %v1587 = vunpack.c.l.b16 %v474
    %v1588 = vunpack.c.h.b16 %v474
    %v1589 = vunpack.c.l.b16 %v475
    %v1590 = vunpack.c.h.b16 %v475
    %v1591 = vunpack.c.l.b16 %v476
    %v1592 = vunpack.c.h.b16 %v476
    %v1593 = vunpack.c.l.b16 %v477
    %v1594 = vunpack.c.h.b16 %v477
    %v1595 = vunpack.c.l.b16 %v478
    %v1596 = vunpack.c.h.b16 %v478
    %v1597 = vunpack.c.l.b16 %v479
    %v1598 = vunpack.c.h.b16 %v479
    %v1599 = vunpack.c.l.b16 %v480
    %v1600 = vunpack.c.h.b16 %v480
    %v1601 = vunpack.c.l.b16 %v481
    %v1602 = vunpack.c.h.b16 %v481
    %v1603 = vunpack.c.l.b16 %v482
    %v1604 = vunpack.c.h.b16 %v482
    %v1605 = vunpack.c.l.b16 %v483
    %v1606 = vunpack.c.h.b16 %v483
    %v1607 = vunpack.c.l.b16 %v484
    %v1608 = vunpack.c.h.b16 %v484
    %v1609 = vunpack.c.l.b16 %v485
    %v1610 = vunpack.c.h.b16 %v485
    %v1611 = vunpack.c.l.b16 %v486
    %v1612 = vunpack.c.h.b16 %v486
    %v1613 = vunpack.c.l.b16 %v487
    %v1614 = vunpack.c.h.b16 %v487
    %v1615 = vunpack.c.l.b16 %v488
    %v1616 = vunpack.c.h.b16 %v488
    %v1617 = vunpack.c.l.b16 %v489
    %v1618 = vunpack.c.h.b16 %v489
    %v1619 = vunpack.c.l.b16 %v490
    %v1620 = vunpack.c.h.b16 %v490
    %v1621 = vunpack.c.l.b16 %v491
    %v1622 = vunpack.c.h.b16 %v491
    %v1623 = vunpack.c.l.b16 %v492
    %v1624 = vunpack.c.h.b16 %v492
    %v1625 = vunpack.c.l.b16 %v493
    %v1626 = vunpack.c.h.b16 %v493
    %v1627 = vunpack.c.l.b16 %v494
    %v1628 = vunpack.c.h.b16 %v494
    %v1629 = vunpack.c.l.b16 %v495
    %v1630 = vunpack.c.h.b16 %v495
    %v1631 = vunpack.c.l.b16 %v496
    %v1632 = vunpack.c.h.b16 %v496
    %v1633 = vunpack.c.l.b16 %v497
    %v1634 = vunpack.c.h.b16 %v497
    %v1635 = vunpack.c.l.b16 %v498
    %v1636 = vunpack.c.h.b16 %v498
    %v1637 = vunpack.c.l.b16 %v499
    %v1638 = vunpack.c.h.b16 %v499
    %v1639 = vunpack.c.l.b16 %v500
    %v1640 = vunpack.c.h.b16 %v500
    %v1641 = vunpack.c.l.b16 %v501
    %v1642 = vunpack.c.h.b16 %v501
    %v1643 = vunpack.c.l.b16 %v502
    %v1644 = vunpack.c.h.b16 %v502
    %v1645 = vunpack.c.l.b16 %v503
    %v1646 = vunpack.c.h.b16 %v503
    %v1647 = vunpack.c.l.b16 %v504
    %v1648 = vunpack.c.h.b16 %v504
    %v1649 = vunpack.c.l.b16 %v505
    %v1650 = vunpack.c.h.b16 %v505
    %v1651 = vunpack.c.l.b16 %v506
    %v1652 = vunpack.c.h.b16 %v506
    %v1653 = vunpack.c.l.b16 %v507
    %v1654 = vunpack.c.h.b16 %v507
    %v1655 = vunpack.c.l.b16 %v508
    %v1656 = vunpack.c.h.b16 %v508
    %v1657 = vunpack.c.l.b16 %v509
    %v1658 = vunpack.c.h.b16 %v509
    %v1659 = vunpack.c.l.b16 %v510
    %v1660 = vunpack.c.h.b16 %v510
    %v1661 = vunpack.c.l.b16 %v511
    %v1662 = vunpack.c.h.b16 %v511
    %v1663 = vunpack.c.l.b16 %v512
    %v1664 = vunpack.c.h.b16 %v512
    %v1665 = vpack.c.b16 %v899, %v897
    %v1666 = vpack.c.b16 %v900, %v898
    %v1667 = vpack.c.b16 %v903, %v901
    %v1668 = vpack.c.b16 %v904, %v902
    %v1669 = vpack.c.b16 %v907, %v905
    %v1670 = vpack.c.b16 %v908, %v906
    %v1671 = vpack.c.b16 %v911, %v909
    %v1672 = vpack.c.b16 %v912, %v910
    %v1673 = vpack.c.b16 %v915, %v913
    %v1674 = vpack.c.b16 %v916, %v914
    %v1675 = vpack.c.b16 %v919, %v917
    %v1676 = vpack.c.b16 %v920, %v918
    %v1677 = vpack.c.b16 %v923, %v921
    %v1678 = vpack.c.b16 %v924, %v922
    %v1679 = vpack.c.b16 %v927, %v925
    %v1680 = vpack.c.b16 %v928, %v926
    %v1681 = vpack.c.b16 %v931, %v929
    %v1682 = vpack.c.b16 %v932, %v930
    %v1683 = vpack.c.b16 %v935, %v933
    %v1684 = vpack.c.b16 %v936, %v934
    %v1685 = vpack.c.b16 %v939, %v937
    %v1686 = vpack.c.b16 %v940, %v938
    %v1687 = vpack.c.b16 %v943, %v941
    %v1688 = vpack.c.b16 %v944, %v942
    %v1689 = vpack.c.b16 %v947, %v945
    %v1690 = vpack.c.b16 %v948, %v946
    %v1691 = vpack.c.b16 %v951, %v949
    %v1692 = vpack.c.b16 %v952, %v950
    %v1693 = vpack.c.b16 %v955, %v953
    %v1694 = vpack.c.b16 %v956, %v954
    %v1695 = vpack.c.b16 %v959, %v957
    %v1696 = vpack.c.b16 %v960, %v958
    %v1697 = vpack.c.b16 %v963, %v961
    %v1698 = vpack.c.b16 %v964, %v962
    %v1699 = vpack.c.b16 %v967, %v965
    %v1700 = vpack.c.b16 %v968, %v966
    %v1701 = vpack.c.b16 %v971, %v969
    %v1702 = vpack.c.b16 %v972, %v970
    %v1703 = vpack.c.b16 %v975, %v973
    %v1704 = vpack.c.b16 %v976, %v974
    %v1705 = vpack.c.b16 %v979, %v977
    %v1706 = vpack.c.b16 %v980, %v978
    %v1707 = vpack.c.b16 %v983, %v981
    %v1708 = vpack.c.b16 %v984, %v982
    %v1709 = vpack.c.b16 %v987, %v985
    %v1710 = vpack.c.b16 %v988, %v986
    %v1711 = vpack.c.b16 %v991, %v989
    %v1712 = vpack.c.b16 %v992, %v990
    %v1713 = vpack.c.b16 %v995, %v993
    %v1714 = vpack.c.b16 %v996, %v994
    %v1715 = vpack.c.b16 %v999, %v997
    %v1716 = vpack.c.b16 %v1000, %v998
    %v1717 = vpack.c.b16 %v1003, %v1001
    %v1718 = vpack.c.b16 %v1004, %v1002
    %v1719 = vpack.c.b16 %v1007, %v1005
    %v1720 = vpack.c.b16 %v1008, %v1006
    %v1721 = vpack.c.b16 %v1011, %v1009
    %v1722 = vpack.c.b16 %v1012, %v1010
    %v1723 = vpack.c.b16 %v1015, %v1013
    %v1724 = vpack.c.b16 %v1016, %v1014
    %v1725 = vpack.c.b16 %v1019, %v1017
    %v1726 = vpack.c.b16 %v1020, %v1018
    %v1727 = vpack.c.b16 %v1023, %v1021
    %v1728 = vpack.c.b16 %v1024, %v1022
    %v1729 = vpack.c.b16 %v1027, %v1025
    %v1730 = vpack.c.b16 %v1028, %v1026
    %v1731 = vpack.c.b16 %v1031, %v1029
    %v1732 = vpack.c.b16 %v1032, %v1030
    %v1733 = vpack.c.b16 %v1035, %v1033
    %v1734 = vpack.c.b16 %v1036, %v1034
    %v1735 = vpack.c.b16 %v1039, %v1037
    %v1736 = vpack.c.b16 %v1040, %v1038
    %v1737 = vpack.c.b16 %v1043, %v1041
    %v1738 = vpack.c.b16 %v1044, %v1042
    %v1739 = vpack.c.b16 %v1047, %v1045
    %v1740 = vpack.c.b16 %v1048, %v1046
    %v1741 = vpack.c.b16 %v1051, %v1049
    %v1742 = vpack.c.b16 %v1052, %v1050
    %v1743 = vpack.c.b16 %v1055, %v1053
    %v1744 = vpack.c.b16 %v1056, %v1054
    %v1745 = vpack.c.b16 %v1059, %v1057
    %v1746 = vpack.c.b16 %v1060, %v1058
    %v1747 = vpack.c.b16 %v1063, %v1061
    %v1748 = vpack.c.b16 %v1064, %v1062
    %v1749 = vpack.c.b16 %v1067, %v1065
    %v1750 = vpack.c.b16 %v1068, %v1066
    %v1751 = vpack.c.b16 %v1071, %v1069
    %v1752 = vpack.c.b16 %v1072, %v1070
    %v1753 = vpack.c.b16 %v1075, %v1073
    %v1754 = vpack.c.b16 %v1076, %v1074
    %v1755 = vpack.c.b16 %v1079, %v1077
    %v1756 = vpack.c.b16 %v1080, %v1078
    %v1757 = vpack.c.b16 %v1083, %v1081
    %v1758 = vpack.c.b16 %v1084, %v1082
    %v1759 = vpack.c.b16 %v1087, %v1085
    %v1760 = vpack.c.b16 %v1088, %v1086
    %v1761 = vpack.c.b16 %v1091, %v1089
    %v1762 = vpack.c.b16 %v1092, %v1090
    %v1763 = vpack.c.b16 %v1095, %v1093
    %v1764 = vpack.c.b16 %v1096, %v1094
    %v1765 = vpack.c.b16 %v1099, %v1097
    %v1766 = vpack.c.b16 %v1100, %v1098
    %v1767 = vpack.c.b16 %v1103, %v1101
    %v1768 = vpack.c.b16 %v1104, %v1102
    %v1769 = vpack.c.b16 %v1107, %v1105
    %v1770 = vpack.c.b16 %v1108, %v1106
    %v1771 = vpack.c.b16 %v1111, %v1109
    %v1772 = vpack.c.b16 %v1112, %v1110
    %v1773 = vpack.c.b16 %v1115, %v1113
    %v1774 = vpack.c.b16 %v1116, %v1114
    %v1775 = vpack.c.b16 %v1119, %v1117
    %v1776 = vpack.c.b16 %v1120, %v1118
    %v1777 = vpack.c.b16 %v1123, %v1121
    %v1778 = vpack.c.b16 %v1124, %v1122
    %v1779 = vpack.c.b16 %v1127, %v1125
    %v1780 = vpack.c.b16 %v1128, %v1126
    %v1781 = vpack.c.b16 %v1131, %v1129
    %v1782 = vpack.c.b16 %v1132, %v1130
    %v1783 = vpack.c.b16 %v1135, %v1133
    %v1784 = vpack.c.b16 %v1136, %v1134
    %v1785 = vpack.c.b16 %v1139, %v1137
    %v1786 = vpack.c.b16 %v1140, %v1138
    %v1787 = vpack.c.b16 %v1143, %v1141
    %v1788 = vpack.c.b16 %v1144, %v1142
    %v1789 = vpack.c.b16 %v1147, %v1145
    %v1790 = vpack.c.b16 %v1148, %v1146
    %v1791 = vpack.c.b16 %v1151, %v1149
    %v1792 = vpack.c.b16 %v1152, %v1150
    %v1793 = vpack.c.b16 %v1155, %v1153
    %v1794 = vpack.c.b16 %v1156, %v1154
    %v1795 = vpack.c.b16 %v1159, %v1157
    %v1796 = vpack.c.b16 %v1160, %v1158
    %v1797 = vpack.c.b16 %v1163, %v1161
    %v1798 = vpack.c.b16 %v1164, %v1162
    %v1799 = vpack.c.b16 %v1167, %v1165
    %v1800 = vpack.c.b16 %v1168, %v1166
    %v1801 = vpack.c.b16 %v1171, %v1169
    %v1802 = vpack.c.b16 %v1172, %v1170
    %v1803 = vpack.c.b16 %v1175, %v1173
    %v1804 = vpack.c.b16 %v1176, %v1174
    %v1805 = vpack.c.b16 %v1179, %v1177
    %v1806 = vpack.c.b16 %v1180, %v1178
    %v1807 = vpack.c.b16 %v1183, %v1181
    %v1808 = vpack.c.b16 %v1184, %v1182
    %v1809 = vpack.c.b16 %v1187, %v1185
    %v1810 = vpack.c.b16 %v1188, %v1186
    %v1811 = vpack.c.b16 %v1191, %v1189
    %v1812 = vpack.c.b16 %v1192, %v1190
    %v1813 = vpack.c.b16 %v1195, %v1193
    %v1814 = vpack.c.b16 %v1196, %v1194
    %v1815 = vpack.c.b16 %v1199, %v1197
    %v1816 = vpack.c.b16 %v1200, %v1198
    %v1817 = vpack.c.b16 %v1203, %v1201
    %v1818 = vpack.c.b16 %v1204, %v1202
    %v1819 = vpack.c.b16 %v1207, %v1205
    %v1820 = vpack.c.b16 %v1208, %v1206
    %v1821 = vpack.c.b16 %v1211, %v1209
    %v1822 = vpack.c.b16 %v1212, %v1210
    %v1823 = vpack.c.b16 %v1215, %v1213
    %v1824 = vpack.c.b16 %v1216, %v1214
    %v1825 = vpack.c.b16 %v1219, %v1217
    %v1826 = vpack.c.b16 %v1220, %v1218
    %v1827 = vpack.c.b16 %v1223, %v1221
    %v1828 = vpack.c.b16 %v1224, %v1222
    %v1829 = vpack.c.b16 %v1227, %v1225
    %v1830 = vpack.c.b16 %v1228, %v1226
    %v1831 = vpack.c.b16 %v1231, %v1229
    %v1832 = vpack.c.b16 %v1232, %v1230
    %v1833 = vpack.c.b16 %v1235, %v1233
    %v1834 = vpack.c.b16 %v1236, %v1234
    %v1835 = vpack.c.b16 %v1239, %v1237
    %v1836 = vpack.c.b16 %v1240, %v1238
    %v1837 = vpack.c.b16 %v1243, %v1241
    %v1838 = vpack.c.b16 %v1244, %v1242
    %v1839 = vpack.c.b16 %v1247, %v1245
    %v1840 = vpack.c.b16 %v1248, %v1246
    %v1841 = vpack.c.b16 %v1251, %v1249
    %v1842 = vpack.c.b16 %v1252, %v1250
    %v1843 = vpack.c.b16 %v1255, %v1253
    %v1844 = vpack.c.b16 %v1256, %v1254
    %v1845 = vpack.c.b16 %v1259, %v1257
    %v1846 = vpack.c.b16 %v1260, %v1258
    %v1847 = vpack.c.b16 %v1263, %v1261
    %v1848 = vpack.c.b16 %v1264, %v1262
    %v1849 = vpack.c.b16 %v1267, %v1265
    %v1850 = vpack.c.b16 %v1268, %v1266
    %v1851 = vpack.c.b16 %v1271, %v1269
    %v1852 = vpack.c.b16 %v1272, %v1270
    %v1853 = vpack.c.b16 %v1275, %v1273
    %v1854 = vpack.c.b16 %v1276, %v1274
    %v1855 = vpack.c.b16 %v1279, %v1277
    %v1856 = vpack.c.b16 %v1280, %v1278
    %v1857 = vpack.c.b16 %v1283, %v1281
    %v1858 = vpack.c.b16 %v1284, %v1282
    %v1859 = vpack.c.b16 %v1287, %v1285
    %v1860 = vpack.c.b16 %v1288, %v1286
    %v1861 = vpack.c.b16 %v1291, %v1289
    %v1862 = vpack.c.b16 %v1292, %v1290
    %v1863 = vpack.c.b16 %v1295, %v1293
    %v1864 = vpack.c.b16 %v1296, %v1294
    %v1865 = vpack.c.b16 %v1299, %v1297
    %v1866 = vpack.c.b16 %v1300, %v1298
    %v1867 = vpack.c.b16 %v1303, %v1301
    %v1868 = vpack.c.b16 %v1304, %v1302
    %v1869 = vpack.c.b16 %v1307, %v1305
    %v1870 = vpack.c.b16 %v1308, %v1306
    %v1871 = vpack.c.b16 %v1311, %v1309
    %v1872 = vpack.c.b16 %v1312, %v1310
    %v1873 = vpack.c.b16 %v1315, %v1313
    %v1874 = vpack.c.b16 %v1316, %v1314
    %v1875 = vpack.c.b16 %v1319, %v1317
    %v1876 = vpack.c.b16 %v1320, %v1318
    %v1877 = vpack.c.b16 %v1323, %v1321
    %v1878 = vpack.c.b16 %v1324, %v1322
    %v1879 = vpack.c.b16 %v1327, %v1325
    %v1880 = vpack.c.b16 %v1328, %v1326
    %v1881 = vpack.c.b16 %v1331, %v1329
    %v1882 = vpack.c.b16 %v1332, %v1330
    %v1883 = vpack.c.b16 %v1335, %v1333
    %v1884 = vpack.c.b16 %v1336, %v1334
    %v1885 = vpack.c.b16 %v1339, %v1337
    %v1886 = vpack.c.b16 %v1340, %v1338
    %v1887 = vpack.c.b16 %v1343, %v1341
    %v1888 = vpack.c.b16 %v1344, %v1342
    %v1889 = vpack.c.b16 %v1347, %v1345
    %v1890 = vpack.c.b16 %v1348, %v1346
    %v1891 = vpack.c.b16 %v1351, %v1349
    %v1892 = vpack.c.b16 %v1352, %v1350
    %v1893 = vpack.c.b16 %v1355, %v1353
    %v1894 = vpack.c.b16 %v1356, %v1354
    %v1895 = vpack.c.b16 %v1359, %v1357
    %v1896 = vpack.c.b16 %v1360, %v1358
    %v1897 = vpack.c.b16 %v1363, %v1361
    %v1898 = vpack.c.b16 %v1364, %v1362
    %v1899 = vpack.c.b16 %v1367, %v1365
    %v1900 = vpack.c.b16 %v1368, %v1366
    %v1901 = vpack.c.b16 %v1371, %v1369
    %v1902 = vpack.c.b16 %v1372, %v1370
    %v1903 = vpack.c.b16 %v1375, %v1373
    %v1904 = vpack.c.b16 %v1376, %v1374
    %v1905 = vpack.c.b16 %v1379, %v1377
    %v1906 = vpack.c.b16 %v1380, %v1378
    %v1907 = vpack.c.b16 %v1383, %v1381
    %v1908 = vpack.c.b16 %v1384, %v1382
    %v1909 = vpack.c.b16 %v1387, %v1385
    %v1910 = vpack.c.b16 %v1388, %v1386
    %v1911 = vpack.c.b16 %v1391, %v1389
    %v1912 = vpack.c.b16 %v1392, %v1390
    %v1913 = vpack.c.b16 %v1395, %v1393
    %v1914 = vpack.c.b16 %v1396, %v1394
    %v1915 = vpack.c.b16 %v1399, %v1397
    %v1916 = vpack.c.b16 %v1400, %v1398
    %v1917 = vpack.c.b16 %v1403, %v1401
    %v1918 = vpack.c.b16 %v1404, %v1402
    %v1919 = vpack.c.b16 %v1407, %v1405
    %v1920 = vpack.c.b16 %v1408, %v1406
    %v1921 = vpack.c.b16 %v1411, %v1409
    %v1922 = vpack.c.b16 %v1412, %v1410
    %v1923 = vpack.c.b16 %v1415, %v1413
    %v1924 = vpack.c.b16 %v1416, %v1414
    %v1925 = vpack.c.b16 %v1419, %v1417
    %v1926 = vpack.c.b16 %v1420, %v1418
    %v1927 = vpack.c.b16 %v1423, %v1421
    %v1928 = vpack.c.b16 %v1424, %v1422
    %v1929 = vpack.c.b16 %v1427, %v1425
    %v1930 = vpack.c.b16 %v1428, %v1426
    %v1931 = vpack.c.b16 %v1431, %v1429
    %v1932 = vpack.c.b16 %v1432, %v1430
    %v1933 = vpack.c.b16 %v1435, %v1433
    %v1934 = vpack.c.b16 %v1436, %v1434
    %v1935 = vpack.c.b16 %v1439, %v1437
    %v1936 = vpack.c.b16 %v1440, %v1438
    %v1937 = vpack.c.b16 %v1443, %v1441
    %v1938 = vpack.c.b16 %v1444, %v1442
    %v1939 = vpack.c.b16 %v1447, %v1445
    %v1940 = vpack.c.b16 %v1448, %v1446
    %v1941 = vpack.c.b16 %v1451, %v1449
    %v1942 = vpack.c.b16 %v1452, %v1450
    %v1943 = vpack.c.b16 %v1455, %v1453
    %v1944 = vpack.c.b16 %v1456, %v1454
    %v1945 = vpack.c.b16 %v1459, %v1457
    %v1946 = vpack.c.b16 %v1460, %v1458
    %v1947 = vpack.c.b16 %v1463, %v1461
    %v1948 = vpack.c.b16 %v1464, %v1462
    %v1949 = vpack.c.b16 %v1467, %v1465
    %v1950 = vpack.c.b16 %v1468, %v1466
    %v1951 = vpack.c.b16 %v1471, %v1469
    %v1952 = vpack.c.b16 %v1472, %v1470
    %v1953 = vpack.c.b16 %v1475, %v1473
    %v1954 = vpack.c.b16 %v1476, %v1474
    %v1955 = vpack.c.b16 %v1479, %v1477
    %v1956 = vpack.c.b16 %v1480, %v1478
    %v1957 = vpack.c.b16 %v1483, %v1481
    %v1958 = vpack.c.b16 %v1484, %v1482
    %v1959 = vpack.c.b16 %v1487, %v1485
    %v1960 = vpack.c.b16 %v1488, %v1486
    %v1961 = vpack.c.b16 %v1491, %v1489
    %v1962 = vpack.c.b16 %v1492, %v1490
    %v1963 = vpack.c.b16 %v1495, %v1493
    %v1964 = vpack.c.b16 %v1496, %v1494
    %v1965 = vpack.c.b16 %v1499, %v1497
    %v1966 = vpack.c.b16 %v1500, %v1498
    %v1967 = vpack.c.b16 %v1503, %v1501
    %v1968 = vpack.c.b16 %v1504, %v1502
    %v1969 = vpack.c.b16 %v1507, %v1505
    %v1970 = vpack.c.b16 %v1508, %v1506
    %v1971 = vpack.c.b16 %v1511, %v1509
    %v1972 = vpack.c.b16 %v1512, %v1510
    %v1973 = vpack.c.b16 %v1515, %v1513
    %v1974 = vpack.c.b16 %v1516, %v1514
    %v1975 = vpack.c.b16 %v1519, %v1517
    %v1976 = vpack.c.b16 %v1520, %v1518
    %v1977 = vpack.c.b16 %v1523, %v1521
    %v1978 = vpack.c.b16 %v1524, %v1522
    %v1979 = vpack.c.b16 %v1527, %v1525
    %v1980 = vpack.c.b16 %v1528, %v1526
    %v1981 = vpack.c.b16 %v1531, %v1529
    %v1982 = vpack.c.b16 %v1532, %v1530
    %v1983 = vpack.c.b16 %v1535, %v1533
    %v1984 = vpack.c.b16 %v1536, %v1534
    %v1985 = vpack.c.b16 %v1539, %v1537
    %v1986 = vpack.c.b16 %v1540, %v1538
    %v1987 = vpack.c.b16 %v1543, %v1541
    %v1988 = vpack.c.b16 %v1544, %v1542
    %v1989 = vpack.c.b16 %v1547, %v1545
    %v1990 = vpack.c.b16 %v1548, %v1546
    %v1991 = vpack.c.b16 %v1551, %v1549
    %v1992 = vpack.c.b16 %v1552, %v1550
    %v1993 = vpack.c.b16 %v1555, %v1553
    %v1994 = vpack.c.b16 %v1556, %v1554
    %v1995 = vpack.c.b16 %v1559, %v1557
    %v1996 = vpack.c.b16 %v1560, %v1558
    %v1997 = vpack.c.b16 %v1563, %v1561
    %v1998 = vpack.c.b16 %v1564, %v1562
    %v1999 = vpack.c.b16 %v1567, %v1565
    %v2000 = vpack.c.b16 %v1568, %v1566
    %v2001 = vpack.c.b16 %v1571, %v1569
    %v2002 = vpack.c.b16 %v1572, %v1570
    %v2003 = vpack.c.b16 %v1575, %v1573
    %v2004 = vpack.c.b16 %v1576, %v1574
    %v2005 = vpack.c.b16 %v1579, %v1577
    %v2006 = vpack.c.b16 %v1580, %v1578
    %v2007 = vpack.c.b16 %v1583, %v1581
    %v2008 = vpack.c.b16 %v1584, %v1582
    %v2009 = vpack.c.b16 %v1587, %v1585
    %v2010 = vpack.c.b16 %v1588, %v1586
    %v2011 = vpack.c.b16 %v1591, %v1589
    %v2012 = vpack.c.b16 %v1592, %v1590
    %v2013 = vpack.c.b16 %v1595, %v1593
    %v2014 = vpack.c.b16 %v1596, %v1594
    %v2015 = vpack.c.b16 %v1599, %v1597
    %v2016 = vpack.c.b16 %v1600, %v1598
    %v2017 = vpack.c.b16 %v1603, %v1601
    %v2018 = vpack.c.b16 %v1604, %v1602
    %v2019 = vpack.c.b16 %v1607, %v1605
    %v2020 = vpack.c.b16 %v1608, %v1606
    %v2021 = vpack.c.b16 %v1611, %v1609
    %v2022 = vpack.c.b16 %v1612, %v1610
    %v2023 = vpack.c.b16 %v1615, %v1613
    %v2024 = vpack.c.b16 %v1616, %v1614
    %v2025 = vpack.c.b16 %v1619, %v1617
    %v2026 = vpack.c.b16 %v1620, %v1618
    %v2027 = vpack.c.b16 %v1623, %v1621
    %v2028 = vpack.c.b16 %v1624, %v1622
    %v2029 = vpack.c.b16 %v1627, %v1625
    %v2030 = vpack.c.b16 %v1628, %v1626
    %v2031 = vpack.c.b16 %v1631, %v1629
    %v2032 = vpack.c.b16 %v1632, %v1630
    %v2033 = vpack.c.b16 %v1635, %v1633
    %v2034 = vpack.c.b16 %v1636, %v1634
    %v2035 = vpack.c.b16 %v1639, %v1637
    %v2036 = vpack.c.b16 %v1640, %v1638
    %v2037 = vpack.c.b16 %v1643, %v1641
    %v2038 = vpack.c.b16 %v1644, %v1642
    %v2039 = vpack.c.b16 %v1647, %v1645
    %v2040 = vpack.c.b16 %v1648, %v1646
    %v2041 = vpack.c.b16 %v1651, %v1649
    %v2042 = vpack.c.b16 %v1652, %v1650
    %v2043 = vpack.c.b16 %v1655, %v1653
    %v2044 = vpack.c.b16 %v1656, %v1654
    %v2045 = vpack.c.b16 %v1659, %v1657
    %v2046 = vpack.c.b16 %v1660, %v1658
    %v2047 = vpack.c.b16 %v1663, %v1661
    %v2048 = vpack.c.b16 %v1664, %v1662
    %2433 = vmatpush.bf16.msra.mxu0 %v1679
    %2434 = vmatpush.bf16.msra.mxu0 %v1677
    %2435 = vmatpush.bf16.msra.mxu0 %v1675
    %2436 = vmatpush.bf16.msra.mxu0 %v1673
    %2437 = vmatpush.bf16.msra.mxu0 %v1671
    %2438 = vmatpush.bf16.msra.mxu0 %v1669
    %2439 = vmatpush.bf16.msra.mxu0 %v1667
    %2440 = vmatpush.bf16.msra.mxu0 %v1665
    %2441 = vmatmul.bf16.gmra.mxu0 %v105
    %v2442 = vpop.f32.mrf.mxu0
    %v2443 = vadd.f32 0.0, %v2442
    %v2444 = vpop.f32.mrf.mxu0
    %2445 = vdwg.mxu0
    %2446 = vmatpush.bf16.msra.mxu0 %v1695
    %2447 = vmatpush.bf16.msra.mxu0 %v1693
    %2448 = vmatpush.bf16.msra.mxu0 %v1691
    %2449 = vmatpush.bf16.msra.mxu0 %v1689
    %2450 = vmatpush.bf16.msra.mxu0 %v1687
    %2451 = vmatpush.bf16.msra.mxu0 %v1685
    %2452 = vmatpush.bf16.msra.mxu0 %v1683
    %2453 = vmatpush.bf16.msra.mxu0 %v1681
    %2454 = vmatmul.bf16.gmra.mxu0 %v106
    %v2455 = vpop.f32.mrf.mxu0
    %v2456 = vadd.f32 %v2443, %v2455
    %v2457 = vpop.f32.mrf.mxu0
    %2458 = vdwg.mxu0
    %2459 = vmatpush.bf16.msra.mxu0 %v1711
    %2460 = vmatpush.bf16.msra.mxu0 %v1709
    %2461 = vmatpush.bf16.msra.mxu0 %v1707
    %2462 = vmatpush.bf16.msra.mxu0 %v1705
    %2463 = vmatpush.bf16.msra.mxu0 %v1703
    %2464 = vmatpush.bf16.msra.mxu0 %v1701
    %2465 = vmatpush.bf16.msra.mxu0 %v1699
    %2466 = vmatpush.bf16.msra.mxu0 %v1697
    %2467 = vmatmul.bf16.gmra.mxu0 %v107
    %v2468 = vpop.f32.mrf.mxu0
    %v2469 = vadd.f32 %v2456, %v2468
    %v2470 = vpop.f32.mrf.mxu0
    %2471 = vdwg.mxu0
    %2472 = vmatpush.bf16.msra.mxu0 %v1727
    %2473 = vmatpush.bf16.msra.mxu0 %v1725
    %2474 = vmatpush.bf16.msra.mxu0 %v1723
    %2475 = vmatpush.bf16.msra.mxu0 %v1721
    %2476 = vmatpush.bf16.msra.mxu0 %v1719
    %2477 = vmatpush.bf16.msra.mxu0 %v1717
    %2478 = vmatpush.bf16.msra.mxu0 %v1715
    %2479 = vmatpush.bf16.msra.mxu0 %v1713
    %2480 = vmatmul.bf16.gmra.mxu0 %v108
    %v2481 = vpop.f32.mrf.mxu0
    %v2482 = vadd.f32 %v2469, %v2481
    %v2483 = vpop.f32.mrf.mxu0
    %2484 = vdwg.mxu0
    %2485 = vmatpush.bf16.msra.mxu0 %v1743
    %2486 = vmatpush.bf16.msra.mxu0 %v1741
    %2487 = vmatpush.bf16.msra.mxu0 %v1739
    %2488 = vmatpush.bf16.msra.mxu0 %v1737
    %2489 = vmatpush.bf16.msra.mxu0 %v1735
    %2490 = vmatpush.bf16.msra.mxu0 %v1733
    %2491 = vmatpush.bf16.msra.mxu0 %v1731
    %2492 = vmatpush.bf16.msra.mxu0 %v1729
    %2493 = vmatmul.bf16.gmra.mxu0 %v109
    %v2494 = vpop.f32.mrf.mxu0
    %v2495 = vadd.f32 %v2482, %v2494
    %v2496 = vpop.f32.mrf.mxu0
    %2497 = vdwg.mxu0
    %2498 = vmatpush.bf16.msra.mxu0 %v1759
    %2499 = vmatpush.bf16.msra.mxu0 %v1757
    %2500 = vmatpush.bf16.msra.mxu0 %v1755
    %2501 = vmatpush.bf16.msra.mxu0 %v1753
    %2502 = vmatpush.bf16.msra.mxu0 %v1751
    %2503 = vmatpush.bf16.msra.mxu0 %v1749
    %2504 = vmatpush.bf16.msra.mxu0 %v1747
    %2505 = vmatpush.bf16.msra.mxu0 %v1745
    %2506 = vmatmul.bf16.gmra.mxu0 %v110
    %v2507 = vpop.f32.mrf.mxu0
    %v2508 = vadd.f32 %v2495, %v2507
    %v2509 = vpop.f32.mrf.mxu0
    %2510 = vdwg.mxu0
    %2511 = vmatpush.bf16.msra.mxu0 %v1775
    %2512 = vmatpush.bf16.msra.mxu0 %v1773
    %2513 = vmatpush.bf16.msra.mxu0 %v1771
    %2514 = vmatpush.bf16.msra.mxu0 %v1769
    %2515 = vmatpush.bf16.msra.mxu0 %v1767
    %2516 = vmatpush.bf16.msra.mxu0 %v1765
    %2517 = vmatpush.bf16.msra.mxu0 %v1763
    %2518 = vmatpush.bf16.msra.mxu0 %v1761
    %2519 = vmatmul.bf16.gmra.mxu0 %v111
    %v2520 = vpop.f32.mrf.mxu0
    %v2521 = vadd.f32 %v2508, %v2520
    %v2522 = vpop.f32.mrf.mxu0
    %2523 = vdwg.mxu0
    %2524 = vmatpush.bf16.msra.mxu0 %v1791
    %2525 = vmatpush.bf16.msra.mxu0 %v1789
    %2526 = vmatpush.bf16.msra.mxu0 %v1787
    %2527 = vmatpush.bf16.msra.mxu0 %v1785
    %2528 = vmatpush.bf16.msra.mxu0 %v1783
    %2529 = vmatpush.bf16.msra.mxu0 %v1781
    %2530 = vmatpush.bf16.msra.mxu0 %v1779
    %2531 = vmatpush.bf16.msra.mxu0 %v1777
    %2532 = vmatmul.bf16.gmra.mxu0 %v112
    %v2533 = vpop.f32.mrf.mxu0
    %v2534 = vadd.f32 %v2521, %v2533
    %v2535 = vpop.f32.mrf.mxu0
    %2536 = vdwg.mxu0
    %2537 = vmatpush.bf16.msra.mxu0 %v1807
    %2538 = vmatpush.bf16.msra.mxu0 %v1805
    %2539 = vmatpush.bf16.msra.mxu0 %v1803
    %2540 = vmatpush.bf16.msra.mxu0 %v1801
    %2541 = vmatpush.bf16.msra.mxu0 %v1799
    %2542 = vmatpush.bf16.msra.mxu0 %v1797
    %2543 = vmatpush.bf16.msra.mxu0 %v1795
    %2544 = vmatpush.bf16.msra.mxu0 %v1793
    %2545 = vmatmul.bf16.gmra.mxu0 %v113
    %v2546 = vpop.f32.mrf.mxu0
    %v2547 = vadd.f32 %v2534, %v2546
    %v2548 = vpop.f32.mrf.mxu0
    %2549 = vdwg.mxu0
    %2550 = vmatpush.bf16.msra.mxu0 %v1823
    %2551 = vmatpush.bf16.msra.mxu0 %v1821
    %2552 = vmatpush.bf16.msra.mxu0 %v1819
    %2553 = vmatpush.bf16.msra.mxu0 %v1817
    %2554 = vmatpush.bf16.msra.mxu0 %v1815
    %2555 = vmatpush.bf16.msra.mxu0 %v1813
    %2556 = vmatpush.bf16.msra.mxu0 %v1811
    %2557 = vmatpush.bf16.msra.mxu0 %v1809
    %2558 = vmatmul.bf16.gmra.mxu0 %v114
    %v2559 = vpop.f32.mrf.mxu0
    %v2560 = vadd.f32 %v2547, %v2559
    %v2561 = vpop.f32.mrf.mxu0
    %2562 = vdwg.mxu0
    %2563 = vmatpush.bf16.msra.mxu0 %v1839
    %2564 = vmatpush.bf16.msra.mxu0 %v1837
    %2565 = vmatpush.bf16.msra.mxu0 %v1835
    %2566 = vmatpush.bf16.msra.mxu0 %v1833
    %2567 = vmatpush.bf16.msra.mxu0 %v1831
    %2568 = vmatpush.bf16.msra.mxu0 %v1829
    %2569 = vmatpush.bf16.msra.mxu0 %v1827
    %2570 = vmatpush.bf16.msra.mxu0 %v1825
    %2571 = vmatmul.bf16.gmra.mxu0 %v115
    %v2572 = vpop.f32.mrf.mxu0
    %v2573 = vadd.f32 %v2560, %v2572
    %v2574 = vpop.f32.mrf.mxu0
    %2575 = vdwg.mxu0
    %2576 = vmatpush.bf16.msra.mxu0 %v1855
    %2577 = vmatpush.bf16.msra.mxu0 %v1853
    %2578 = vmatpush.bf16.msra.mxu0 %v1851
    %2579 = vmatpush.bf16.msra.mxu0 %v1849
    %2580 = vmatpush.bf16.msra.mxu0 %v1847
    %2581 = vmatpush.bf16.msra.mxu0 %v1845
    %2582 = vmatpush.bf16.msra.mxu0 %v1843
    %2583 = vmatpush.bf16.msra.mxu0 %v1841
    %2584 = vmatmul.bf16.gmra.mxu0 %v116
    %v2585 = vpop.f32.mrf.mxu0
    %v2586 = vadd.f32 %v2573, %v2585
    %v2587 = vpop.f32.mrf.mxu0
    %2588 = vdwg.mxu0
    %2589 = vmatpush.bf16.msra.mxu0 %v1871
    %2590 = vmatpush.bf16.msra.mxu0 %v1869
    %2591 = vmatpush.bf16.msra.mxu0 %v1867
    %2592 = vmatpush.bf16.msra.mxu0 %v1865
    %2593 = vmatpush.bf16.msra.mxu0 %v1863
    %2594 = vmatpush.bf16.msra.mxu0 %v1861
    %2595 = vmatpush.bf16.msra.mxu0 %v1859
    %2596 = vmatpush.bf16.msra.mxu0 %v1857
    %2597 = vmatmul.bf16.gmra.mxu0 %v117
    %v2598 = vpop.f32.mrf.mxu0
    %v2599 = vadd.f32 %v2586, %v2598
    %v2600 = vpop.f32.mrf.mxu0
    %2601 = vdwg.mxu0
    %2602 = vmatpush.bf16.msra.mxu0 %v1887
    %2603 = vmatpush.bf16.msra.mxu0 %v1885
    %2604 = vmatpush.bf16.msra.mxu0 %v1883
    %2605 = vmatpush.bf16.msra.mxu0 %v1881
    %2606 = vmatpush.bf16.msra.mxu0 %v1879
    %2607 = vmatpush.bf16.msra.mxu0 %v1877
    %2608 = vmatpush.bf16.msra.mxu0 %v1875
    %2609 = vmatpush.bf16.msra.mxu0 %v1873
    %2610 = vmatmul.bf16.gmra.mxu0 %v118
    %v2611 = vpop.f32.mrf.mxu0
    %v2612 = vadd.f32 %v2599, %v2611
    %v2613 = vpop.f32.mrf.mxu0
    %2614 = vdwg.mxu0
    %2615 = vmatpush.bf16.msra.mxu0 %v1903
    %2616 = vmatpush.bf16.msra.mxu0 %v1901
    %2617 = vmatpush.bf16.msra.mxu0 %v1899
    %2618 = vmatpush.bf16.msra.mxu0 %v1897
    %2619 = vmatpush.bf16.msra.mxu0 %v1895
    %2620 = vmatpush.bf16.msra.mxu0 %v1893
    %2621 = vmatpush.bf16.msra.mxu0 %v1891
    %2622 = vmatpush.bf16.msra.mxu0 %v1889
    %2623 = vmatmul.bf16.gmra.mxu0 %v119
    %v2624 = vpop.f32.mrf.mxu0
    %v2625 = vadd.f32 %v2612, %v2624
    %v2626 = vpop.f32.mrf.mxu0
    %2627 = vdwg.mxu0
    %2628 = vmatpush.bf16.msra.mxu0 %v1919
    %2629 = vmatpush.bf16.msra.mxu0 %v1917
    %2630 = vmatpush.bf16.msra.mxu0 %v1915
    %2631 = vmatpush.bf16.msra.mxu0 %v1913
    %2632 = vmatpush.bf16.msra.mxu0 %v1911
    %2633 = vmatpush.bf16.msra.mxu0 %v1909
    %2634 = vmatpush.bf16.msra.mxu0 %v1907
    %2635 = vmatpush.bf16.msra.mxu0 %v1905
    %2636 = vmatmul.bf16.gmra.mxu0 %v120
    %v2637 = vpop.f32.mrf.mxu0
    %v2638 = vadd.f32 %v2625, %v2637
    %v2639 = vpop.f32.mrf.mxu0
    %2640 = vdwg.mxu0
    %2641 = vmatpush.bf16.msra.mxu0 %v1935
    %2642 = vmatpush.bf16.msra.mxu0 %v1933
    %2643 = vmatpush.bf16.msra.mxu0 %v1931
    %2644 = vmatpush.bf16.msra.mxu0 %v1929
    %2645 = vmatpush.bf16.msra.mxu0 %v1927
    %2646 = vmatpush.bf16.msra.mxu0 %v1925
    %2647 = vmatpush.bf16.msra.mxu0 %v1923
    %2648 = vmatpush.bf16.msra.mxu0 %v1921
    %2649 = vmatmul.bf16.gmra.mxu0 %v121
    %v2650 = vpop.f32.mrf.mxu0
    %v2651 = vadd.f32 %v2638, %v2650
    %v2652 = vpop.f32.mrf.mxu0
    %2653 = vdwg.mxu0
    %2654 = vmatpush.bf16.msra.mxu0 %v1951
    %2655 = vmatpush.bf16.msra.mxu0 %v1949
    %2656 = vmatpush.bf16.msra.mxu0 %v1947
    %2657 = vmatpush.bf16.msra.mxu0 %v1945
    %2658 = vmatpush.bf16.msra.mxu0 %v1943
    %2659 = vmatpush.bf16.msra.mxu0 %v1941
    %2660 = vmatpush.bf16.msra.mxu0 %v1939
    %2661 = vmatpush.bf16.msra.mxu0 %v1937
    %2662 = vmatmul.bf16.gmra.mxu0 %v122
    %v2663 = vpop.f32.mrf.mxu0
    %v2664 = vadd.f32 %v2651, %v2663
    %v2665 = vpop.f32.mrf.mxu0
    %2666 = vdwg.mxu0
    %2667 = vmatpush.bf16.msra.mxu0 %v1967
    %2668 = vmatpush.bf16.msra.mxu0 %v1965
    %2669 = vmatpush.bf16.msra.mxu0 %v1963
    %2670 = vmatpush.bf16.msra.mxu0 %v1961
    %2671 = vmatpush.bf16.msra.mxu0 %v1959
    %2672 = vmatpush.bf16.msra.mxu0 %v1957
    %2673 = vmatpush.bf16.msra.mxu0 %v1955
    %2674 = vmatpush.bf16.msra.mxu0 %v1953
    %2675 = vmatmul.bf16.gmra.mxu0 %v123
    %v2676 = vpop.f32.mrf.mxu0
    %v2677 = vadd.f32 %v2664, %v2676
    %v2678 = vpop.f32.mrf.mxu0
    %2679 = vdwg.mxu0
    %2680 = vmatpush.bf16.msra.mxu0 %v1983
    %2681 = vmatpush.bf16.msra.mxu0 %v1981
    %2682 = vmatpush.bf16.msra.mxu0 %v1979
    %2683 = vmatpush.bf16.msra.mxu0 %v1977
    %2684 = vmatpush.bf16.msra.mxu0 %v1975
    %2685 = vmatpush.bf16.msra.mxu0 %v1973
    %2686 = vmatpush.bf16.msra.mxu0 %v1971
    %2687 = vmatpush.bf16.msra.mxu0 %v1969
    %2688 = vmatmul.bf16.gmra.mxu0 %v124
    %v2689 = vpop.f32.mrf.mxu0
    %v2690 = vadd.f32 %v2677, %v2689
    %v2691 = vpop.f32.mrf.mxu0
    %2692 = vdwg.mxu0
    %2693 = vmatpush.bf16.msra.mxu0 %v1999
    %2694 = vmatpush.bf16.msra.mxu0 %v1997
    %2695 = vmatpush.bf16.msra.mxu0 %v1995
    %2696 = vmatpush.bf16.msra.mxu0 %v1993
    %2697 = vmatpush.bf16.msra.mxu0 %v1991
    %2698 = vmatpush.bf16.msra.mxu0 %v1989
    %2699 = vmatpush.bf16.msra.mxu0 %v1987
    %2700 = vmatpush.bf16.msra.mxu0 %v1985
    %2701 = vmatmul.bf16.gmra.mxu0 %v125
    %v2702 = vpop.f32.mrf.mxu0
    %v2703 = vadd.f32 %v2690, %v2702
    %v2704 = vpop.f32.mrf.mxu0
    %2705 = vdwg.mxu0
    %2706 = vmatpush.bf16.msra.mxu0 %v2015
    %2707 = vmatpush.bf16.msra.mxu0 %v2013
    %2708 = vmatpush.bf16.msra.mxu0 %v2011
    %2709 = vmatpush.bf16.msra.mxu0 %v2009
    %2710 = vmatpush.bf16.msra.mxu0 %v2007
    %2711 = vmatpush.bf16.msra.mxu0 %v2005
    %2712 = vmatpush.bf16.msra.mxu0 %v2003
    %2713 = vmatpush.bf16.msra.mxu0 %v2001
    %2714 = vmatmul.bf16.gmra.mxu0 %v126
    %v2715 = vpop.f32.mrf.mxu0
    %v2716 = vadd.f32 %v2703, %v2715
    %v2717 = vpop.f32.mrf.mxu0
    %2718 = vdwg.mxu0
    %2719 = vmatpush.bf16.msra.mxu0 %v2031
    %2720 = vmatpush.bf16.msra.mxu0 %v2029
    %2721 = vmatpush.bf16.msra.mxu0 %v2027
    %2722 = vmatpush.bf16.msra.mxu0 %v2025
    %2723 = vmatpush.bf16.msra.mxu0 %v2023
    %2724 = vmatpush.bf16.msra.mxu0 %v2021
    %2725 = vmatpush.bf16.msra.mxu0 %v2019
    %2726 = vmatpush.bf16.msra.mxu0 %v2017
    %2727 = vmatmul.bf16.gmra.mxu0 %v127
    %v2728 = vpop.f32.mrf.mxu0
    %v2729 = vadd.f32 %v2716, %v2728
    %v2730 = vpop.f32.mrf.mxu0
    %2731 = vdwg.mxu0
    %2732 = vmatpush.bf16.msra.mxu0 %v2047
    %2733 = vmatpush.bf16.msra.mxu0 %v2045
    %2734 = vmatpush.bf16.msra.mxu0 %v2043
    %2735 = vmatpush.bf16.msra.mxu0 %v2041
    %2736 = vmatpush.bf16.msra.mxu0 %v2039
    %2737 = vmatpush.bf16.msra.mxu0 %v2037
    %2738 = vmatpush.bf16.msra.mxu0 %v2035
    %2739 = vmatpush.bf16.msra.mxu0 %v2033
    %2740 = vmatmul.bf16.gmra.mxu0 %v128
    %v2741 = vpop.f32.mrf.mxu0
    %v2742 = vadd.f32 %v2729, %v2741
    %v2743 = vpop.f32.mrf.mxu0
    %2744 = vdwg.mxu0
    %2745 = vmatpush.bf16.msra.mxu0 %v1680
    %2746 = vmatpush.bf16.msra.mxu0 %v1678
    %2747 = vmatpush.bf16.msra.mxu0 %v1676
    %2748 = vmatpush.bf16.msra.mxu0 %v1674
    %2749 = vmatpush.bf16.msra.mxu0 %v1672
    %2750 = vmatpush.bf16.msra.mxu0 %v1670
    %2751 = vmatpush.bf16.msra.mxu0 %v1668
    %2752 = vmatpush.bf16.msra.mxu0 %v1666
    %2753 = vmatmul.bf16.gmra.mxu0 %v105
    %v2754 = vpop.f32.mrf.mxu0
    %v2755 = vadd.f32 0.0, %v2754
    %v2756 = vpop.f32.mrf.mxu0
    %2757 = vdwg.mxu0
    %2758 = vmatpush.bf16.msra.mxu0 %v1696
    %2759 = vmatpush.bf16.msra.mxu0 %v1694
    %2760 = vmatpush.bf16.msra.mxu0 %v1692
    %2761 = vmatpush.bf16.msra.mxu0 %v1690
    %2762 = vmatpush.bf16.msra.mxu0 %v1688
    %2763 = vmatpush.bf16.msra.mxu0 %v1686
    %2764 = vmatpush.bf16.msra.mxu0 %v1684
    %2765 = vmatpush.bf16.msra.mxu0 %v1682
    %2766 = vmatmul.bf16.gmra.mxu0 %v106
    %v2767 = vpop.f32.mrf.mxu0
    %v2768 = vadd.f32 %v2755, %v2767
    %v2769 = vpop.f32.mrf.mxu0
    %2770 = vdwg.mxu0
    %2771 = vmatpush.bf16.msra.mxu0 %v1712
    %2772 = vmatpush.bf16.msra.mxu0 %v1710
    %2773 = vmatpush.bf16.msra.mxu0 %v1708
    %2774 = vmatpush.bf16.msra.mxu0 %v1706
    %2775 = vmatpush.bf16.msra.mxu0 %v1704
    %2776 = vmatpush.bf16.msra.mxu0 %v1702
    %2777 = vmatpush.bf16.msra.mxu0 %v1700
    %2778 = vmatpush.bf16.msra.mxu0 %v1698
    %2779 = vmatmul.bf16.gmra.mxu0 %v107
    %v2780 = vpop.f32.mrf.mxu0
    %v2781 = vadd.f32 %v2768, %v2780
    %v2782 = vpop.f32.mrf.mxu0
    %2783 = vdwg.mxu0
    %2784 = vmatpush.bf16.msra.mxu0 %v1728
    %2785 = vmatpush.bf16.msra.mxu0 %v1726
    %2786 = vmatpush.bf16.msra.mxu0 %v1724
    %2787 = vmatpush.bf16.msra.mxu0 %v1722
    %2788 = vmatpush.bf16.msra.mxu0 %v1720
    %2789 = vmatpush.bf16.msra.mxu0 %v1718
    %2790 = vmatpush.bf16.msra.mxu0 %v1716
    %2791 = vmatpush.bf16.msra.mxu0 %v1714
    %2792 = vmatmul.bf16.gmra.mxu0 %v108
    %v2793 = vpop.f32.mrf.mxu0
    %v2794 = vadd.f32 %v2781, %v2793
    %v2795 = vpop.f32.mrf.mxu0
    %2796 = vdwg.mxu0
    %2797 = vmatpush.bf16.msra.mxu0 %v1744
    %2798 = vmatpush.bf16.msra.mxu0 %v1742
    %2799 = vmatpush.bf16.msra.mxu0 %v1740
    %2800 = vmatpush.bf16.msra.mxu0 %v1738
    %2801 = vmatpush.bf16.msra.mxu0 %v1736
    %2802 = vmatpush.bf16.msra.mxu0 %v1734
    %2803 = vmatpush.bf16.msra.mxu0 %v1732
    %2804 = vmatpush.bf16.msra.mxu0 %v1730
    %2805 = vmatmul.bf16.gmra.mxu0 %v109
    %v2806 = vpop.f32.mrf.mxu0
    %v2807 = vadd.f32 %v2794, %v2806
    %v2808 = vpop.f32.mrf.mxu0
    %2809 = vdwg.mxu0
    %2810 = vmatpush.bf16.msra.mxu0 %v1760
    %2811 = vmatpush.bf16.msra.mxu0 %v1758
    %2812 = vmatpush.bf16.msra.mxu0 %v1756
    %2813 = vmatpush.bf16.msra.mxu0 %v1754
    %2814 = vmatpush.bf16.msra.mxu0 %v1752
    %2815 = vmatpush.bf16.msra.mxu0 %v1750
    %2816 = vmatpush.bf16.msra.mxu0 %v1748
    %2817 = vmatpush.bf16.msra.mxu0 %v1746
    %2818 = vmatmul.bf16.gmra.mxu0 %v110
    %v2819 = vpop.f32.mrf.mxu0
    %v2820 = vadd.f32 %v2807, %v2819
    %v2821 = vpop.f32.mrf.mxu0
    %2822 = vdwg.mxu0
    %2823 = vmatpush.bf16.msra.mxu0 %v1776
    %2824 = vmatpush.bf16.msra.mxu0 %v1774
    %2825 = vmatpush.bf16.msra.mxu0 %v1772
    %2826 = vmatpush.bf16.msra.mxu0 %v1770
    %2827 = vmatpush.bf16.msra.mxu0 %v1768
    %2828 = vmatpush.bf16.msra.mxu0 %v1766
    %2829 = vmatpush.bf16.msra.mxu0 %v1764
    %2830 = vmatpush.bf16.msra.mxu0 %v1762
    %2831 = vmatmul.bf16.gmra.mxu0 %v111
    %v2832 = vpop.f32.mrf.mxu0
    %v2833 = vadd.f32 %v2820, %v2832
    %v2834 = vpop.f32.mrf.mxu0
    %2835 = vdwg.mxu0
    %2836 = vmatpush.bf16.msra.mxu0 %v1792
    %2837 = vmatpush.bf16.msra.mxu0 %v1790
    %2838 = vmatpush.bf16.msra.mxu0 %v1788
    %2839 = vmatpush.bf16.msra.mxu0 %v1786
    %2840 = vmatpush.bf16.msra.mxu0 %v1784
    %2841 = vmatpush.bf16.msra.mxu0 %v1782
    %2842 = vmatpush.bf16.msra.mxu0 %v1780
    %2843 = vmatpush.bf16.msra.mxu0 %v1778
    %2844 = vmatmul.bf16.gmra.mxu0 %v112
    %v2845 = vpop.f32.mrf.mxu0
    %v2846 = vadd.f32 %v2833, %v2845
    %v2847 = vpop.f32.mrf.mxu0
    %2848 = vdwg.mxu0
    %2849 = vmatpush.bf16.msra.mxu0 %v1808
    %2850 = vmatpush.bf16.msra.mxu0 %v1806
    %2851 = vmatpush.bf16.msra.mxu0 %v1804
    %2852 = vmatpush.bf16.msra.mxu0 %v1802
    %2853 = vmatpush.bf16.msra.mxu0 %v1800
    %2854 = vmatpush.bf16.msra.mxu0 %v1798
    %2855 = vmatpush.bf16.msra.mxu0 %v1796
    %2856 = vmatpush.bf16.msra.mxu0 %v1794
    %2857 = vmatmul.bf16.gmra.mxu0 %v113
    %v2858 = vpop.f32.mrf.mxu0
    %v2859 = vadd.f32 %v2846, %v2858
    %v2860 = vpop.f32.mrf.mxu0
    %2861 = vdwg.mxu0
    %2862 = vmatpush.bf16.msra.mxu0 %v1824
    %2863 = vmatpush.bf16.msra.mxu0 %v1822
    %2864 = vmatpush.bf16.msra.mxu0 %v1820
    %2865 = vmatpush.bf16.msra.mxu0 %v1818
    %2866 = vmatpush.bf16.msra.mxu0 %v1816
    %2867 = vmatpush.bf16.msra.mxu0 %v1814
    %2868 = vmatpush.bf16.msra.mxu0 %v1812
    %2869 = vmatpush.bf16.msra.mxu0 %v1810
    %2870 = vmatmul.bf16.gmra.mxu0 %v114
    %v2871 = vpop.f32.mrf.mxu0
    %v2872 = vadd.f32 %v2859, %v2871
    %v2873 = vpop.f32.mrf.mxu0
    %2874 = vdwg.mxu0
    %2875 = vmatpush.bf16.msra.mxu0 %v1840
    %2876 = vmatpush.bf16.msra.mxu0 %v1838
    %2877 = vmatpush.bf16.msra.mxu0 %v1836
    %2878 = vmatpush.bf16.msra.mxu0 %v1834
    %2879 = vmatpush.bf16.msra.mxu0 %v1832
    %2880 = vmatpush.bf16.msra.mxu0 %v1830
    %2881 = vmatpush.bf16.msra.mxu0 %v1828
    %2882 = vmatpush.bf16.msra.mxu0 %v1826
    %2883 = vmatmul.bf16.gmra.mxu0 %v115
    %v2884 = vpop.f32.mrf.mxu0
    %v2885 = vadd.f32 %v2872, %v2884
    %v2886 = vpop.f32.mrf.mxu0
    %2887 = vdwg.mxu0
    %2888 = vmatpush.bf16.msra.mxu0 %v1856
    %2889 = vmatpush.bf16.msra.mxu0 %v1854
    %2890 = vmatpush.bf16.msra.mxu0 %v1852
    %2891 = vmatpush.bf16.msra.mxu0 %v1850
    %2892 = vmatpush.bf16.msra.mxu0 %v1848
    %2893 = vmatpush.bf16.msra.mxu0 %v1846
    %2894 = vmatpush.bf16.msra.mxu0 %v1844
    %2895 = vmatpush.bf16.msra.mxu0 %v1842
    %2896 = vmatmul.bf16.gmra.mxu0 %v116
    %v2897 = vpop.f32.mrf.mxu0
    %v2898 = vadd.f32 %v2885, %v2897
    %v2899 = vpop.f32.mrf.mxu0
    %2900 = vdwg.mxu0
    %2901 = vmatpush.bf16.msra.mxu0 %v1872
    %2902 = vmatpush.bf16.msra.mxu0 %v1870
    %2903 = vmatpush.bf16.msra.mxu0 %v1868
    %2904 = vmatpush.bf16.msra.mxu0 %v1866
    %2905 = vmatpush.bf16.msra.mxu0 %v1864
    %2906 = vmatpush.bf16.msra.mxu0 %v1862
    %2907 = vmatpush.bf16.msra.mxu0 %v1860
    %2908 = vmatpush.bf16.msra.mxu0 %v1858
    %2909 = vmatmul.bf16.gmra.mxu0 %v117
    %v2910 = vpop.f32.mrf.mxu0
    %v2911 = vadd.f32 %v2898, %v2910
    %v2912 = vpop.f32.mrf.mxu0
    %2913 = vdwg.mxu0
    %2914 = vmatpush.bf16.msra.mxu0 %v1888
    %2915 = vmatpush.bf16.msra.mxu0 %v1886
    %2916 = vmatpush.bf16.msra.mxu0 %v1884
    %2917 = vmatpush.bf16.msra.mxu0 %v1882
    %2918 = vmatpush.bf16.msra.mxu0 %v1880
    %2919 = vmatpush.bf16.msra.mxu0 %v1878
    %2920 = vmatpush.bf16.msra.mxu0 %v1876
    %2921 = vmatpush.bf16.msra.mxu0 %v1874
    %2922 = vmatmul.bf16.gmra.mxu0 %v118
    %v2923 = vpop.f32.mrf.mxu0
    %v2924 = vadd.f32 %v2911, %v2923
    %v2925 = vpop.f32.mrf.mxu0
    %2926 = vdwg.mxu0
    %2927 = vmatpush.bf16.msra.mxu0 %v1904
    %2928 = vmatpush.bf16.msra.mxu0 %v1902
    %2929 = vmatpush.bf16.msra.mxu0 %v1900
    %2930 = vmatpush.bf16.msra.mxu0 %v1898
    %2931 = vmatpush.bf16.msra.mxu0 %v1896
    %2932 = vmatpush.bf16.msra.mxu0 %v1894
    %2933 = vmatpush.bf16.msra.mxu0 %v1892
    %2934 = vmatpush.bf16.msra.mxu0 %v1890
    %2935 = vmatmul.bf16.gmra.mxu0 %v119
    %v2936 = vpop.f32.mrf.mxu0
    %v2937 = vadd.f32 %v2924, %v2936
    %v2938 = vpop.f32.mrf.mxu0
    %2939 = vdwg.mxu0
    %2940 = vmatpush.bf16.msra.mxu0 %v1920
    %2941 = vmatpush.bf16.msra.mxu0 %v1918
    %2942 = vmatpush.bf16.msra.mxu0 %v1916
    %2943 = vmatpush.bf16.msra.mxu0 %v1914
    %2944 = vmatpush.bf16.msra.mxu0 %v1912
    %2945 = vmatpush.bf16.msra.mxu0 %v1910
    %2946 = vmatpush.bf16.msra.mxu0 %v1908
    %2947 = vmatpush.bf16.msra.mxu0 %v1906
    %2948 = vmatmul.bf16.gmra.mxu0 %v120
    %v2949 = vpop.f32.mrf.mxu0
    %v2950 = vadd.f32 %v2937, %v2949
    %v2951 = vpop.f32.mrf.mxu0
    %2952 = vdwg.mxu0
    %2953 = vmatpush.bf16.msra.mxu0 %v1936
    %2954 = vmatpush.bf16.msra.mxu0 %v1934
    %2955 = vmatpush.bf16.msra.mxu0 %v1932
    %2956 = vmatpush.bf16.msra.mxu0 %v1930
    %2957 = vmatpush.bf16.msra.mxu0 %v1928
    %2958 = vmatpush.bf16.msra.mxu0 %v1926
    %2959 = vmatpush.bf16.msra.mxu0 %v1924
    %2960 = vmatpush.bf16.msra.mxu0 %v1922
    %2961 = vmatmul.bf16.gmra.mxu0 %v121
    %v2962 = vpop.f32.mrf.mxu0
    %v2963 = vadd.f32 %v2950, %v2962
    %v2964 = vpop.f32.mrf.mxu0
    %2965 = vdwg.mxu0
    %2966 = vmatpush.bf16.msra.mxu0 %v1952
    %2967 = vmatpush.bf16.msra.mxu0 %v1950
    %2968 = vmatpush.bf16.msra.mxu0 %v1948
    %2969 = vmatpush.bf16.msra.mxu0 %v1946
    %2970 = vmatpush.bf16.msra.mxu0 %v1944
    %2971 = vmatpush.bf16.msra.mxu0 %v1942
    %2972 = vmatpush.bf16.msra.mxu0 %v1940
    %2973 = vmatpush.bf16.msra.mxu0 %v1938
    %2974 = vmatmul.bf16.gmra.mxu0 %v122
    %v2975 = vpop.f32.mrf.mxu0
    %v2976 = vadd.f32 %v2963, %v2975
    %v2977 = vpop.f32.mrf.mxu0
    %2978 = vdwg.mxu0
    %2979 = vmatpush.bf16.msra.mxu0 %v1968
    %2980 = vmatpush.bf16.msra.mxu0 %v1966
    %2981 = vmatpush.bf16.msra.mxu0 %v1964
    %2982 = vmatpush.bf16.msra.mxu0 %v1962
    %2983 = vmatpush.bf16.msra.mxu0 %v1960
    %2984 = vmatpush.bf16.msra.mxu0 %v1958
    %2985 = vmatpush.bf16.msra.mxu0 %v1956
    %2986 = vmatpush.bf16.msra.mxu0 %v1954
    %2987 = vmatmul.bf16.gmra.mxu0 %v123
    %v2988 = vpop.f32.mrf.mxu0
    %v2989 = vadd.f32 %v2976, %v2988
    %v2990 = vpop.f32.mrf.mxu0
    %2991 = vdwg.mxu0
    %2992 = vmatpush.bf16.msra.mxu0 %v1984
    %2993 = vmatpush.bf16.msra.mxu0 %v1982
    %2994 = vmatpush.bf16.msra.mxu0 %v1980
    %2995 = vmatpush.bf16.msra.mxu0 %v1978
    %2996 = vmatpush.bf16.msra.mxu0 %v1976
    %2997 = vmatpush.bf16.msra.mxu0 %v1974
    %2998 = vmatpush.bf16.msra.mxu0 %v1972
    %2999 = vmatpush.bf16.msra.mxu0 %v1970
    %3000 = vmatmul.bf16.gmra.mxu0 %v124
    %v3001 = vpop.f32.mrf.mxu0
    %v3002 = vadd.f32 %v2989, %v3001
    %v3003 = vpop.f32.mrf.mxu0
    %3004 = vdwg.mxu0
    %3005 = vmatpush.bf16.msra.mxu0 %v2000
    %3006 = vmatpush.bf16.msra.mxu0 %v1998
    %3007 = vmatpush.bf16.msra.mxu0 %v1996
    %3008 = vmatpush.bf16.msra.mxu0 %v1994
    %3009 = vmatpush.bf16.msra.mxu0 %v1992
    %3010 = vmatpush.bf16.msra.mxu0 %v1990
    %3011 = vmatpush.bf16.msra.mxu0 %v1988
    %3012 = vmatpush.bf16.msra.mxu0 %v1986
    %3013 = vmatmul.bf16.gmra.mxu0 %v125
    %v3014 = vpop.f32.mrf.mxu0
    %v3015 = vadd.f32 %v3002, %v3014
    %v3016 = vpop.f32.mrf.mxu0
    %3017 = vdwg.mxu0
    %3018 = vmatpush.bf16.msra.mxu0 %v2016
    %3019 = vmatpush.bf16.msra.mxu0 %v2014
    %3020 = vmatpush.bf16.msra.mxu0 %v2012
    %3021 = vmatpush.bf16.msra.mxu0 %v2010
    %3022 = vmatpush.bf16.msra.mxu0 %v2008
    %3023 = vmatpush.bf16.msra.mxu0 %v2006
    %3024 = vmatpush.bf16.msra.mxu0 %v2004
    %3025 = vmatpush.bf16.msra.mxu0 %v2002
    %3026 = vmatmul.bf16.gmra.mxu0 %v126
    %v3027 = vpop.f32.mrf.mxu0
    %v3028 = vadd.f32 %v3015, %v3027
    %v3029 = vpop.f32.mrf.mxu0
    %3030 = vdwg.mxu0
    %3031 = vmatpush.bf16.msra.mxu0 %v2032
    %3032 = vmatpush.bf16.msra.mxu0 %v2030
    %3033 = vmatpush.bf16.msra.mxu0 %v2028
    %3034 = vmatpush.bf16.msra.mxu0 %v2026
    %3035 = vmatpush.bf16.msra.mxu0 %v2024
    %3036 = vmatpush.bf16.msra.mxu0 %v2022
    %3037 = vmatpush.bf16.msra.mxu0 %v2020
    %3038 = vmatpush.bf16.msra.mxu0 %v2018
    %3039 = vmatmul.bf16.gmra.mxu0 %v127
    %v3040 = vpop.f32.mrf.mxu0
    %v3041 = vadd.f32 %v3028, %v3040
    %v3042 = vpop.f32.mrf.mxu0
    %3043 = vdwg.mxu0
    %3044 = vmatpush.bf16.msra.mxu0 %v2048
    %3045 = vmatpush.bf16.msra.mxu0 %v2046
    %3046 = vmatpush.bf16.msra.mxu0 %v2044
    %3047 = vmatpush.bf16.msra.mxu0 %v2042
    %3048 = vmatpush.bf16.msra.mxu0 %v2040
    %3049 = vmatpush.bf16.msra.mxu0 %v2038
    %3050 = vmatpush.bf16.msra.mxu0 %v2036
    %3051 = vmatpush.bf16.msra.mxu0 %v2034
    %3052 = vmatmul.bf16.gmra.mxu0 %v128
    %v3053 = vpop.f32.mrf.mxu0
    %v3054 = vadd.f32 %v3041, %v3053
    %v3055 = vpop.f32.mrf.mxu0
    %3056 = vdwg.mxu0
    %v3057 = vpack.c.bf16 %v2742, %v2742
    %v3058 = vpack.c.bf16 %v3054, %v3054
    %v3059 = vld [vmem:[#allocation4] sm:$0xff]
    %v3060 = vld [vmem:[#allocation4 + $0x8] sm:$0xff]
    %v3061 = vld [vmem:[#allocation4 + $0x10] sm:$0xff]
    %v3062 = vld [vmem:[#allocation4 + $0x18] sm:$0xff]
    %v3063 = vld [vmem:[#allocation4 + $0x20] sm:$0xff]
    %v3064 = vld [vmem:[#allocation4 + $0x28] sm:$0xff]
    %v3065 = vld [vmem:[#allocation4 + $0x30] sm:$0xff]
    %v3066 = vld [vmem:[#allocation4 + $0x38] sm:$0xff]
    %v3067 = vld [vmem:[#allocation4 + $0x40] sm:$0xff]
    %v3068 = vld [vmem:[#allocation4 + $0x48] sm:$0xff]
    %v3069 = vld [vmem:[#allocation4 + $0x50] sm:$0xff]
    %v3070 = vld [vmem:[#allocation4 + $0x58] sm:$0xff]
    %v3071 = vld [vmem:[#allocation4 + $0x60] sm:$0xff]
    %v3072 = vld [vmem:[#allocation4 + $0x68] sm:$0xff]
    %v3073 = vld [vmem:[#allocation4 + $0x70] sm:$0xff]
    %v3074 = vld [vmem:[#allocation4 + $0x78] sm:$0xff]
    %v3075 = vld [vmem:[#allocation4 + $0x80] sm:$0xff]
    %v3076 = vld [vmem:[#allocation4 + $0x88] sm:$0xff]
    %v3077 = vld [vmem:[#allocation4 + $0x90] sm:$0xff]
    %v3078 = vld [vmem:[#allocation4 + $0x98] sm:$0xff]
    %v3079 = vld [vmem:[#allocation4 + $0xa0] sm:$0xff]
    %v3080 = vld [vmem:[#allocation4 + $0xa8] sm:$0xff]
    %v3081 = vld [vmem:[#allocation4 + $0xb0] sm:$0xff]
    %v3082 = vld [vmem:[#allocation4 + $0xb8] sm:$0xff]
    %v3083 = vld [vmem:[#allocation4 + $0xc0] sm:$0xff]
    %v3084 = vld [vmem:[#allocation4 + $0xc8] sm:$0xff]
    %v3085 = vld [vmem:[#allocation4 + $0xd0] sm:$0xff]
    %v3086 = vld [vmem:[#allocation4 + $0xd8] sm:$0xff]
    %v3087 = vld [vmem:[#allocation4 + $0xe0] sm:$0xff]
    %v3088 = vld [vmem:[#allocation4 + $0xe8] sm:$0xff]
    %v3089 = vld [vmem:[#allocation4 + $0xf0] sm:$0xff]
    %v3090 = vld [vmem:[#allocation4 + $0xf8] sm:$0xff]
    %v3091 = vld [vmem:[#allocation4 + $0x100] sm:$0xff]
    %v3092 = vld [vmem:[#allocation4 + $0x108] sm:$0xff]
    %v3093 = vld [vmem:[#allocation4 + $0x110] sm:$0xff]
    %v3094 = vld [vmem:[#allocation4 + $0x118] sm:$0xff]
    %v3095 = vld [vmem:[#allocation4 + $0x120] sm:$0xff]
    %v3096 = vld [vmem:[#allocation4 + $0x128] sm:$0xff]
    %v3097 = vld [vmem:[#allocation4 + $0x130] sm:$0xff]
    %v3098 = vld [vmem:[#allocation4 + $0x138] sm:$0xff]
    %v3099 = vld [vmem:[#allocation4 + $0x140] sm:$0xff]
    %v3100 = vld [vmem:[#allocation4 + $0x148] sm:$0xff]
    %v3101 = vld [vmem:[#allocation4 + $0x150] sm:$0xff]
    %v3102 = vld [vmem:[#allocation4 + $0x158] sm:$0xff]
    %v3103 = vld [vmem:[#allocation4 + $0x160] sm:$0xff]
    %v3104 = vld [vmem:[#allocation4 + $0x168] sm:$0xff]
    %v3105 = vld [vmem:[#allocation4 + $0x170] sm:$0xff]
    %v3106 = vld [vmem:[#allocation4 + $0x178] sm:$0xff]
    %v3107 = vld [vmem:[#allocation4 + $0x180] sm:$0xff]
    %v3108 = vld [vmem:[#allocation4 + $0x188] sm:$0xff]
    %v3109 = vld [vmem:[#allocation4 + $0x190] sm:$0xff]
    %v3110 = vld [vmem:[#allocation4 + $0x198] sm:$0xff]
    %v3111 = vld [vmem:[#allocation4 + $0x1a0] sm:$0xff]
    %v3112 = vld [vmem:[#allocation4 + $0x1a8] sm:$0xff]
    %v3113 = vld [vmem:[#allocation4 + $0x1b0] sm:$0xff]
    %v3114 = vld [vmem:[#allocation4 + $0x1b8] sm:$0xff]
    %v3115 = vld [vmem:[#allocation4 + $0x1c0] sm:$0xff]
    %v3116 = vld [vmem:[#allocation4 + $0x1c8] sm:$0xff]
    %v3117 = vld [vmem:[#allocation4 + $0x1d0] sm:$0xff]
    %v3118 = vld [vmem:[#allocation4 + $0x1d8] sm:$0xff]
    %v3119 = vld [vmem:[#allocation4 + $0x1e0] sm:$0xff]
    %v3120 = vld [vmem:[#allocation4 + $0x1e8] sm:$0xff]
    %v3121 = vld [vmem:[#allocation4 + $0x1f0] sm:$0xff]
    %v3122 = vld [vmem:[#allocation4 + $0x1f8] sm:$0xff]
    %v3187 = vunpack.c.l.b16 %v3059
    %v3188 = vunpack.c.h.b16 %v3059
    %v3189 = vunpack.c.l.b16 %v3060
    %v3190 = vunpack.c.h.b16 %v3060
    %v3191 = vunpack.c.l.b16 %v3061
    %v3192 = vunpack.c.h.b16 %v3061
    %v3193 = vunpack.c.l.b16 %v3062
    %v3194 = vunpack.c.h.b16 %v3062
    %v3195 = vunpack.c.l.b16 %v3063
    %v3196 = vunpack.c.h.b16 %v3063
    %v3197 = vunpack.c.l.b16 %v3064
    %v3198 = vunpack.c.h.b16 %v3064
    %v3199 = vunpack.c.l.b16 %v3065
    %v3200 = vunpack.c.h.b16 %v3065
    %v3201 = vunpack.c.l.b16 %v3066
    %v3202 = vunpack.c.h.b16 %v3066
    %v3203 = vunpack.c.l.b16 %v3067
    %v3204 = vunpack.c.h.b16 %v3067
    %v3205 = vunpack.c.l.b16 %v3068
    %v3206 = vunpack.c.h.b16 %v3068
    %v3207 = vunpack.c.l.b16 %v3069
    %v3208 = vunpack.c.h.b16 %v3069
    %v3209 = vunpack.c.l.b16 %v3070
    %v3210 = vunpack.c.h.b16 %v3070
    %v3211 = vunpack.c.l.b16 %v3071
    %v3212 = vunpack.c.h.b16 %v3071
    %v3213 = vunpack.c.l.b16 %v3072
    %v3214 = vunpack.c.h.b16 %v3072
    %v3215 = vunpack.c.l.b16 %v3073
    %v3216 = vunpack.c.h.b16 %v3073
    %v3217 = vunpack.c.l.b16 %v3074
    %v3218 = vunpack.c.h.b16 %v3074
    %v3219 = vunpack.c.l.b16 %v3075
    %v3220 = vunpack.c.h.b16 %v3075
    %v3221 = vunpack.c.l.b16 %v3076
    %v3222 = vunpack.c.h.b16 %v3076
    %v3223 = vunpack.c.l.b16 %v3077
    %v3224 = vunpack.c.h.b16 %v3077
    %v3225 = vunpack.c.l.b16 %v3078
    %v3226 = vunpack.c.h.b16 %v3078
    %v3227 = vunpack.c.l.b16 %v3079
    %v3228 = vunpack.c.h.b16 %v3079
    %v3229 = vunpack.c.l.b16 %v3080
    %v3230 = vunpack.c.h.b16 %v3080
    %v3231 = vunpack.c.l.b16 %v3081
    %v3232 = vunpack.c.h.b16 %v3081
    %v3233 = vunpack.c.l.b16 %v3082
    %v3234 = vunpack.c.h.b16 %v3082
    %v3235 = vunpack.c.l.b16 %v3083
    %v3236 = vunpack.c.h.b16 %v3083
    %v3237 = vunpack.c.l.b16 %v3084
    %v3238 = vunpack.c.h.b16 %v3084
    %v3239 = vunpack.c.l.b16 %v3085
    %v3240 = vunpack.c.h.b16 %v3085
    %v3241 = vunpack.c.l.b16 %v3086
    %v3242 = vunpack.c.h.b16 %v3086
    %v3243 = vunpack.c.l.b16 %v3087
    %v3244 = vunpack.c.h.b16 %v3087
    %v3245 = vunpack.c.l.b16 %v3088
    %v3246 = vunpack.c.h.b16 %v3088
    %v3247 = vunpack.c.l.b16 %v3089
    %v3248 = vunpack.c.h.b16 %v3089
    %v3249 = vunpack.c.l.b16 %v3090
    %v3250 = vunpack.c.h.b16 %v3090
    %v3251 = vunpack.c.l.b16 %v3091
    %v3252 = vunpack.c.h.b16 %v3091
    %v3253 = vunpack.c.l.b16 %v3092
    %v3254 = vunpack.c.h.b16 %v3092
    %v3255 = vunpack.c.l.b16 %v3093
    %v3256 = vunpack.c.h.b16 %v3093
    %v3257 = vunpack.c.l.b16 %v3094
    %v3258 = vunpack.c.h.b16 %v3094
    %v3259 = vunpack.c.l.b16 %v3095
    %v3260 = vunpack.c.h.b16 %v3095
    %v3261 = vunpack.c.l.b16 %v3096
    %v3262 = vunpack.c.h.b16 %v3096
    %v3263 = vunpack.c.l.b16 %v3097
    %v3264 = vunpack.c.h.b16 %v3097
    %v3265 = vunpack.c.l.b16 %v3098
    %v3266 = vunpack.c.h.b16 %v3098
    %v3267 = vunpack.c.l.b16 %v3099
    %v3268 = vunpack.c.h.b16 %v3099
    %v3269 = vunpack.c.l.b16 %v3100
    %v3270 = vunpack.c.h.b16 %v3100
    %v3271 = vunpack.c.l.b16 %v3101
    %v3272 = vunpack.c.h.b16 %v3101
    %v3273 = vunpack.c.l.b16 %v3102
    %v3274 = vunpack.c.h.b16 %v3102
    %v3275 = vunpack.c.l.b16 %v3103
    %v3276 = vunpack.c.h.b16 %v3103
    %v3277 = vunpack.c.l.b16 %v3104
    %v3278 = vunpack.c.h.b16 %v3104
    %v3279 = vunpack.c.l.b16 %v3105
    %v3280 = vunpack.c.h.b16 %v3105
    %v3281 = vunpack.c.l.b16 %v3106
    %v3282 = vunpack.c.h.b16 %v3106
    %v3283 = vunpack.c.l.b16 %v3107
    %v3284 = vunpack.c.h.b16 %v3107
    %v3285 = vunpack.c.l.b16 %v3108
    %v3286 = vunpack.c.h.b16 %v3108
    %v3287 = vunpack.c.l.b16 %v3109
    %v3288 = vunpack.c.h.b16 %v3109
    %v3289 = vunpack.c.l.b16 %v3110
    %v3290 = vunpack.c.h.b16 %v3110
    %v3291 = vunpack.c.l.b16 %v3111
    %v3292 = vunpack.c.h.b16 %v3111
    %v3293 = vunpack.c.l.b16 %v3112
    %v3294 = vunpack.c.h.b16 %v3112
    %v3295 = vunpack.c.l.b16 %v3113
    %v3296 = vunpack.c.h.b16 %v3113
    %v3297 = vunpack.c.l.b16 %v3114
    %v3298 = vunpack.c.h.b16 %v3114
    %v3299 = vunpack.c.l.b16 %v3115
    %v3300 = vunpack.c.h.b16 %v3115
    %v3301 = vunpack.c.l.b16 %v3116
    %v3302 = vunpack.c.h.b16 %v3116
    %v3303 = vunpack.c.l.b16 %v3117
    %v3304 = vunpack.c.h.b16 %v3117
    %v3305 = vunpack.c.l.b16 %v3118
    %v3306 = vunpack.c.h.b16 %v3118
    %v3307 = vunpack.c.l.b16 %v3119
    %v3308 = vunpack.c.h.b16 %v3119
    %v3309 = vunpack.c.l.b16 %v3120
    %v3310 = vunpack.c.h.b16 %v3120
    %v3311 = vunpack.c.l.b16 %v3121
    %v3312 = vunpack.c.h.b16 %v3121
    %v3313 = vunpack.c.l.b16 %v3122
    %v3314 = vunpack.c.h.b16 %v3122
    %v3315 = vpack.c.b16 %v3191, %v3187
    %v3316 = vpack.c.b16 %v3192, %v3188
    %v3317 = vpack.c.b16 %v3193, %v3189
    %v3318 = vpack.c.b16 %v3194, %v3190
    %v3319 = vpack.c.b16 %v3199, %v3195
    %v3320 = vpack.c.b16 %v3200, %v3196
    %v3321 = vpack.c.b16 %v3201, %v3197
    %v3322 = vpack.c.b16 %v3202, %v3198
    %v3323 = vpack.c.b16 %v3207, %v3203
    %v3324 = vpack.c.b16 %v3208, %v3204
    %v3325 = vpack.c.b16 %v3209, %v3205
    %v3326 = vpack.c.b16 %v3210, %v3206
    %v3327 = vpack.c.b16 %v3215, %v3211
    %v3328 = vpack.c.b16 %v3216, %v3212
    %v3329 = vpack.c.b16 %v3217, %v3213
    %v3330 = vpack.c.b16 %v3218, %v3214
    %v3331 = vpack.c.b16 %v3223, %v3219
    %v3332 = vpack.c.b16 %v3224, %v3220
    %v3333 = vpack.c.b16 %v3225, %v3221
    %v3334 = vpack.c.b16 %v3226, %v3222
    %v3335 = vpack.c.b16 %v3231, %v3227
    %v3336 = vpack.c.b16 %v3232, %v3228
    %v3337 = vpack.c.b16 %v3233, %v3229
    %v3338 = vpack.c.b16 %v3234, %v3230
    %v3339 = vpack.c.b16 %v3239, %v3235
    %v3340 = vpack.c.b16 %v3240, %v3236
    %v3341 = vpack.c.b16 %v3241, %v3237
    %v3342 = vpack.c.b16 %v3242, %v3238
    %v3343 = vpack.c.b16 %v3247, %v3243
    %v3344 = vpack.c.b16 %v3248, %v3244
    %v3345 = vpack.c.b16 %v3249, %v3245
    %v3346 = vpack.c.b16 %v3250, %v3246
    %v3347 = vpack.c.b16 %v3255, %v3251
    %v3348 = vpack.c.b16 %v3256, %v3252
    %v3349 = vpack.c.b16 %v3257, %v3253
    %v3350 = vpack.c.b16 %v3258, %v3254
    %v3351 = vpack.c.b16 %v3263, %v3259
    %v3352 = vpack.c.b16 %v3264, %v3260
    %v3353 = vpack.c.b16 %v3265, %v3261
    %v3354 = vpack.c.b16 %v3266, %v3262
    %v3355 = vpack.c.b16 %v3271, %v3267
    %v3356 = vpack.c.b16 %v3272, %v3268
    %v3357 = vpack.c.b16 %v3273, %v3269
    %v3358 = vpack.c.b16 %v3274, %v3270
    %v3359 = vpack.c.b16 %v3279, %v3275
    %v3360 = vpack.c.b16 %v3280, %v3276
    %v3361 = vpack.c.b16 %v3281, %v3277
    %v3362 = vpack.c.b16 %v3282, %v3278
    %v3363 = vpack.c.b16 %v3287, %v3283
    %v3364 = vpack.c.b16 %v3288, %v3284
    %v3365 = vpack.c.b16 %v3289, %v3285
    %v3366 = vpack.c.b16 %v3290, %v3286
    %v3367 = vpack.c.b16 %v3295, %v3291
    %v3368 = vpack.c.b16 %v3296, %v3292
    %v3369 = vpack.c.b16 %v3297, %v3293
    %v3370 = vpack.c.b16 %v3298, %v3294
    %v3371 = vpack.c.b16 %v3303, %v3299
    %v3372 = vpack.c.b16 %v3304, %v3300
    %v3373 = vpack.c.b16 %v3305, %v3301
    %v3374 = vpack.c.b16 %v3306, %v3302
    %v3375 = vpack.c.b16 %v3311, %v3307
    %v3376 = vpack.c.b16 %v3312, %v3308
    %v3377 = vpack.c.b16 %v3313, %v3309
    %v3378 = vpack.c.b16 %v3314, %v3310
    %3443 = vmatpush.bf16.msra.mxu0 %v3343
    %3444 = vmatpush.bf16.msra.mxu0 %v3339
    %3445 = vmatpush.bf16.msra.mxu0 %v3335
    %3446 = vmatpush.bf16.msra.mxu0 %v3331
    %3447 = vmatpush.bf16.msra.mxu0 %v3327
    %3448 = vmatpush.bf16.msra.mxu0 %v3323
    %3449 = vmatpush.bf16.msra.mxu0 %v3319
    %3450 = vmatpush.bf16.msra.mxu0 %v3315
    %3451 = vmatmul.bf16.gmra.mxu0 %v3057
    %v3452 = vpop.f32.mrf.mxu0
    %v3453 = vadd.f32 0.0, %v3452
    %v3454 = vpop.f32.mrf.mxu0
    %3455 = vdwg.mxu0
    %3456 = vmatpush.bf16.msra.mxu0 %v3375
    %3457 = vmatpush.bf16.msra.mxu0 %v3371
    %3458 = vmatpush.bf16.msra.mxu0 %v3367
    %3459 = vmatpush.bf16.msra.mxu0 %v3363
    %3460 = vmatpush.bf16.msra.mxu0 %v3359
    %3461 = vmatpush.bf16.msra.mxu0 %v3355
    %3462 = vmatpush.bf16.msra.mxu0 %v3351
    %3463 = vmatpush.bf16.msra.mxu0 %v3347
    %3464 = vmatmul.bf16.gmra.mxu0 %v3058
    %v3465 = vpop.f32.mrf.mxu0
    %v3466 = vadd.f32 %v3453, %v3465
    %v3467 = vpop.f32.mrf.mxu0
    %3468 = vdwg.mxu0
    %3469 = vmatpush.bf16.msra.mxu0 %v3344
    %3470 = vmatpush.bf16.msra.mxu0 %v3340
    %3471 = vmatpush.bf16.msra.mxu0 %v3336
    %3472 = vmatpush.bf16.msra.mxu0 %v3332
    %3473 = vmatpush.bf16.msra.mxu0 %v3328
    %3474 = vmatpush.bf16.msra.mxu0 %v3324
    %3475 = vmatpush.bf16.msra.mxu0 %v3320
    %3476 = vmatpush.bf16.msra.mxu0 %v3316
    %3477 = vmatmul.bf16.gmra.mxu0 %v3057
    %v3478 = vpop.f32.mrf.mxu0
    %v3479 = vadd.f32 0.0, %v3478
    %v3480 = vpop.f32.mrf.mxu0
    %3481 = vdwg.mxu0
    %3482 = vmatpush.bf16.msra.mxu0 %v3376
    %3483 = vmatpush.bf16.msra.mxu0 %v3372
    %3484 = vmatpush.bf16.msra.mxu0 %v3368
    %3485 = vmatpush.bf16.msra.mxu0 %v3364
    %3486 = vmatpush.bf16.msra.mxu0 %v3360
    %3487 = vmatpush.bf16.msra.mxu0 %v3356
    %3488 = vmatpush.bf16.msra.mxu0 %v3352
    %3489 = vmatpush.bf16.msra.mxu0 %v3348
    %3490 = vmatmul.bf16.gmra.mxu0 %v3058
    %v3491 = vpop.f32.mrf.mxu0
    %v3492 = vadd.f32 %v3479, %v3491
    %v3493 = vpop.f32.mrf.mxu0
    %3494 = vdwg.mxu0
    %3495 = vmatpush.bf16.msra.mxu0 %v3345
    %3496 = vmatpush.bf16.msra.mxu0 %v3341
    %3497 = vmatpush.bf16.msra.mxu0 %v3337
    %3498 = vmatpush.bf16.msra.mxu0 %v3333
    %3499 = vmatpush.bf16.msra.mxu0 %v3329
    %3500 = vmatpush.bf16.msra.mxu0 %v3325
    %3501 = vmatpush.bf16.msra.mxu0 %v3321
    %3502 = vmatpush.bf16.msra.mxu0 %v3317
    %3503 = vmatmul.bf16.gmra.mxu0 %v3057
    %v3504 = vpop.f32.mrf.mxu0
    %v3505 = vadd.f32 0.0, %v3504
    %v3506 = vpop.f32.mrf.mxu0
    %3507 = vdwg.mxu0
    %3508 = vmatpush.bf16.msra.mxu0 %v3377
    %3509 = vmatpush.bf16.msra.mxu0 %v3373
    %3510 = vmatpush.bf16.msra.mxu0 %v3369
    %3511 = vmatpush.bf16.msra.mxu0 %v3365
    %3512 = vmatpush.bf16.msra.mxu0 %v3361
    %3513 = vmatpush.bf16.msra.mxu0 %v3357
    %3514 = vmatpush.bf16.msra.mxu0 %v3353
    %3515 = vmatpush.bf16.msra.mxu0 %v3349
    %3516 = vmatmul.bf16.gmra.mxu0 %v3058
    %v3517 = vpop.f32.mrf.mxu0
    %v3518 = vadd.f32 %v3505, %v3517
    %v3519 = vpop.f32.mrf.mxu0
    %3520 = vdwg.mxu0
    %3521 = vmatpush.bf16.msra.mxu0 %v3346
    %3522 = vmatpush.bf16.msra.mxu0 %v3342
    %3523 = vmatpush.bf16.msra.mxu0 %v3338
    %3524 = vmatpush.bf16.msra.mxu0 %v3334
    %3525 = vmatpush.bf16.msra.mxu0 %v3330
    %3526 = vmatpush.bf16.msra.mxu0 %v3326
    %3527 = vmatpush.bf16.msra.mxu0 %v3322
    %3528 = vmatpush.bf16.msra.mxu0 %v3318
    %3529 = vmatmul.bf16.gmra.mxu0 %v3057
    %v3530 = vpop.f32.mrf.mxu0
    %v3531 = vadd.f32 0.0, %v3530
    %v3532 = vpop.f32.mrf.mxu0
    %3533 = vdwg.mxu0
    %3534 = vmatpush.bf16.msra.mxu0 %v3378
    %3535 = vmatpush.bf16.msra.mxu0 %v3374
    %3536 = vmatpush.bf16.msra.mxu0 %v3370
    %3537 = vmatpush.bf16.msra.mxu0 %v3366
    %3538 = vmatpush.bf16.msra.mxu0 %v3362
    %3539 = vmatpush.bf16.msra.mxu0 %v3358
    %3540 = vmatpush.bf16.msra.mxu0 %v3354
    %3541 = vmatpush.bf16.msra.mxu0 %v3350
    %3542 = vmatmul.bf16.gmra.mxu0 %v3058
    %v3543 = vpop.f32.mrf.mxu0
    %v3544 = vadd.f32 %v3531, %v3543
    %v3545 = vpop.f32.mrf.mxu0
    %3546 = vdwg.mxu0
    %v3547 = vmul.f32 %v3466, %v3466
    %v3548 = vmul.f32 %v3492, %v3492
    %v3549 = vmul.f32 %v3518, %v3518
    %v3550 = vmul.f32 %v3544, %v3544
    %v3551 = vadd.f32 %v3547, %v3548
    %v3552 = vadd.f32 %v3551, %v3549
    %v3553 = vadd.f32 %v3552, %v3550
    %3554 = vadd.xlane.f32.xlu0 %v3553
    %v3555 = vpop.xlane.xlu0 %3554
    %v3556 = vmax.f32 %v3555, 1e-12
    %v3557 = vrsqrt.pop %v3556
    %v3558 = vmul.f32 %v3557, %v3556
    %v3559 = vmul.f32 %v3558, %v3557
    %v3560 = vmul.f32 0.5, %v3559
    %v3561 = vsub.f32 1.5, %v3560
    %v3562 = vmul.f32 %v3557, %v3561
    %vm3563 = vweird.f32 %v3556
    %vm3564 = vweird.f32 %v3557
    %vm3565 = vmor %vm3563, %vm3564
    %v3566 = vsel %vm3565, %v3557, %v3562
    %v3567 = vmul.f32 %v3466, %v3566
    %v3568 = vmul.f32 %v3492, %v3566
    %v3569 = vmul.f32 %v3518, %v3566
    %v3570 = vmul.f32 %v3544, %v3566
    %v3571 = vpack.c.bf16 %v3567, %v3567
    %v3572 = vpack.c.bf16 %v3568, %v3568
    %v3573 = vpack.c.bf16 %v3569, %v3569
    %v3574 = vpack.c.bf16 %v3570, %v3570
    %v3575 = vld [vmem:[#allocation6] sm:$0xf]
    %v3576 = vld [vmem:[#allocation6 + $0x4] sm:$0xf]
    %v3577 = vld [vmem:[#allocation6 + $0x8] sm:$0xf]
    %v3578 = vld [vmem:[#allocation6 + $0xc] sm:$0xf]
    %v3579 = vld [vmem:[#allocation6 + $0x10] sm:$0xf]
    %v3580 = vld [vmem:[#allocation6 + $0x14] sm:$0xf]
    %v3581 = vld [vmem:[#allocation6 + $0x18] sm:$0xf]
    %v3582 = vld [vmem:[#allocation6 + $0x1c] sm:$0xf]
    %v3583 = vld [vmem:[#allocation6 + $0x20] sm:$0xf]
    %v3584 = vld [vmem:[#allocation6 + $0x24] sm:$0xf]
    %v3585 = vld [vmem:[#allocation6 + $0x28] sm:$0xf]
    %v3586 = vld [vmem:[#allocation6 + $0x2c] sm:$0xf]
    %v3587 = vld [vmem:[#allocation6 + $0x30] sm:$0xf]
    %v3588 = vld [vmem:[#allocation6 + $0x34] sm:$0xf]
    %v3589 = vld [vmem:[#allocation6 + $0x38] sm:$0xf]
    %v3590 = vld [vmem:[#allocation6 + $0x3c] sm:$0xf]
    %v3591 = vld [vmem:[#allocation6 + $0x40] sm:$0xf]
    %v3592 = vld [vmem:[#allocation6 + $0x44] sm:$0xf]
    %v3593 = vld [vmem:[#allocation6 + $0x48] sm:$0xf]
    %v3594 = vld [vmem:[#allocation6 + $0x4c] sm:$0xf]
    %v3595 = vld [vmem:[#allocation6 + $0x50] sm:$0xf]
    %v3596 = vld [vmem:[#allocation6 + $0x54] sm:$0xf]
    %v3597 = vld [vmem:[#allocation6 + $0x58] sm:$0xf]
    %v3598 = vld [vmem:[#allocation6 + $0x5c] sm:$0xf]
    %v3599 = vld [vmem:[#allocation6 + $0x60] sm:$0xf]
    %v3600 = vld [vmem:[#allocation6 + $0x64] sm:$0xf]
    %v3601 = vld [vmem:[#allocation6 + $0x68] sm:$0xf]
    %v3602 = vld [vmem:[#allocation6 + $0x6c] sm:$0xf]
    %v3603 = vld [vmem:[#allocation6 + $0x70] sm:$0xf]
    %v3604 = vld [vmem:[#allocation6 + $0x74] sm:$0xf]
    %v3605 = vld [vmem:[#allocation6 + $0x78] sm:$0xf]
    %v3606 = vld [vmem:[#allocation6 + $0x7c] sm:$0xf]
    %v3607 = vld [vmem:[#allocation6 + $0x80] sm:$0xf]
    %v3608 = vld [vmem:[#allocation6 + $0x84] sm:$0xf]
    %v3609 = vld [vmem:[#allocation6 + $0x88] sm:$0xf]
    %v3610 = vld [vmem:[#allocation6 + $0x8c] sm:$0xf]
    %v3611 = vld [vmem:[#allocation6 + $0x90] sm:$0xf]
    %v3612 = vld [vmem:[#allocation6 + $0x94] sm:$0xf]
    %v3613 = vld [vmem:[#allocation6 + $0x98] sm:$0xf]
    %v3614 = vld [vmem:[#allocation6 + $0x9c] sm:$0xf]
    %v3615 = vld [vmem:[#allocation6 + $0xa0] sm:$0xf]
    %v3616 = vld [vmem:[#allocation6 + $0xa4] sm:$0xf]
    %v3617 = vld [vmem:[#allocation6 + $0xa8] sm:$0xf]
    %v3618 = vld [vmem:[#allocation6 + $0xac] sm:$0xf]
    %v3619 = vld [vmem:[#allocation6 + $0xb0] sm:$0xf]
    %v3620 = vld [vmem:[#allocation6 + $0xb4] sm:$0xf]
    %v3621 = vld [vmem:[#allocation6 + $0xb8] sm:$0xf]
    %v3622 = vld [vmem:[#allocation6 + $0xbc] sm:$0xf]
    %v3623 = vld [vmem:[#allocation6 + $0xc0] sm:$0xf]
    %v3624 = vld [vmem:[#allocation6 + $0xc4] sm:$0xf]
    %v3625 = vld [vmem:[#allocation6 + $0xc8] sm:$0xf]
    %v3626 = vld [vmem:[#allocation6 + $0xcc] sm:$0xf]
    %v3627 = vld [vmem:[#allocation6 + $0xd0] sm:$0xf]
    %v3628 = vld [vmem:[#allocation6 + $0xd4] sm:$0xf]
    %v3629 = vld [vmem:[#allocation6 + $0xd8] sm:$0xf]
    %v3630 = vld [vmem:[#allocation6 + $0xdc] sm:$0xf]
    %v3631 = vld [vmem:[#allocation6 + $0xe0] sm:$0xf]
    %v3632 = vld [vmem:[#allocation6 + $0xe4] sm:$0xf]
    %v3633 = vld [vmem:[#allocation6 + $0xe8] sm:$0xf]
    %v3634 = vld [vmem:[#allocation6 + $0xec] sm:$0xf]
    %v3635 = vld [vmem:[#allocation6 + $0xf0] sm:$0xf]
    %v3636 = vld [vmem:[#allocation6 + $0xf4] sm:$0xf]
    %v3637 = vld [vmem:[#allocation6 + $0xf8] sm:$0xf]
    %v3638 = vld [vmem:[#allocation6 + $0xfc] sm:$0xf]
    %v3639 = vld [vmem:[#allocation7] sm:$0x1]
    %v3641 = vperm.slane %v3639, 0
    %v3707 = vunpack.c.l.b16 %v3575
    %v3708 = vunpack.c.l.b16 %v3576
    %v3709 = vunpack.c.l.b16 %v3577
    %v3710 = vunpack.c.l.b16 %v3578
    %v3711 = vunpack.c.l.b16 %v3579
    %v3712 = vunpack.c.l.b16 %v3580
    %v3713 = vunpack.c.l.b16 %v3581
    %v3714 = vunpack.c.l.b16 %v3582
    %v3715 = vunpack.c.l.b16 %v3583
    %v3716 = vunpack.c.l.b16 %v3584
    %v3717 = vunpack.c.l.b16 %v3585
    %v3718 = vunpack.c.l.b16 %v3586
    %v3719 = vunpack.c.l.b16 %v3587
    %v3720 = vunpack.c.l.b16 %v3588
    %v3721 = vunpack.c.l.b16 %v3589
    %v3722 = vunpack.c.l.b16 %v3590
    %v3723 = vunpack.c.l.b16 %v3591
    %v3724 = vunpack.c.l.b16 %v3592
    %v3725 = vunpack.c.l.b16 %v3593
    %v3726 = vunpack.c.l.b16 %v3594
    %v3727 = vunpack.c.l.b16 %v3595
    %v3728 = vunpack.c.l.b16 %v3596
    %v3729 = vunpack.c.l.b16 %v3597
    %v3730 = vunpack.c.l.b16 %v3598
    %v3731 = vunpack.c.l.b16 %v3599
    %v3732 = vunpack.c.l.b16 %v3600
    %v3733 = vunpack.c.l.b16 %v3601
    %v3734 = vunpack.c.l.b16 %v3602
    %v3735 = vunpack.c.l.b16 %v3603
    %v3736 = vunpack.c.l.b16 %v3604
    %v3737 = vunpack.c.l.b16 %v3605
    %v3738 = vunpack.c.l.b16 %v3606
    %v3739 = vunpack.c.l.b16 %v3607
    %v3740 = vunpack.c.l.b16 %v3608
    %v3741 = vunpack.c.l.b16 %v3609
    %v3742 = vunpack.c.l.b16 %v3610
    %v3743 = vunpack.c.l.b16 %v3611
    %v3744 = vunpack.c.l.b16 %v3612
    %v3745 = vunpack.c.l.b16 %v3613
    %v3746 = vunpack.c.l.b16 %v3614
    %v3747 = vunpack.c.l.b16 %v3615
    %v3748 = vunpack.c.l.b16 %v3616
    %v3749 = vunpack.c.l.b16 %v3617
    %v3750 = vunpack.c.l.b16 %v3618
    %v3751 = vunpack.c.l.b16 %v3619
    %v3752 = vunpack.c.l.b16 %v3620
    %v3753 = vunpack.c.l.b16 %v3621
    %v3754 = vunpack.c.l.b16 %v3622
    %v3755 = vunpack.c.l.b16 %v3623
    %v3756 = vunpack.c.l.b16 %v3624
    %v3757 = vunpack.c.l.b16 %v3625
    %v3758 = vunpack.c.l.b16 %v3626
    %v3759 = vunpack.c.l.b16 %v3627
    %v3760 = vunpack.c.l.b16 %v3628
    %v3761 = vunpack.c.l.b16 %v3629
    %v3762 = vunpack.c.l.b16 %v3630
    %v3763 = vunpack.c.l.b16 %v3631
    %v3764 = vunpack.c.l.b16 %v3632
    %v3765 = vunpack.c.l.b16 %v3633
    %v3766 = vunpack.c.l.b16 %v3634
    %v3767 = vunpack.c.l.b16 %v3635
    %v3768 = vunpack.c.l.b16 %v3636
    %v3769 = vunpack.c.l.b16 %v3637
    %v3770 = vunpack.c.l.b16 %v3638
    %v3771 = vpack.c.b16 %v3708, %v3707
    %v3772 = vpack.c.b16 %v3710, %v3709
    %v3773 = vpack.c.b16 %v3712, %v3711
    %v3774 = vpack.c.b16 %v3714, %v3713
    %v3775 = vpack.c.b16 %v3716, %v3715
    %v3776 = vpack.c.b16 %v3718, %v3717
    %v3777 = vpack.c.b16 %v3720, %v3719
    %v3778 = vpack.c.b16 %v3722, %v3721
    %v3779 = vpack.c.b16 %v3724, %v3723
    %v3780 = vpack.c.b16 %v3726, %v3725
    %v3781 = vpack.c.b16 %v3728, %v3727
    %v3782 = vpack.c.b16 %v3730, %v3729
    %v3783 = vpack.c.b16 %v3732, %v3731
    %v3784 = vpack.c.b16 %v3734, %v3733
    %v3785 = vpack.c.b16 %v3736, %v3735
    %v3786 = vpack.c.b16 %v3738, %v3737
    %v3787 = vpack.c.b16 %v3740, %v3739
    %v3788 = vpack.c.b16 %v3742, %v3741
    %v3789 = vpack.c.b16 %v3744, %v3743
    %v3790 = vpack.c.b16 %v3746, %v3745
    %v3791 = vpack.c.b16 %v3748, %v3747
    %v3792 = vpack.c.b16 %v3750, %v3749
    %v3793 = vpack.c.b16 %v3752, %v3751
    %v3794 = vpack.c.b16 %v3754, %v3753
    %v3795 = vpack.c.b16 %v3756, %v3755
    %v3796 = vpack.c.b16 %v3758, %v3757
    %v3797 = vpack.c.b16 %v3760, %v3759
    %v3798 = vpack.c.b16 %v3762, %v3761
    %v3799 = vpack.c.b16 %v3764, %v3763
    %v3800 = vpack.c.b16 %v3766, %v3765
    %v3801 = vpack.c.b16 %v3768, %v3767
    %v3802 = vpack.c.b16 %v3770, %v3769
    %3835 = vmatpush.bf16.msra.mxu0 %v3778
    %3836 = vmatpush.bf16.msra.mxu0 %v3777
    %3837 = vmatpush.bf16.msra.mxu0 %v3776
    %3838 = vmatpush.bf16.msra.mxu0 %v3775
    %3839 = vmatpush.bf16.msra.mxu0 %v3774
    %3840 = vmatpush.bf16.msra.mxu0 %v3773
    %3841 = vmatpush.bf16.msra.mxu0 %v3772
    %3842 = vmatpush.bf16.msra.mxu0 %v3771
    %3843 = vmatmul.bf16.gmra.mxu0 %v3571
    %v3844 = vpop.f32.mrf.mxu0
    %v3845 = vadd.f32 %v3641, %v3844
    %v3846 = vpop.f32.mrf.mxu0
    %3847 = vdwg.mxu0
    %3848 = vmatpush.bf16.msra.mxu0 %v3786
    %3849 = vmatpush.bf16.msra.mxu0 %v3785
    %3850 = vmatpush.bf16.msra.mxu0 %v3784
    %3851 = vmatpush.bf16.msra.mxu0 %v3783
    %3852 = vmatpush.bf16.msra.mxu0 %v3782
    %3853 = vmatpush.bf16.msra.mxu0 %v3781
    %3854 = vmatpush.bf16.msra.mxu0 %v3780
    %3855 = vmatpush.bf16.msra.mxu0 %v3779
    %3856 = vmatmul.bf16.gmra.mxu0 %v3572
    %v3857 = vpop.f32.mrf.mxu0
    %v3858 = vadd.f32 %v3845, %v3857
    %v3859 = vpop.f32.mrf.mxu0
    %3860 = vdwg.mxu0
    %3861 = vmatpush.bf16.msra.mxu0 %v3794
    %3862 = vmatpush.bf16.msra.mxu0 %v3793
    %3863 = vmatpush.bf16.msra.mxu0 %v3792
    %3864 = vmatpush.bf16.msra.mxu0 %v3791
    %3865 = vmatpush.bf16.msra.mxu0 %v3790
    %3866 = vmatpush.bf16.msra.mxu0 %v3789
    %3867 = vmatpush.bf16.msra.mxu0 %v3788
    %3868 = vmatpush.bf16.msra.mxu0 %v3787
    %3869 = vmatmul.bf16.gmra.mxu0 %v3573
    %v3870 = vpop.f32.mrf.mxu0
    %v3871 = vadd.f32 %v3858, %v3870
    %v3872 = vpop.f32.mrf.mxu0
    %3873 = vdwg.mxu0
    %3874 = vmatpush.bf16.msra.mxu0 %v3802
    %3875 = vmatpush.bf16.msra.mxu0 %v3801
    %3876 = vmatpush.bf16.msra.mxu0 %v3800
    %3877 = vmatpush.bf16.msra.mxu0 %v3799
    %3878 = vmatpush.bf16.msra.mxu0 %v3798
    %3879 = vmatpush.bf16.msra.mxu0 %v3797
    %3880 = vmatpush.bf16.msra.mxu0 %v3796
    %3881 = vmatpush.bf16.msra.mxu0 %v3795
    %3882 = vmatmul.bf16.gmra.mxu0 %v3574
    %v3883 = vpop.f32.mrf.mxu0
    %v3884 = vadd.f32 %v3871, %v3883
    %v3885 = vpop.f32.mrf.mxu0
    %3886 = vdwg.mxu0
    %3887 = vst [vmem:[%s5] sm:$0xff] %v3884
    // Predicated region
    $region38: #{clip_finetune_forward.1} parent=1 // pred_check
      _
    $region39: #{clip_finetune_forward.1} parent=1 // pred_check_branch
      %3889 = sbr.rel (0) target = $region41
    $region40: #{clip_finetune_forward.1} parent=1 // pred_region
      _
    $region41: #{clip_finetune_forward.1} parent=1 // pred_fallthru
      _
    // Predicated region
    $region42: #{clip_finetune_forward.1} parent=1 // pred_check
      _
    $region43: #{clip_finetune_forward.1} parent=1 // pred_check_branch
      %3891 = sbr.rel (0) target = $region45
    $region44: #{clip_finetune_forward.1} parent=1 // pred_region
      _
    $region45: #{clip_finetune_forward.1} parent=1 // pred_fallthru
      _
    %3892 = vsyncpa [#allocation3], 1
    %3893 = vsyncpa [#allocation5], 1
    %3894 = vsyncpa [#allocation8], 1

</llo_original>
